<compile_context>
chip_gen: v5e
topology: v5e:2x2
jax: 0.10.0
libtpu: 0.0.40
codegen_flags: <defaults>
</compile_context>

<pallas_src>
import functools
import math

import jax
import jax.numpy as jnp
from jax import lax
from jax.experimental import pallas as pl
from jax.experimental.pallas import tpu as pltpu

# dtype of the one-hot gather/scatter operands (and of the value operand fed to
# those matmuls).  bfloat16 per review; set to jnp.float32 for exact f32 parity.
ONE_HOT_DTYPE = jnp.bfloat16


# ----------------------------------------------------------------------------
# Single fused Pallas kernel: all layers + final norm + add-pool
# ----------------------------------------------------------------------------

def encoder_kernel(nf_ref, msrc_ref, mdst_ref, ew_ref, rep_ref,
                   wx_ref, was_ref, wad_ref, wea_ref, gb_ref,
                   lng_ref, lnb_ref,
                   w1_ref, b1_ref, w2_ref, b2_ref,
                   fng_ref, fnb_ref, pm_ref,
                   pool_ref, *, heads, out_ch, n_layer):
    f32 = jnp.float32
    H, C = heads, out_ch
    HC = H * C
    mdt = msrc_ref.dtype                      # matmul dtype for gather/scatter

    msrc = msrc_ref[...]                      # [E, N] one_hot(src)
    mdst = mdst_ref[...]                      # [E, N] one_hot(dst)
    ew = ew_ref[...]                          # [E, edge_dim] f32
    rep = rep_ref[...]                        # [H, HC] 0/1 block-repeat matrix

    def leaky(v, slope):
        return jnp.where(v >= 0, v, slope * v)

    def layernorm(y, g, b):
        mu = jnp.mean(y, axis=-1, keepdims=True)
        var = jnp.mean(jnp.square(y - mu), axis=-1, keepdims=True)
        return (y - mu) * lax.rsqrt(var + 1e-6) * g + b

    def gat(x, gi):
        # Node / edge projections (attention vectors folded into the weights,
        # each matmul output starts at lane 0 -> no unaligned lane slices).
        xprime = jnp.dot(x, wx_ref[gi], preferred_element_type=f32)      # [N, HC]
        a_src = jnp.dot(x, was_ref[gi], preferred_element_type=f32)      # [N, H]
        a_dst = jnp.dot(x, wad_ref[gi], preferred_element_type=f32)      # [N, H]
        a_edge = jnp.dot(ew, wea_ref[gi], preferred_element_type=f32)    # [E, H]

        # Per-edge gathers as one-hot matmuls (bf16 operands, f32 accumulation).
        a_src_e = jnp.dot(msrc, a_src.astype(mdt), preferred_element_type=f32)
        a_dst_e = jnp.dot(mdst, a_dst.astype(mdt), preferred_element_type=f32)
        xj = jnp.dot(msrc, xprime.astype(mdt), preferred_element_type=f32)  # [E, HC]

        alpha = leaky(a_src_e + a_dst_e + a_edge, 0.2)                   # [E, H]

        # Per-head global max is enough to stabilize exp (softmax is shift-
        # invariant); every dst segment is non-empty because self-loops were added.
        amax = jnp.max(alpha, axis=0, keepdims=True)                     # [1, H]
        exp_a = jnp.exp(alpha - amax)                                    # [E, H]

        # Normalize AFTER the scatter (commutes with the linear aggregation):
        #   out_unnorm = mdst^T @ (xj * broadcast_h(exp_a))
        #   out        = out_unnorm * broadcast_h(1 / denom_n)
        exp_b = jnp.dot(exp_a, rep, preferred_element_type=f32)          # [E, HC]
        weighted = xj * exp_b                                            # [E, HC]
        out_un = lax.dot_general(mdst, weighted.astype(mdt),
                                 (((0,), (0,)), ((), ())),
                                 preferred_element_type=f32)             # [N, HC]
        denom = lax.dot_general(mdst, exp_a.astype(mdt),
                                (((0,), (0,)), ((), ())),
                                preferred_element_type=f32)              # [N, H]
        inv = 1.0 / (denom + 1e-16)                                      # exact divide
        out = out_un * jnp.dot(inv, rep, preferred_element_type=f32)     # [N, HC]
        return out + gb_ref[gi]

    x = nf_ref[...]
    for l in range(n_layer):                  # n_layer is small & static -> unrolled
        # nf += leaky_relu(LN(GAT1(nf)))
        x = x + leaky(layernorm(gat(x, 2 * l + 0),
                                lng_ref[3 * l + 0], lnb_ref[3 * l + 0]), 0.01)
        # nf += leaky_relu(LN(GAT2(nf)))
        x = x + leaky(layernorm(gat(x, 2 * l + 1),
                                lng_ref[3 * l + 1], lnb_ref[3 * l + 1]), 0.01)
        # nf += leaky_relu(LN(FFN(nf)))  with FFN = w2(relu(w1(x)))
        hdn = jnp.maximum(
            jnp.dot(x, w1_ref[l], preferred_element_type=f32) + b1_ref[l], 0.0)
        ff = jnp.dot(hdn, w2_ref[l], preferred_element_type=f32) + b2_ref[l]
        x = x + leaky(layernorm(ff, lng_ref[3 * l + 2], lnb_ref[3 * l + 2]), 0.01)

    # Final LayerNorm + global_add_pool: pool = pm^T @ LN(x), pm = one_hot(batch).
    xn = layernorm(x, fng_ref[...], fnb_ref[...])
    pool_ref[...] = lax.dot_general(pm_ref[...], xn.astype(mdt),
                                    (((0,), (0,)), ((), ())),
                                    preferred_element_type=f32)


# ----------------------------------------------------------------------------
# Parameter construction (deterministic, host-side glue)
# ----------------------------------------------------------------------------

def glorot(key, shape):
    fan_in, fan_out = shape
    lim = (6.0 / (fan_in + fan_out)) ** 0.5
    return jax.random.uniform(key, shape, jnp.float32, -lim, lim)


def pack_att(att):
    # att [H, C] -> block matrix A [H*C, H] so that (x' @ A)[n, h] = <x'[n,h,:], att[h,:]>
    H, C = att.shape
    A = jnp.zeros((H * C, H), jnp.float32)
    for h in range(H):
        A = A.at[h * C:(h + 1) * C, h].set(att[h])
    return A


def init_encoder_params(key, d_model, d_ff, edge_dim, heads, n_layer):
    out_ch = d_model // heads
    HC = heads * out_ch
    n_gat = 2 * n_layer
    gat_keys = jax.random.split(key, n_gat)
    ffn_keys = jax.random.split(jax.random.fold_in(key, 7), 2 * n_layer)

    wx, was, wad, wea = [], [], [], []
    for g in range(n_gat):
        k = jax.random.split(gat_keys[g], 5)
        W = glorot(k[0], (d_model, HC))
        We = glorot(k[1], (edge_dim, HC))
        att_src = glorot(k[2], (heads, out_ch))
        att_dst = glorot(k[3], (heads, out_ch))
        att_edge = glorot(k[4], (heads, out_ch))
        wx.append(W)
        was.append(W @ pack_att(att_src))      # [d, H]  (att folded into proj)
        wad.append(W @ pack_att(att_dst))      # [d, H]
        wea.append(We @ pack_att(att_edge))    # [edge_dim, H]

    return dict(
        wx=jnp.stack(wx),                                       # [2L, d, HC]
        was=jnp.stack(was),                                     # [2L, d, H]
        wad=jnp.stack(wad),                                     # [2L, d, H]
        wea=jnp.stack(wea),                                     # [2L, edge_dim, H]
        gbias=jnp.zeros((n_gat, 1, HC), jnp.float32),           # [2L, 1, HC]
        ln_g=jnp.ones((3 * n_layer, 1, d_model), jnp.float32),  # [3L, 1, d]
        ln_b=jnp.zeros((3 * n_layer, 1, d_model), jnp.float32),
        w1=jnp.stack([glorot(ffn_keys[2 * i], (d_model, d_ff)) for i in range(n_layer)]),
        b1=jnp.zeros((n_layer, 1, d_ff), jnp.float32),
        w2=jnp.stack([glorot(ffn_keys[2 * i + 1], (d_ff, d_model)) for i in range(n_layer)]),
        b2=jnp.zeros((n_layer, 1, d_model), jnp.float32),
        norm_g=jnp.ones((1, d_model), jnp.float32),
        norm_b=jnp.zeros((1, d_model), jnp.float32),
    )


# ----------------------------------------------------------------------------
# Forward pass (thin glue around the single fused Pallas call)
# ----------------------------------------------------------------------------

def add_self_loops_mean(ei, ew, num_nodes):
    # PyG add_self_loops(fill_value='mean'): self-loop attr = mean of incoming
    # edge attrs (isolated nodes get zeros, matching scatter-mean on empty sets).
    src, dst = ei[0], ei[1]
    seg_sum = jax.ops.segment_sum(ew, dst, num_segments=num_nodes)
    cnt = jax.ops.segment_sum(jnp.ones((ew.shape[0],), jnp.float32), dst,
                              num_segments=num_nodes)
    loop_attr = seg_sum / jnp.maximum(cnt, 1.0)[:, None]
    loop = jnp.arange(num_nodes, dtype=src.dtype)
    return (jnp.concatenate([src, loop]),
            jnp.concatenate([dst, loop]),
            jnp.concatenate([ew, loop_attr], axis=0))


def _vmem_limit_bytes(args, out_shape):
    total = sum(int(a.size) * a.dtype.itemsize for a in args)
    total += math.prod(out_shape.shape) * jnp.dtype(out_shape.dtype).itemsize
    # generous headroom for in-kernel temporaries; capped well below physical VMEM
    return int(min(48 * 1024 * 1024, max(8 * 1024 * 1024, 6 * total)))


def encoder_forward(params, nf, ei, ew, batch, num_graphs, heads):
    N, d_model = nf.shape
    out_ch = d_model // heads
    n_layer = params['w1'].shape[0]

    src, dst, ew_full = add_self_loops_mean(ei, ew, N)
    msrc = jax.nn.one_hot(src, N, dtype=ONE_HOT_DTYPE)        # [E, N]
    mdst = jax.nn.one_hot(dst, N, dtype=ONE_HOT_DTYPE)        # [E, N]
    pm = jax.nn.one_hot(batch, num_graphs, dtype=ONE_HOT_DTYPE)  # [N, G]
    # 0/1 block-repeat matrix: broadcast a per-head scalar onto its C columns.
    rep = jnp.kron(jnp.eye(heads, dtype=jnp.float32),
                   jnp.ones((1, out_ch), jnp.float32))        # [H, HC]

    args = (nf, msrc, mdst, ew_full, rep,
            params['wx'], params['was'], params['wad'], params['wea'],
            params['gbias'], params['ln_g'], params['ln_b'],
            params['w1'], params['b1'], params['w2'], params['b2'],
            params['norm_g'], params['norm_b'], pm)

    out_shape = jax.ShapeDtypeStruct((num_graphs, d_model), jnp.float32)
    vmem = pl.BlockSpec(memory_space=pltpu.MemorySpace.VMEM)

    return pl.pallas_call(
        functools.partial(encoder_kernel, heads=heads, out_ch=out_ch,
                          n_layer=n_layer),
        out_shape=out_shape,
        in_specs=[vmem] * len(args),
        out_specs=vmem,
        compiler_params=pltpu.CompilerParams(
            vmem_limit_bytes=_vmem_limit_bytes(args, out_shape)),
    )(*args)


# ----------------------------------------------------------------------------
# Main
# ----------------------------------------------------------------------------

if __name__ == "__main__":
    d_model, d_ff, edge_dim, e_head, n_layer = 32, 64, 8, 4, 2
    N, G, E0 = 12, 2, 24  # 12 nodes, 2 graphs (6 nodes each), 24 directed edges

    key = jax.random.PRNGKey(0)
    kp, kn, ke, k1, k2, k3, k4 = jax.random.split(key, 7)

    params = init_encoder_params(kp, d_model, d_ff, edge_dim, e_head, n_layer)

    nf = jax.random.normal(kn, (N, d_model), jnp.float32)
    ew = jax.random.normal(ke, (E0, edge_dim), jnp.float32)
    # edges stay within their graph (graph 0: nodes 0..5, graph 1: nodes 6..11)
    src0 = jax.random.randint(k1, (E0 // 2,), 0, 6)
    dst0 = jax.random.randint(k2, (E0 // 2,), 0, 6)
    src1 = jax.random.randint(k3, (E0 // 2,), 6, 12)
    dst1 = jax.random.randint(k4, (E0 // 2,), 6, 12)
    ei = jnp.stack([jnp.concatenate([src0, src1]),
                    jnp.concatenate([dst0, dst1])]).astype(jnp.int32)
    batch = jnp.concatenate([jnp.zeros(6, jnp.int32), jnp.ones(6, jnp.int32)])

    fwd = jax.jit(functools.partial(encoder_forward, params,
                                    num_graphs=G, heads=e_head))
    pool = fwd(nf, ei, ew, batch)
    jax.block_until_ready(pool)

    assert pool.shape == (G, d_model)
    assert bool(jnp.all(jnp.isfinite(pool)))
    print("KERNEL_OK")
</pallas_src>

<mosaic_0001>
module attributes {stable_mosaic.version = 11 : i64} {
  func.func @encoder_kernel(%arg0: memref<12x32xf32, #tpu.memory_space<vmem>>, %arg1: memref<36x12xbf16, #tpu.memory_space<vmem>>, %arg2: memref<36x12xbf16, #tpu.memory_space<vmem>>, %arg3: memref<36x8xf32, #tpu.memory_space<vmem>>, %arg4: memref<4x32xf32, #tpu.memory_space<vmem>>, %arg5: memref<4x32x32xf32, #tpu.memory_space<vmem>>, %arg6: memref<4x32x4xf32, #tpu.memory_space<vmem>>, %arg7: memref<4x32x4xf32, #tpu.memory_space<vmem>>, %arg8: memref<4x8x4xf32, #tpu.memory_space<vmem>>, %arg9: memref<4x1x32xf32, #tpu.memory_space<vmem>>, %arg10: memref<6x1x32xf32, #tpu.memory_space<vmem>>, %arg11: memref<6x1x32xf32, #tpu.memory_space<vmem>>, %arg12: memref<2x32x64xf32, #tpu.memory_space<vmem>>, %arg13: memref<2x1x64xf32, #tpu.memory_space<vmem>>, %arg14: memref<2x64x32xf32, #tpu.memory_space<vmem>>, %arg15: memref<2x1x32xf32, #tpu.memory_space<vmem>>, %arg16: memref<1x32xf32, #tpu.memory_space<vmem>>, %arg17: memref<1x32xf32, #tpu.memory_space<vmem>>, %arg18: memref<12x2xbf16, #tpu.memory_space<vmem>>, %arg19: memref<2x32xf32, #tpu.memory_space<vmem>>) attributes {dimension_semantics = [], scalar_prefetch = 0 : i64, scratch_operands = 0 : i64, tpu.core_type = #tpu.core_type<tc>} {
    %c0 = arith.constant 0 : index
    %c0_0 = arith.constant 0 : index
    %0 = vector.load %arg1[%c0, %c0_0] : memref<36x12xbf16, #tpu.memory_space<vmem>>, vector<36x12xbf16>
    %c0_1 = arith.constant 0 : index
    %c0_2 = arith.constant 0 : index
    %1 = vector.load %arg2[%c0_1, %c0_2] : memref<36x12xbf16, #tpu.memory_space<vmem>>, vector<36x12xbf16>
    %c0_3 = arith.constant 0 : index
    %c0_4 = arith.constant 0 : index
    %2 = vector.load %arg3[%c0_3, %c0_4] : memref<36x8xf32, #tpu.memory_space<vmem>>, vector<36x8xf32>
    %c0_5 = arith.constant 0 : index
    %c0_6 = arith.constant 0 : index
    %3 = vector.load %arg4[%c0_5, %c0_6] : memref<4x32xf32, #tpu.memory_space<vmem>>, vector<4x32xf32>
    %c0_7 = arith.constant 0 : index
    %c0_8 = arith.constant 0 : index
    %4 = vector.load %arg0[%c0_7, %c0_8] : memref<12x32xf32, #tpu.memory_space<vmem>>, vector<12x32xf32>
    %c0_9 = arith.constant 0 : index
    %c0_10 = arith.constant 0 : index
    %c0_11 = arith.constant 0 : index
    %5 = vector.load %arg5[%c0_9, %c0_10, %c0_11] : memref<4x32x32xf32, #tpu.memory_space<vmem>>, vector<1x32x32xf32>
    %6 = vector.shape_cast %5 : vector<1x32x32xf32> to vector<32x32xf32>
    %cst = arith.constant dense<0.000000e+00> : vector<12x32xf32>
    %7 = tpu.matmul %4, %6, %cst {dimension_numbers = #tpu.dot_dimension_numbers<[1], [0], [0], [1], [0, 0, 1, 1], [], []>} : vector<12x32xf32>, vector<32x32xf32>, vector<12x32xf32> -> vector<12x32xf32>
    %c0_12 = arith.constant 0 : index
    %c0_13 = arith.constant 0 : index
    %c0_14 = arith.constant 0 : index
    %8 = vector.load %arg6[%c0_12, %c0_13, %c0_14] : memref<4x32x4xf32, #tpu.memory_space<vmem>>, vector<1x32x4xf32>
    %9 = vector.shape_cast %8 : vector<1x32x4xf32> to vector<32x4xf32>
    %cst_15 = arith.constant dense<0.000000e+00> : vector<12x4xf32>
    %10 = tpu.matmul %4, %9, %cst_15 {dimension_numbers = #tpu.dot_dimension_numbers<[1], [0], [0], [1], [0, 0, 1, 1], [], []>} : vector<12x32xf32>, vector<32x4xf32>, vector<12x4xf32> -> vector<12x4xf32>
    %c0_16 = arith.constant 0 : index
    %c0_17 = arith.constant 0 : index
    %c0_18 = arith.constant 0 : index
    %11 = vector.load %arg7[%c0_16, %c0_17, %c0_18] : memref<4x32x4xf32, #tpu.memory_space<vmem>>, vector<1x32x4xf32>
    %12 = vector.shape_cast %11 : vector<1x32x4xf32> to vector<32x4xf32>
    %cst_19 = arith.constant dense<0.000000e+00> : vector<12x4xf32>
    %13 = tpu.matmul %4, %12, %cst_19 {dimension_numbers = #tpu.dot_dimension_numbers<[1], [0], [0], [1], [0, 0, 1, 1], [], []>} : vector<12x32xf32>, vector<32x4xf32>, vector<12x4xf32> -> vector<12x4xf32>
    %c0_20 = arith.constant 0 : index
    %c0_21 = arith.constant 0 : index
    %c0_22 = arith.constant 0 : index
    %14 = vector.load %arg8[%c0_20, %c0_21, %c0_22] : memref<4x8x4xf32, #tpu.memory_space<vmem>>, vector<1x8x4xf32>
    %15 = vector.shape_cast %14 : vector<1x8x4xf32> to vector<8x4xf32>
    %cst_23 = arith.constant dense<0.000000e+00> : vector<36x4xf32>
    %16 = tpu.matmul %2, %15, %cst_23 {dimension_numbers = #tpu.dot_dimension_numbers<[1], [0], [0], [1], [0, 0, 1, 1], [], []>} : vector<36x8xf32>, vector<8x4xf32>, vector<36x4xf32> -> vector<36x4xf32>
    %17 = arith.truncf %10 : vector<12x4xf32> to vector<12x4xbf16>
    %cst_24 = arith.constant dense<0.000000e+00> : vector<36x4xf32>
    %18 = tpu.matmul %0, %17, %cst_24 {dimension_numbers = #tpu.dot_dimension_numbers<[1], [0], [0], [1], [0, 0, 1, 1], [], []>} : vector<36x12xbf16>, vector<12x4xbf16>, vector<36x4xf32> -> vector<36x4xf32>
    %19 = arith.truncf %13 : vector<12x4xf32> to vector<12x4xbf16>
    %cst_25 = arith.constant dense<0.000000e+00> : vector<36x4xf32>
    %20 = tpu.matmul %1, %19, %cst_25 {dimension_numbers = #tpu.dot_dimension_numbers<[1], [0], [0], [1], [0, 0, 1, 1], [], []>} : vector<36x12xbf16>, vector<12x4xbf16>, vector<36x4xf32> -> vector<36x4xf32>
    %21 = arith.truncf %7 : vector<12x32xf32> to vector<12x32xbf16>
    %cst_26 = arith.constant dense<0.000000e+00> : vector<36x32xf32>
    %22 = tpu.matmul %0, %21, %cst_26 {dimension_numbers = #tpu.dot_dimension_numbers<[1], [0], [0], [1], [0, 0, 1, 1], [], []>} : vector<36x12xbf16>, vector<12x32xbf16>, vector<36x32xf32> -> vector<36x32xf32>
    %23 = arith.addf %18, %20 : vector<36x4xf32>
    %24 = arith.addf %23, %16 : vector<36x4xf32>
    %cst_27 = arith.constant 0.000000e+00 : f32
    %25 = vector.broadcast %cst_27 : f32 to vector<36x4xf32>
    %26 = arith.cmpf oge, %24, %25 : vector<36x4xf32>
    %cst_28 = arith.constant 2.000000e-01 : f32
    %27 = vector.broadcast %cst_28 : f32 to vector<36x4xf32>
    %28 = arith.mulf %27, %24 : vector<36x4xf32>
    %29 = arith.select %26, %24, %28 : vector<36x4xi1>, vector<36x4xf32>
    %cst_29 = arith.constant dense<0xFF800000> : vector<4xf32>
    %30 = vector.multi_reduction <maximumf>, %29, %cst_29 [0] : vector<36x4xf32> to vector<4xf32>
    %31 = vector.shape_cast %30 : vector<4xf32> to vector<1x4xf32>
    %32 = vector.broadcast %31 : vector<1x4xf32> to vector<36x4xf32>
    %33 = arith.subf %29, %32 : vector<36x4xf32>
    %34 = math.exp %33 : vector<36x4xf32>
    %cst_30 = arith.constant dense<0.000000e+00> : vector<36x32xf32>
    %35 = tpu.matmul %34, %3, %cst_30 {dimension_numbers = #tpu.dot_dimension_numbers<[1], [0], [0], [1], [0, 0, 1, 1], [], []>} : vector<36x4xf32>, vector<4x32xf32>, vector<36x32xf32> -> vector<36x32xf32>
    %36 = arith.mulf %22, %35 : vector<36x32xf32>
    %37 = arith.truncf %36 : vector<36x32xf32> to vector<36x32xbf16>
    %cst_31 = arith.constant dense<0.000000e+00> : vector<12x32xf32>
    %38 = tpu.matmul %1, %37, %cst_31 {dimension_numbers = #tpu.dot_dimension_numbers<[0], [0], [1], [1], [0, 1, 1, 1], [], []>} : vector<36x12xbf16>, vector<36x32xbf16>, vector<12x32xf32> -> vector<12x32xf32>
    %39 = arith.truncf %34 : vector<36x4xf32> to vector<36x4xbf16>
    %cst_32 = arith.constant dense<0.000000e+00> : vector<12x4xf32>
    %40 = tpu.matmul %1, %39, %cst_32 {dimension_numbers = #tpu.dot_dimension_numbers<[0], [0], [1], [1], [0, 1, 1, 1], [], []>} : vector<36x12xbf16>, vector<36x4xbf16>, vector<12x4xf32> -> vector<12x4xf32>
    %cst_33 = arith.constant 1.000000e-16 : f32
    %41 = vector.broadcast %cst_33 : f32 to vector<12x4xf32>
    %42 = arith.addf %40, %41 : vector<12x4xf32>
    %cst_34 = arith.constant 1.000000e+00 : f32
    %43 = vector.broadcast %cst_34 : f32 to vector<12x4xf32>
    %44 = arith.divf %43, %42 : vector<12x4xf32>
    %cst_35 = arith.constant dense<0.000000e+00> : vector<12x32xf32>
    %45 = tpu.matmul %44, %3, %cst_35 {dimension_numbers = #tpu.dot_dimension_numbers<[1], [0], [0], [1], [0, 0, 1, 1], [], []>} : vector<12x4xf32>, vector<4x32xf32>, vector<12x32xf32> -> vector<12x32xf32>
    %46 = arith.mulf %38, %45 : vector<12x32xf32>
    %c0_36 = arith.constant 0 : index
    %c0_37 = arith.constant 0 : index
    %c0_38 = arith.constant 0 : index
    %47 = vector.load %arg9[%c0_36, %c0_37, %c0_38] : memref<4x1x32xf32, #tpu.memory_space<vmem>>, vector<1x1x32xf32>
    %48 = vector.shape_cast %47 : vector<1x1x32xf32> to vector<1x32xf32>
    %49 = vector.broadcast %48 : vector<1x32xf32> to vector<12x32xf32>
    %50 = arith.addf %46, %49 : vector<12x32xf32>
    %c0_39 = arith.constant 0 : index
    %c0_40 = arith.constant 0 : index
    %c0_41 = arith.constant 0 : index
    %51 = vector.load %arg10[%c0_39, %c0_40, %c0_41] : memref<6x1x32xf32, #tpu.memory_space<vmem>>, vector<1x1x32xf32>
    %52 = vector.shape_cast %51 : vector<1x1x32xf32> to vector<1x32xf32>
    %c0_42 = arith.constant 0 : index
    %c0_43 = arith.constant 0 : index
    %c0_44 = arith.constant 0 : index
    %53 = vector.load %arg11[%c0_42, %c0_43, %c0_44] : memref<6x1x32xf32, #tpu.memory_space<vmem>>, vector<1x1x32xf32>
    %54 = vector.shape_cast %53 : vector<1x1x32xf32> to vector<1x32xf32>
    %cst_45 = arith.constant dense<0.000000e+00> : vector<12xf32>
    %55 = vector.multi_reduction <add>, %50, %cst_45 [1] : vector<12x32xf32> to vector<12xf32>
    %56 = vector.shape_cast %55 : vector<12xf32> to vector<12x1xf32>
    %cst_46 = arith.constant 3.200000e+01 : f32
    %57 = vector.broadcast %cst_46 : f32 to vector<12x1xf32>
    %58 = arith.divf %56, %57 : vector<12x1xf32>
    %59 = vector.broadcast %58 : vector<12x1xf32> to vector<12x32xf32>
    %60 = arith.subf %50, %59 : vector<12x32xf32>
    %61 = arith.mulf %60, %60 : vector<12x32xf32>
    %cst_47 = arith.constant dense<0.000000e+00> : vector<12xf32>
    %62 = vector.multi_reduction <add>, %61, %cst_47 [1] : vector<12x32xf32> to vector<12xf32>
    %63 = vector.shape_cast %62 : vector<12xf32> to vector<12x1xf32>
    %cst_48 = arith.constant 3.200000e+01 : f32
    %64 = vector.broadcast %cst_48 : f32 to vector<12x1xf32>
    %65 = arith.divf %63, %64 : vector<12x1xf32>
    %66 = vector.broadcast %58 : vector<12x1xf32> to vector<12x32xf32>
    %67 = arith.subf %50, %66 : vector<12x32xf32>
    %cst_49 = arith.constant 9.99999997E-7 : f32
    %68 = vector.broadcast %cst_49 : f32 to vector<12x1xf32>
    %69 = arith.addf %65, %68 : vector<12x1xf32>
    %70 = math.rsqrt %69 : vector<12x1xf32>
    %71 = vector.broadcast %70 : vector<12x1xf32> to vector<12x32xf32>
    %72 = arith.mulf %67, %71 : vector<12x32xf32>
    %73 = vector.broadcast %52 : vector<1x32xf32> to vector<12x32xf32>
    %74 = arith.mulf %72, %73 : vector<12x32xf32>
    %75 = vector.broadcast %54 : vector<1x32xf32> to vector<12x32xf32>
    %76 = arith.addf %74, %75 : vector<12x32xf32>
    %cst_50 = arith.constant 0.000000e+00 : f32
    %77 = vector.broadcast %cst_50 : f32 to vector<12x32xf32>
    %78 = arith.cmpf oge, %76, %77 : vector<12x32xf32>
    %cst_51 = arith.constant 0.00999999977 : f32
    %79 = vector.broadcast %cst_51 : f32 to vector<12x32xf32>
    %80 = arith.mulf %79, %76 : vector<12x32xf32>
    %81 = arith.select %78, %76, %80 : vector<12x32xi1>, vector<12x32xf32>
    %82 = arith.addf %4, %81 : vector<12x32xf32>
    %c1 = arith.constant 1 : index
    %c0_52 = arith.constant 0 : index
    %c0_53 = arith.constant 0 : index
    %83 = vector.load %arg5[%c1, %c0_52, %c0_53] : memref<4x32x32xf32, #tpu.memory_space<vmem>>, vector<1x32x32xf32>
    %84 = vector.shape_cast %83 : vector<1x32x32xf32> to vector<32x32xf32>
    %cst_54 = arith.constant dense<0.000000e+00> : vector<12x32xf32>
    %85 = tpu.matmul %82, %84, %cst_54 {dimension_numbers = #tpu.dot_dimension_numbers<[1], [0], [0], [1], [0, 0, 1, 1], [], []>} : vector<12x32xf32>, vector<32x32xf32>, vector<12x32xf32> -> vector<12x32xf32>
    %c1_55 = arith.constant 1 : index
    %c0_56 = arith.constant 0 : index
    %c0_57 = arith.constant 0 : index
    %86 = vector.load %arg6[%c1_55, %c0_56, %c0_57] : memref<4x32x4xf32, #tpu.memory_space<vmem>>, vector<1x32x4xf32>
    %87 = vector.shape_cast %86 : vector<1x32x4xf32> to vector<32x4xf32>
    %cst_58 = arith.constant dense<0.000000e+00> : vector<12x4xf32>
    %88 = tpu.matmul %82, %87, %cst_58 {dimension_numbers = #tpu.dot_dimension_numbers<[1], [0], [0], [1], [0, 0, 1, 1], [], []>} : vector<12x32xf32>, vector<32x4xf32>, vector<12x4xf32> -> vector<12x4xf32>
    %c1_59 = arith.constant 1 : index
    %c0_60 = arith.constant 0 : index
    %c0_61 = arith.constant 0 : index
    %89 = vector.load %arg7[%c1_59, %c0_60, %c0_61] : memref<4x32x4xf32, #tpu.memory_space<vmem>>, vector<1x32x4xf32>
    %90 = vector.shape_cast %89 : vector<1x32x4xf32> to vector<32x4xf32>
    %cst_62 = arith.constant dense<0.000000e+00> : vector<12x4xf32>
    %91 = tpu.matmul %82, %90, %cst_62 {dimension_numbers = #tpu.dot_dimension_numbers<[1], [0], [0], [1], [0, 0, 1, 1], [], []>} : vector<12x32xf32>, vector<32x4xf32>, vector<12x4xf32> -> vector<12x4xf32>
    %c1_63 = arith.constant 1 : index
    %c0_64 = arith.constant 0 : index
    %c0_65 = arith.constant 0 : index
    %92 = vector.load %arg8[%c1_63, %c0_64, %c0_65] : memref<4x8x4xf32, #tpu.memory_space<vmem>>, vector<1x8x4xf32>
    %93 = vector.shape_cast %92 : vector<1x8x4xf32> to vector<8x4xf32>
    %cst_66 = arith.constant dense<0.000000e+00> : vector<36x4xf32>
    %94 = tpu.matmul %2, %93, %cst_66 {dimension_numbers = #tpu.dot_dimension_numbers<[1], [0], [0], [1], [0, 0, 1, 1], [], []>} : vector<36x8xf32>, vector<8x4xf32>, vector<36x4xf32> -> vector<36x4xf32>
    %95 = arith.truncf %88 : vector<12x4xf32> to vector<12x4xbf16>
    %cst_67 = arith.constant dense<0.000000e+00> : vector<36x4xf32>
    %96 = tpu.matmul %0, %95, %cst_67 {dimension_numbers = #tpu.dot_dimension_numbers<[1], [0], [0], [1], [0, 0, 1, 1], [], []>} : vector<36x12xbf16>, vector<12x4xbf16>, vector<36x4xf32> -> vector<36x4xf32>
    %97 = arith.truncf %91 : vector<12x4xf32> to vector<12x4xbf16>
    %cst_68 = arith.constant dense<0.000000e+00> : vector<36x4xf32>
    %98 = tpu.matmul %1, %97, %cst_68 {dimension_numbers = #tpu.dot_dimension_numbers<[1], [0], [0], [1], [0, 0, 1, 1], [], []>} : vector<36x12xbf16>, vector<12x4xbf16>, vector<36x4xf32> -> vector<36x4xf32>
    %99 = arith.truncf %85 : vector<12x32xf32> to vector<12x32xbf16>
    %cst_69 = arith.constant dense<0.000000e+00> : vector<36x32xf32>
    %100 = tpu.matmul %0, %99, %cst_69 {dimension_numbers = #tpu.dot_dimension_numbers<[1], [0], [0], [1], [0, 0, 1, 1], [], []>} : vector<36x12xbf16>, vector<12x32xbf16>, vector<36x32xf32> -> vector<36x32xf32>
    %101 = arith.addf %96, %98 : vector<36x4xf32>
    %102 = arith.addf %101, %94 : vector<36x4xf32>
    %cst_70 = arith.constant 0.000000e+00 : f32
    %103 = vector.broadcast %cst_70 : f32 to vector<36x4xf32>
    %104 = arith.cmpf oge, %102, %103 : vector<36x4xf32>
    %cst_71 = arith.constant 2.000000e-01 : f32
    %105 = vector.broadcast %cst_71 : f32 to vector<36x4xf32>
    %106 = arith.mulf %105, %102 : vector<36x4xf32>
    %107 = arith.select %104, %102, %106 : vector<36x4xi1>, vector<36x4xf32>
    %cst_72 = arith.constant dense<0xFF800000> : vector<4xf32>
    %108 = vector.multi_reduction <maximumf>, %107, %cst_72 [0] : vector<36x4xf32> to vector<4xf32>
    %109 = vector.shape_cast %108 : vector<4xf32> to vector<1x4xf32>
    %110 = vector.broadcast %109 : vector<1x4xf32> to vector<36x4xf32>
    %111 = arith.subf %107, %110 : vector<36x4xf32>
    %112 = math.exp %111 : vector<36x4xf32>
    %cst_73 = arith.constant dense<0.000000e+00> : vector<36x32xf32>
    %113 = tpu.matmul %112, %3, %cst_73 {dimension_numbers = #tpu.dot_dimension_numbers<[1], [0], [0], [1], [0, 0, 1, 1], [], []>} : vector<36x4xf32>, vector<4x32xf32>, vector<36x32xf32> -> vector<36x32xf32>
    %114 = arith.mulf %100, %113 : vector<36x32xf32>
    %115 = arith.truncf %114 : vector<36x32xf32> to vector<36x32xbf16>
    %cst_74 = arith.constant dense<0.000000e+00> : vector<12x32xf32>
    %116 = tpu.matmul %1, %115, %cst_74 {dimension_numbers = #tpu.dot_dimension_numbers<[0], [0], [1], [1], [0, 1, 1, 1], [], []>} : vector<36x12xbf16>, vector<36x32xbf16>, vector<12x32xf32> -> vector<12x32xf32>
    %117 = arith.truncf %112 : vector<36x4xf32> to vector<36x4xbf16>
    %cst_75 = arith.constant dense<0.000000e+00> : vector<12x4xf32>
    %118 = tpu.matmul %1, %117, %cst_75 {dimension_numbers = #tpu.dot_dimension_numbers<[0], [0], [1], [1], [0, 1, 1, 1], [], []>} : vector<36x12xbf16>, vector<36x4xbf16>, vector<12x4xf32> -> vector<12x4xf32>
    %cst_76 = arith.constant 1.000000e-16 : f32
    %119 = vector.broadcast %cst_76 : f32 to vector<12x4xf32>
    %120 = arith.addf %118, %119 : vector<12x4xf32>
    %cst_77 = arith.constant 1.000000e+00 : f32
    %121 = vector.broadcast %cst_77 : f32 to vector<12x4xf32>
    %122 = arith.divf %121, %120 : vector<12x4xf32>
    %cst_78 = arith.constant dense<0.000000e+00> : vector<12x32xf32>
    %123 = tpu.matmul %122, %3, %cst_78 {dimension_numbers = #tpu.dot_dimension_numbers<[1], [0], [0], [1], [0, 0, 1, 1], [], []>} : vector<12x4xf32>, vector<4x32xf32>, vector<12x32xf32> -> vector<12x32xf32>
    %124 = arith.mulf %116, %123 : vector<12x32xf32>
    %c1_79 = arith.constant 1 : index
    %c0_80 = arith.constant 0 : index
    %c0_81 = arith.constant 0 : index
    %125 = vector.load %arg9[%c1_79, %c0_80, %c0_81] : memref<4x1x32xf32, #tpu.memory_space<vmem>>, vector<1x1x32xf32>
    %126 = vector.shape_cast %125 : vector<1x1x32xf32> to vector<1x32xf32>
    %127 = vector.broadcast %126 : vector<1x32xf32> to vector<12x32xf32>
    %128 = arith.addf %124, %127 : vector<12x32xf32>
    %c1_82 = arith.constant 1 : index
    %c0_83 = arith.constant 0 : index
    %c0_84 = arith.constant 0 : index
    %129 = vector.load %arg10[%c1_82, %c0_83, %c0_84] : memref<6x1x32xf32, #tpu.memory_space<vmem>>, vector<1x1x32xf32>
    %130 = vector.shape_cast %129 : vector<1x1x32xf32> to vector<1x32xf32>
    %c1_85 = arith.constant 1 : index
    %c0_86 = arith.constant 0 : index
    %c0_87 = arith.constant 0 : index
    %131 = vector.load %arg11[%c1_85, %c0_86, %c0_87] : memref<6x1x32xf32, #tpu.memory_space<vmem>>, vector<1x1x32xf32>
    %132 = vector.shape_cast %131 : vector<1x1x32xf32> to vector<1x32xf32>
    %cst_88 = arith.constant dense<0.000000e+00> : vector<12xf32>
    %133 = vector.multi_reduction <add>, %128, %cst_88 [1] : vector<12x32xf32> to vector<12xf32>
    %134 = vector.shape_cast %133 : vector<12xf32> to vector<12x1xf32>
    %cst_89 = arith.constant 3.200000e+01 : f32
    %135 = vector.broadcast %cst_89 : f32 to vector<12x1xf32>
    %136 = arith.divf %134, %135 : vector<12x1xf32>
    %137 = vector.broadcast %136 : vector<12x1xf32> to vector<12x32xf32>
    %138 = arith.subf %128, %137 : vector<12x32xf32>
    %139 = arith.mulf %138, %138 : vector<12x32xf32>
    %cst_90 = arith.constant dense<0.000000e+00> : vector<12xf32>
    %140 = vector.multi_reduction <add>, %139, %cst_90 [1] : vector<12x32xf32> to vector<12xf32>
    %141 = vector.shape_cast %140 : vector<12xf32> to vector<12x1xf32>
    %cst_91 = arith.constant 3.200000e+01 : f32
    %142 = vector.broadcast %cst_91 : f32 to vector<12x1xf32>
    %143 = arith.divf %141, %142 : vector<12x1xf32>
    %144 = vector.broadcast %136 : vector<12x1xf32> to vector<12x32xf32>
    %145 = arith.subf %128, %144 : vector<12x32xf32>
    %cst_92 = arith.constant 9.99999997E-7 : f32
    %146 = vector.broadcast %cst_92 : f32 to vector<12x1xf32>
    %147 = arith.addf %143, %146 : vector<12x1xf32>
    %148 = math.rsqrt %147 : vector<12x1xf32>
    %149 = vector.broadcast %148 : vector<12x1xf32> to vector<12x32xf32>
    %150 = arith.mulf %145, %149 : vector<12x32xf32>
    %151 = vector.broadcast %130 : vector<1x32xf32> to vector<12x32xf32>
    %152 = arith.mulf %150, %151 : vector<12x32xf32>
    %153 = vector.broadcast %132 : vector<1x32xf32> to vector<12x32xf32>
    %154 = arith.addf %152, %153 : vector<12x32xf32>
    %cst_93 = arith.constant 0.000000e+00 : f32
    %155 = vector.broadcast %cst_93 : f32 to vector<12x32xf32>
    %156 = arith.cmpf oge, %154, %155 : vector<12x32xf32>
    %cst_94 = arith.constant 0.00999999977 : f32
    %157 = vector.broadcast %cst_94 : f32 to vector<12x32xf32>
    %158 = arith.mulf %157, %154 : vector<12x32xf32>
    %159 = arith.select %156, %154, %158 : vector<12x32xi1>, vector<12x32xf32>
    %160 = arith.addf %82, %159 : vector<12x32xf32>
    %c0_95 = arith.constant 0 : index
    %c0_96 = arith.constant 0 : index
    %c0_97 = arith.constant 0 : index
    %161 = vector.load %arg12[%c0_95, %c0_96, %c0_97] : memref<2x32x64xf32, #tpu.memory_space<vmem>>, vector<1x32x64xf32>
    %162 = vector.shape_cast %161 : vector<1x32x64xf32> to vector<32x64xf32>
    %cst_98 = arith.constant dense<0.000000e+00> : vector<12x64xf32>
    %163 = tpu.matmul %160, %162, %cst_98 {dimension_numbers = #tpu.dot_dimension_numbers<[1], [0], [0], [1], [0, 0, 1, 1], [], []>} : vector<12x32xf32>, vector<32x64xf32>, vector<12x64xf32> -> vector<12x64xf32>
    %c0_99 = arith.constant 0 : index
    %c0_100 = arith.constant 0 : index
    %c0_101 = arith.constant 0 : index
    %164 = vector.load %arg13[%c0_99, %c0_100, %c0_101] : memref<2x1x64xf32, #tpu.memory_space<vmem>>, vector<1x1x64xf32>
    %165 = vector.shape_cast %164 : vector<1x1x64xf32> to vector<1x64xf32>
    %166 = vector.broadcast %165 : vector<1x64xf32> to vector<12x64xf32>
    %167 = arith.addf %163, %166 : vector<12x64xf32>
    %cst_102 = arith.constant 0.000000e+00 : f32
    %168 = vector.broadcast %cst_102 : f32 to vector<12x64xf32>
    %169 = arith.maximumf %167, %168 : vector<12x64xf32>
    %c0_103 = arith.constant 0 : index
    %c0_104 = arith.constant 0 : index
    %c0_105 = arith.constant 0 : index
    %170 = vector.load %arg14[%c0_103, %c0_104, %c0_105] : memref<2x64x32xf32, #tpu.memory_space<vmem>>, vector<1x64x32xf32>
    %171 = vector.shape_cast %170 : vector<1x64x32xf32> to vector<64x32xf32>
    %cst_106 = arith.constant dense<0.000000e+00> : vector<12x32xf32>
    %172 = tpu.matmul %169, %171, %cst_106 {dimension_numbers = #tpu.dot_dimension_numbers<[1], [0], [0], [1], [0, 0, 1, 1], [], []>} : vector<12x64xf32>, vector<64x32xf32>, vector<12x32xf32> -> vector<12x32xf32>
    %c0_107 = arith.constant 0 : index
    %c0_108 = arith.constant 0 : index
    %c0_109 = arith.constant 0 : index
    %173 = vector.load %arg15[%c0_107, %c0_108, %c0_109] : memref<2x1x32xf32, #tpu.memory_space<vmem>>, vector<1x1x32xf32>
    %174 = vector.shape_cast %173 : vector<1x1x32xf32> to vector<1x32xf32>
    %175 = vector.broadcast %174 : vector<1x32xf32> to vector<12x32xf32>
    %176 = arith.addf %172, %175 : vector<12x32xf32>
    %c2 = arith.constant 2 : index
    %c0_110 = arith.constant 0 : index
    %c0_111 = arith.constant 0 : index
    %177 = vector.load %arg10[%c2, %c0_110, %c0_111] : memref<6x1x32xf32, #tpu.memory_space<vmem>>, vector<1x1x32xf32>
    %178 = vector.shape_cast %177 : vector<1x1x32xf32> to vector<1x32xf32>
    %c2_112 = arith.constant 2 : index
    %c0_113 = arith.constant 0 : index
    %c0_114 = arith.constant 0 : index
    %179 = vector.load %arg11[%c2_112, %c0_113, %c0_114] : memref<6x1x32xf32, #tpu.memory_space<vmem>>, vector<1x1x32xf32>
    %180 = vector.shape_cast %179 : vector<1x1x32xf32> to vector<1x32xf32>
    %cst_115 = arith.constant dense<0.000000e+00> : vector<12xf32>
    %181 = vector.multi_reduction <add>, %176, %cst_115 [1] : vector<12x32xf32> to vector<12xf32>
    %182 = vector.shape_cast %181 : vector<12xf32> to vector<12x1xf32>
    %cst_116 = arith.constant 3.200000e+01 : f32
    %183 = vector.broadcast %cst_116 : f32 to vector<12x1xf32>
    %184 = arith.divf %182, %183 : vector<12x1xf32>
    %185 = vector.broadcast %184 : vector<12x1xf32> to vector<12x32xf32>
    %186 = arith.subf %176, %185 : vector<12x32xf32>
    %187 = arith.mulf %186, %186 : vector<12x32xf32>
    %cst_117 = arith.constant dense<0.000000e+00> : vector<12xf32>
    %188 = vector.multi_reduction <add>, %187, %cst_117 [1] : vector<12x32xf32> to vector<12xf32>
    %189 = vector.shape_cast %188 : vector<12xf32> to vector<12x1xf32>
    %cst_118 = arith.constant 3.200000e+01 : f32
    %190 = vector.broadcast %cst_118 : f32 to vector<12x1xf32>
    %191 = arith.divf %189, %190 : vector<12x1xf32>
    %192 = vector.broadcast %184 : vector<12x1xf32> to vector<12x32xf32>
    %193 = arith.subf %176, %192 : vector<12x32xf32>
    %cst_119 = arith.constant 9.99999997E-7 : f32
    %194 = vector.broadcast %cst_119 : f32 to vector<12x1xf32>
    %195 = arith.addf %191, %194 : vector<12x1xf32>
    %196 = math.rsqrt %195 : vector<12x1xf32>
    %197 = vector.broadcast %196 : vector<12x1xf32> to vector<12x32xf32>
    %198 = arith.mulf %193, %197 : vector<12x32xf32>
    %199 = vector.broadcast %178 : vector<1x32xf32> to vector<12x32xf32>
    %200 = arith.mulf %198, %199 : vector<12x32xf32>
    %201 = vector.broadcast %180 : vector<1x32xf32> to vector<12x32xf32>
    %202 = arith.addf %200, %201 : vector<12x32xf32>
    %cst_120 = arith.constant 0.000000e+00 : f32
    %203 = vector.broadcast %cst_120 : f32 to vector<12x32xf32>
    %204 = arith.cmpf oge, %202, %203 : vector<12x32xf32>
    %cst_121 = arith.constant 0.00999999977 : f32
    %205 = vector.broadcast %cst_121 : f32 to vector<12x32xf32>
    %206 = arith.mulf %205, %202 : vector<12x32xf32>
    %207 = arith.select %204, %202, %206 : vector<12x32xi1>, vector<12x32xf32>
    %208 = arith.addf %160, %207 : vector<12x32xf32>
    %c2_122 = arith.constant 2 : index
    %c0_123 = arith.constant 0 : index
    %c0_124 = arith.constant 0 : index
    %209 = vector.load %arg5[%c2_122, %c0_123, %c0_124] : memref<4x32x32xf32, #tpu.memory_space<vmem>>, vector<1x32x32xf32>
    %210 = vector.shape_cast %209 : vector<1x32x32xf32> to vector<32x32xf32>
    %cst_125 = arith.constant dense<0.000000e+00> : vector<12x32xf32>
    %211 = tpu.matmul %208, %210, %cst_125 {dimension_numbers = #tpu.dot_dimension_numbers<[1], [0], [0], [1], [0, 0, 1, 1], [], []>} : vector<12x32xf32>, vector<32x32xf32>, vector<12x32xf32> -> vector<12x32xf32>
    %c2_126 = arith.constant 2 : index
    %c0_127 = arith.constant 0 : index
    %c0_128 = arith.constant 0 : index
    %212 = vector.load %arg6[%c2_126, %c0_127, %c0_128] : memref<4x32x4xf32, #tpu.memory_space<vmem>>, vector<1x32x4xf32>
    %213 = vector.shape_cast %212 : vector<1x32x4xf32> to vector<32x4xf32>
    %cst_129 = arith.constant dense<0.000000e+00> : vector<12x4xf32>
    %214 = tpu.matmul %208, %213, %cst_129 {dimension_numbers = #tpu.dot_dimension_numbers<[1], [0], [0], [1], [0, 0, 1, 1], [], []>} : vector<12x32xf32>, vector<32x4xf32>, vector<12x4xf32> -> vector<12x4xf32>
    %c2_130 = arith.constant 2 : index
    %c0_131 = arith.constant 0 : index
    %c0_132 = arith.constant 0 : index
    %215 = vector.load %arg7[%c2_130, %c0_131, %c0_132] : memref<4x32x4xf32, #tpu.memory_space<vmem>>, vector<1x32x4xf32>
    %216 = vector.shape_cast %215 : vector<1x32x4xf32> to vector<32x4xf32>
    %cst_133 = arith.constant dense<0.000000e+00> : vector<12x4xf32>
    %217 = tpu.matmul %208, %216, %cst_133 {dimension_numbers = #tpu.dot_dimension_numbers<[1], [0], [0], [1], [0, 0, 1, 1], [], []>} : vector<12x32xf32>, vector<32x4xf32>, vector<12x4xf32> -> vector<12x4xf32>
    %c2_134 = arith.constant 2 : index
    %c0_135 = arith.constant 0 : index
    %c0_136 = arith.constant 0 : index
    %218 = vector.load %arg8[%c2_134, %c0_135, %c0_136] : memref<4x8x4xf32, #tpu.memory_space<vmem>>, vector<1x8x4xf32>
    %219 = vector.shape_cast %218 : vector<1x8x4xf32> to vector<8x4xf32>
    %cst_137 = arith.constant dense<0.000000e+00> : vector<36x4xf32>
    %220 = tpu.matmul %2, %219, %cst_137 {dimension_numbers = #tpu.dot_dimension_numbers<[1], [0], [0], [1], [0, 0, 1, 1], [], []>} : vector<36x8xf32>, vector<8x4xf32>, vector<36x4xf32> -> vector<36x4xf32>
    %221 = arith.truncf %214 : vector<12x4xf32> to vector<12x4xbf16>
    %cst_138 = arith.constant dense<0.000000e+00> : vector<36x4xf32>
    %222 = tpu.matmul %0, %221, %cst_138 {dimension_numbers = #tpu.dot_dimension_numbers<[1], [0], [0], [1], [0, 0, 1, 1], [], []>} : vector<36x12xbf16>, vector<12x4xbf16>, vector<36x4xf32> -> vector<36x4xf32>
    %223 = arith.truncf %217 : vector<12x4xf32> to vector<12x4xbf16>
    %cst_139 = arith.constant dense<0.000000e+00> : vector<36x4xf32>
    %224 = tpu.matmul %1, %223, %cst_139 {dimension_numbers = #tpu.dot_dimension_numbers<[1], [0], [0], [1], [0, 0, 1, 1], [], []>} : vector<36x12xbf16>, vector<12x4xbf16>, vector<36x4xf32> -> vector<36x4xf32>
    %225 = arith.truncf %211 : vector<12x32xf32> to vector<12x32xbf16>
    %cst_140 = arith.constant dense<0.000000e+00> : vector<36x32xf32>
    %226 = tpu.matmul %0, %225, %cst_140 {dimension_numbers = #tpu.dot_dimension_numbers<[1], [0], [0], [1], [0, 0, 1, 1], [], []>} : vector<36x12xbf16>, vector<12x32xbf16>, vector<36x32xf32> -> vector<36x32xf32>
    %227 = arith.addf %222, %224 : vector<36x4xf32>
    %228 = arith.addf %227, %220 : vector<36x4xf32>
    %cst_141 = arith.constant 0.000000e+00 : f32
    %229 = vector.broadcast %cst_141 : f32 to vector<36x4xf32>
    %230 = arith.cmpf oge, %228, %229 : vector<36x4xf32>
    %cst_142 = arith.constant 2.000000e-01 : f32
    %231 = vector.broadcast %cst_142 : f32 to vector<36x4xf32>
    %232 = arith.mulf %231, %228 : vector<36x4xf32>
    %233 = arith.select %230, %228, %232 : vector<36x4xi1>, vector<36x4xf32>
    %cst_143 = arith.constant dense<0xFF800000> : vector<4xf32>
    %234 = vector.multi_reduction <maximumf>, %233, %cst_143 [0] : vector<36x4xf32> to vector<4xf32>
    %235 = vector.shape_cast %234 : vector<4xf32> to vector<1x4xf32>
    %236 = vector.broadcast %235 : vector<1x4xf32> to vector<36x4xf32>
    %237 = arith.subf %233, %236 : vector<36x4xf32>
    %238 = math.exp %237 : vector<36x4xf32>
    %cst_144 = arith.constant dense<0.000000e+00> : vector<36x32xf32>
    %239 = tpu.matmul %238, %3, %cst_144 {dimension_numbers = #tpu.dot_dimension_numbers<[1], [0], [0], [1], [0, 0, 1, 1], [], []>} : vector<36x4xf32>, vector<4x32xf32>, vector<36x32xf32> -> vector<36x32xf32>
    %240 = arith.mulf %226, %239 : vector<36x32xf32>
    %241 = arith.truncf %240 : vector<36x32xf32> to vector<36x32xbf16>
    %cst_145 = arith.constant dense<0.000000e+00> : vector<12x32xf32>
    %242 = tpu.matmul %1, %241, %cst_145 {dimension_numbers = #tpu.dot_dimension_numbers<[0], [0], [1], [1], [0, 1, 1, 1], [], []>} : vector<36x12xbf16>, vector<36x32xbf16>, vector<12x32xf32> -> vector<12x32xf32>
    %243 = arith.truncf %238 : vector<36x4xf32> to vector<36x4xbf16>
    %cst_146 = arith.constant dense<0.000000e+00> : vector<12x4xf32>
    %244 = tpu.matmul %1, %243, %cst_146 {dimension_numbers = #tpu.dot_dimension_numbers<[0], [0], [1], [1], [0, 1, 1, 1], [], []>} : vector<36x12xbf16>, vector<36x4xbf16>, vector<12x4xf32> -> vector<12x4xf32>
    %cst_147 = arith.constant 1.000000e-16 : f32
    %245 = vector.broadcast %cst_147 : f32 to vector<12x4xf32>
    %246 = arith.addf %244, %245 : vector<12x4xf32>
    %cst_148 = arith.constant 1.000000e+00 : f32
    %247 = vector.broadcast %cst_148 : f32 to vector<12x4xf32>
    %248 = arith.divf %247, %246 : vector<12x4xf32>
    %cst_149 = arith.constant dense<0.000000e+00> : vector<12x32xf32>
    %249 = tpu.matmul %248, %3, %cst_149 {dimension_numbers = #tpu.dot_dimension_numbers<[1], [0], [0], [1], [0, 0, 1, 1], [], []>} : vector<12x4xf32>, vector<4x32xf32>, vector<12x32xf32> -> vector<12x32xf32>
    %250 = arith.mulf %242, %249 : vector<12x32xf32>
    %c2_150 = arith.constant 2 : index
    %c0_151 = arith.constant 0 : index
    %c0_152 = arith.constant 0 : index
    %251 = vector.load %arg9[%c2_150, %c0_151, %c0_152] : memref<4x1x32xf32, #tpu.memory_space<vmem>>, vector<1x1x32xf32>
    %252 = vector.shape_cast %251 : vector<1x1x32xf32> to vector<1x32xf32>
    %253 = vector.broadcast %252 : vector<1x32xf32> to vector<12x32xf32>
    %254 = arith.addf %250, %253 : vector<12x32xf32>
    %c3 = arith.constant 3 : index
    %c0_153 = arith.constant 0 : index
    %c0_154 = arith.constant 0 : index
    %255 = vector.load %arg10[%c3, %c0_153, %c0_154] : memref<6x1x32xf32, #tpu.memory_space<vmem>>, vector<1x1x32xf32>
    %256 = vector.shape_cast %255 : vector<1x1x32xf32> to vector<1x32xf32>
    %c3_155 = arith.constant 3 : index
    %c0_156 = arith.constant 0 : index
    %c0_157 = arith.constant 0 : index
    %257 = vector.load %arg11[%c3_155, %c0_156, %c0_157] : memref<6x1x32xf32, #tpu.memory_space<vmem>>, vector<1x1x32xf32>
    %258 = vector.shape_cast %257 : vector<1x1x32xf32> to vector<1x32xf32>
    %cst_158 = arith.constant dense<0.000000e+00> : vector<12xf32>
    %259 = vector.multi_reduction <add>, %254, %cst_158 [1] : vector<12x32xf32> to vector<12xf32>
    %260 = vector.shape_cast %259 : vector<12xf32> to vector<12x1xf32>
    %cst_159 = arith.constant 3.200000e+01 : f32
    %261 = vector.broadcast %cst_159 : f32 to vector<12x1xf32>
    %262 = arith.divf %260, %261 : vector<12x1xf32>
    %263 = vector.broadcast %262 : vector<12x1xf32> to vector<12x32xf32>
    %264 = arith.subf %254, %263 : vector<12x32xf32>
    %265 = arith.mulf %264, %264 : vector<12x32xf32>
    %cst_160 = arith.constant dense<0.000000e+00> : vector<12xf32>
    %266 = vector.multi_reduction <add>, %265, %cst_160 [1] : vector<12x32xf32> to vector<12xf32>
    %267 = vector.shape_cast %266 : vector<12xf32> to vector<12x1xf32>
    %cst_161 = arith.constant 3.200000e+01 : f32
    %268 = vector.broadcast %cst_161 : f32 to vector<12x1xf32>
    %269 = arith.divf %267, %268 : vector<12x1xf32>
    %270 = vector.broadcast %262 : vector<12x1xf32> to vector<12x32xf32>
    %271 = arith.subf %254, %270 : vector<12x32xf32>
    %cst_162 = arith.constant 9.99999997E-7 : f32
    %272 = vector.broadcast %cst_162 : f32 to vector<12x1xf32>
    %273 = arith.addf %269, %272 : vector<12x1xf32>
    %274 = math.rsqrt %273 : vector<12x1xf32>
    %275 = vector.broadcast %274 : vector<12x1xf32> to vector<12x32xf32>
    %276 = arith.mulf %271, %275 : vector<12x32xf32>
    %277 = vector.broadcast %256 : vector<1x32xf32> to vector<12x32xf32>
    %278 = arith.mulf %276, %277 : vector<12x32xf32>
    %279 = vector.broadcast %258 : vector<1x32xf32> to vector<12x32xf32>
    %280 = arith.addf %278, %279 : vector<12x32xf32>
    %cst_163 = arith.constant 0.000000e+00 : f32
    %281 = vector.broadcast %cst_163 : f32 to vector<12x32xf32>
    %282 = arith.cmpf oge, %280, %281 : vector<12x32xf32>
    %cst_164 = arith.constant 0.00999999977 : f32
    %283 = vector.broadcast %cst_164 : f32 to vector<12x32xf32>
    %284 = arith.mulf %283, %280 : vector<12x32xf32>
    %285 = arith.select %282, %280, %284 : vector<12x32xi1>, vector<12x32xf32>
    %286 = arith.addf %208, %285 : vector<12x32xf32>
    %c3_165 = arith.constant 3 : index
    %c0_166 = arith.constant 0 : index
    %c0_167 = arith.constant 0 : index
    %287 = vector.load %arg5[%c3_165, %c0_166, %c0_167] : memref<4x32x32xf32, #tpu.memory_space<vmem>>, vector<1x32x32xf32>
    %288 = vector.shape_cast %287 : vector<1x32x32xf32> to vector<32x32xf32>
    %cst_168 = arith.constant dense<0.000000e+00> : vector<12x32xf32>
    %289 = tpu.matmul %286, %288, %cst_168 {dimension_numbers = #tpu.dot_dimension_numbers<[1], [0], [0], [1], [0, 0, 1, 1], [], []>} : vector<12x32xf32>, vector<32x32xf32>, vector<12x32xf32> -> vector<12x32xf32>
    %c3_169 = arith.constant 3 : index
    %c0_170 = arith.constant 0 : index
    %c0_171 = arith.constant 0 : index
    %290 = vector.load %arg6[%c3_169, %c0_170, %c0_171] : memref<4x32x4xf32, #tpu.memory_space<vmem>>, vector<1x32x4xf32>
    %291 = vector.shape_cast %290 : vector<1x32x4xf32> to vector<32x4xf32>
    %cst_172 = arith.constant dense<0.000000e+00> : vector<12x4xf32>
    %292 = tpu.matmul %286, %291, %cst_172 {dimension_numbers = #tpu.dot_dimension_numbers<[1], [0], [0], [1], [0, 0, 1, 1], [], []>} : vector<12x32xf32>, vector<32x4xf32>, vector<12x4xf32> -> vector<12x4xf32>
    %c3_173 = arith.constant 3 : index
    %c0_174 = arith.constant 0 : index
    %c0_175 = arith.constant 0 : index
    %293 = vector.load %arg7[%c3_173, %c0_174, %c0_175] : memref<4x32x4xf32, #tpu.memory_space<vmem>>, vector<1x32x4xf32>
    %294 = vector.shape_cast %293 : vector<1x32x4xf32> to vector<32x4xf32>
    %cst_176 = arith.constant dense<0.000000e+00> : vector<12x4xf32>
    %295 = tpu.matmul %286, %294, %cst_176 {dimension_numbers = #tpu.dot_dimension_numbers<[1], [0], [0], [1], [0, 0, 1, 1], [], []>} : vector<12x32xf32>, vector<32x4xf32>, vector<12x4xf32> -> vector<12x4xf32>
    %c3_177 = arith.constant 3 : index
    %c0_178 = arith.constant 0 : index
    %c0_179 = arith.constant 0 : index
    %296 = vector.load %arg8[%c3_177, %c0_178, %c0_179] : memref<4x8x4xf32, #tpu.memory_space<vmem>>, vector<1x8x4xf32>
    %297 = vector.shape_cast %296 : vector<1x8x4xf32> to vector<8x4xf32>
    %cst_180 = arith.constant dense<0.000000e+00> : vector<36x4xf32>
    %298 = tpu.matmul %2, %297, %cst_180 {dimension_numbers = #tpu.dot_dimension_numbers<[1], [0], [0], [1], [0, 0, 1, 1], [], []>} : vector<36x8xf32>, vector<8x4xf32>, vector<36x4xf32> -> vector<36x4xf32>
    %299 = arith.truncf %292 : vector<12x4xf32> to vector<12x4xbf16>
    %cst_181 = arith.constant dense<0.000000e+00> : vector<36x4xf32>
    %300 = tpu.matmul %0, %299, %cst_181 {dimension_numbers = #tpu.dot_dimension_numbers<[1], [0], [0], [1], [0, 0, 1, 1], [], []>} : vector<36x12xbf16>, vector<12x4xbf16>, vector<36x4xf32> -> vector<36x4xf32>
    %301 = arith.truncf %295 : vector<12x4xf32> to vector<12x4xbf16>
    %cst_182 = arith.constant dense<0.000000e+00> : vector<36x4xf32>
    %302 = tpu.matmul %1, %301, %cst_182 {dimension_numbers = #tpu.dot_dimension_numbers<[1], [0], [0], [1], [0, 0, 1, 1], [], []>} : vector<36x12xbf16>, vector<12x4xbf16>, vector<36x4xf32> -> vector<36x4xf32>
    %303 = arith.truncf %289 : vector<12x32xf32> to vector<12x32xbf16>
    %cst_183 = arith.constant dense<0.000000e+00> : vector<36x32xf32>
    %304 = tpu.matmul %0, %303, %cst_183 {dimension_numbers = #tpu.dot_dimension_numbers<[1], [0], [0], [1], [0, 0, 1, 1], [], []>} : vector<36x12xbf16>, vector<12x32xbf16>, vector<36x32xf32> -> vector<36x32xf32>
    %305 = arith.addf %300, %302 : vector<36x4xf32>
    %306 = arith.addf %305, %298 : vector<36x4xf32>
    %cst_184 = arith.constant 0.000000e+00 : f32
    %307 = vector.broadcast %cst_184 : f32 to vector<36x4xf32>
    %308 = arith.cmpf oge, %306, %307 : vector<36x4xf32>
    %cst_185 = arith.constant 2.000000e-01 : f32
    %309 = vector.broadcast %cst_185 : f32 to vector<36x4xf32>
    %310 = arith.mulf %309, %306 : vector<36x4xf32>
    %311 = arith.select %308, %306, %310 : vector<36x4xi1>, vector<36x4xf32>
    %cst_186 = arith.constant dense<0xFF800000> : vector<4xf32>
    %312 = vector.multi_reduction <maximumf>, %311, %cst_186 [0] : vector<36x4xf32> to vector<4xf32>
    %313 = vector.shape_cast %312 : vector<4xf32> to vector<1x4xf32>
    %314 = vector.broadcast %313 : vector<1x4xf32> to vector<36x4xf32>
    %315 = arith.subf %311, %314 : vector<36x4xf32>
    %316 = math.exp %315 : vector<36x4xf32>
    %cst_187 = arith.constant dense<0.000000e+00> : vector<36x32xf32>
    %317 = tpu.matmul %316, %3, %cst_187 {dimension_numbers = #tpu.dot_dimension_numbers<[1], [0], [0], [1], [0, 0, 1, 1], [], []>} : vector<36x4xf32>, vector<4x32xf32>, vector<36x32xf32> -> vector<36x32xf32>
    %318 = arith.mulf %304, %317 : vector<36x32xf32>
    %319 = arith.truncf %318 : vector<36x32xf32> to vector<36x32xbf16>
    %cst_188 = arith.constant dense<0.000000e+00> : vector<12x32xf32>
    %320 = tpu.matmul %1, %319, %cst_188 {dimension_numbers = #tpu.dot_dimension_numbers<[0], [0], [1], [1], [0, 1, 1, 1], [], []>} : vector<36x12xbf16>, vector<36x32xbf16>, vector<12x32xf32> -> vector<12x32xf32>
    %321 = arith.truncf %316 : vector<36x4xf32> to vector<36x4xbf16>
    %cst_189 = arith.constant dense<0.000000e+00> : vector<12x4xf32>
    %322 = tpu.matmul %1, %321, %cst_189 {dimension_numbers = #tpu.dot_dimension_numbers<[0], [0], [1], [1], [0, 1, 1, 1], [], []>} : vector<36x12xbf16>, vector<36x4xbf16>, vector<12x4xf32> -> vector<12x4xf32>
    %cst_190 = arith.constant 1.000000e-16 : f32
    %323 = vector.broadcast %cst_190 : f32 to vector<12x4xf32>
    %324 = arith.addf %322, %323 : vector<12x4xf32>
    %cst_191 = arith.constant 1.000000e+00 : f32
    %325 = vector.broadcast %cst_191 : f32 to vector<12x4xf32>
    %326 = arith.divf %325, %324 : vector<12x4xf32>
    %cst_192 = arith.constant dense<0.000000e+00> : vector<12x32xf32>
    %327 = tpu.matmul %326, %3, %cst_192 {dimension_numbers = #tpu.dot_dimension_numbers<[1], [0], [0], [1], [0, 0, 1, 1], [], []>} : vector<12x4xf32>, vector<4x32xf32>, vector<12x32xf32> -> vector<12x32xf32>
    %328 = arith.mulf %320, %327 : vector<12x32xf32>
    %c3_193 = arith.constant 3 : index
    %c0_194 = arith.constant 0 : index
    %c0_195 = arith.constant 0 : index
    %329 = vector.load %arg9[%c3_193, %c0_194, %c0_195] : memref<4x1x32xf32, #tpu.memory_space<vmem>>, vector<1x1x32xf32>
    %330 = vector.shape_cast %329 : vector<1x1x32xf32> to vector<1x32xf32>
    %331 = vector.broadcast %330 : vector<1x32xf32> to vector<12x32xf32>
    %332 = arith.addf %328, %331 : vector<12x32xf32>
    %c4 = arith.constant 4 : index
    %c0_196 = arith.constant 0 : index
    %c0_197 = arith.constant 0 : index
    %333 = vector.load %arg10[%c4, %c0_196, %c0_197] : memref<6x1x32xf32, #tpu.memory_space<vmem>>, vector<1x1x32xf32>
    %334 = vector.shape_cast %333 : vector<1x1x32xf32> to vector<1x32xf32>
    %c4_198 = arith.constant 4 : index
    %c0_199 = arith.constant 0 : index
    %c0_200 = arith.constant 0 : index
    %335 = vector.load %arg11[%c4_198, %c0_199, %c0_200] : memref<6x1x32xf32, #tpu.memory_space<vmem>>, vector<1x1x32xf32>
    %336 = vector.shape_cast %335 : vector<1x1x32xf32> to vector<1x32xf32>
    %cst_201 = arith.constant dense<0.000000e+00> : vector<12xf32>
    %337 = vector.multi_reduction <add>, %332, %cst_201 [1] : vector<12x32xf32> to vector<12xf32>
    %338 = vector.shape_cast %337 : vector<12xf32> to vector<12x1xf32>
    %cst_202 = arith.constant 3.200000e+01 : f32
    %339 = vector.broadcast %cst_202 : f32 to vector<12x1xf32>
    %340 = arith.divf %338, %339 : vector<12x1xf32>
    %341 = vector.broadcast %340 : vector<12x1xf32> to vector<12x32xf32>
    %342 = arith.subf %332, %341 : vector<12x32xf32>
    %343 = arith.mulf %342, %342 : vector<12x32xf32>
    %cst_203 = arith.constant dense<0.000000e+00> : vector<12xf32>
    %344 = vector.multi_reduction <add>, %343, %cst_203 [1] : vector<12x32xf32> to vector<12xf32>
    %345 = vector.shape_cast %344 : vector<12xf32> to vector<12x1xf32>
    %cst_204 = arith.constant 3.200000e+01 : f32
    %346 = vector.broadcast %cst_204 : f32 to vector<12x1xf32>
    %347 = arith.divf %345, %346 : vector<12x1xf32>
    %348 = vector.broadcast %340 : vector<12x1xf32> to vector<12x32xf32>
    %349 = arith.subf %332, %348 : vector<12x32xf32>
    %cst_205 = arith.constant 9.99999997E-7 : f32
    %350 = vector.broadcast %cst_205 : f32 to vector<12x1xf32>
    %351 = arith.addf %347, %350 : vector<12x1xf32>
    %352 = math.rsqrt %351 : vector<12x1xf32>
    %353 = vector.broadcast %352 : vector<12x1xf32> to vector<12x32xf32>
    %354 = arith.mulf %349, %353 : vector<12x32xf32>
    %355 = vector.broadcast %334 : vector<1x32xf32> to vector<12x32xf32>
    %356 = arith.mulf %354, %355 : vector<12x32xf32>
    %357 = vector.broadcast %336 : vector<1x32xf32> to vector<12x32xf32>
    %358 = arith.addf %356, %357 : vector<12x32xf32>
    %cst_206 = arith.constant 0.000000e+00 : f32
    %359 = vector.broadcast %cst_206 : f32 to vector<12x32xf32>
    %360 = arith.cmpf oge, %358, %359 : vector<12x32xf32>
    %cst_207 = arith.constant 0.00999999977 : f32
    %361 = vector.broadcast %cst_207 : f32 to vector<12x32xf32>
    %362 = arith.mulf %361, %358 : vector<12x32xf32>
    %363 = arith.select %360, %358, %362 : vector<12x32xi1>, vector<12x32xf32>
    %364 = arith.addf %286, %363 : vector<12x32xf32>
    %c1_208 = arith.constant 1 : index
    %c0_209 = arith.constant 0 : index
    %c0_210 = arith.constant 0 : index
    %365 = vector.load %arg12[%c1_208, %c0_209, %c0_210] : memref<2x32x64xf32, #tpu.memory_space<vmem>>, vector<1x32x64xf32>
    %366 = vector.shape_cast %365 : vector<1x32x64xf32> to vector<32x64xf32>
    %cst_211 = arith.constant dense<0.000000e+00> : vector<12x64xf32>
    %367 = tpu.matmul %364, %366, %cst_211 {dimension_numbers = #tpu.dot_dimension_numbers<[1], [0], [0], [1], [0, 0, 1, 1], [], []>} : vector<12x32xf32>, vector<32x64xf32>, vector<12x64xf32> -> vector<12x64xf32>
    %c1_212 = arith.constant 1 : index
    %c0_213 = arith.constant 0 : index
    %c0_214 = arith.constant 0 : index
    %368 = vector.load %arg13[%c1_212, %c0_213, %c0_214] : memref<2x1x64xf32, #tpu.memory_space<vmem>>, vector<1x1x64xf32>
    %369 = vector.shape_cast %368 : vector<1x1x64xf32> to vector<1x64xf32>
    %370 = vector.broadcast %369 : vector<1x64xf32> to vector<12x64xf32>
    %371 = arith.addf %367, %370 : vector<12x64xf32>
    %cst_215 = arith.constant 0.000000e+00 : f32
    %372 = vector.broadcast %cst_215 : f32 to vector<12x64xf32>
    %373 = arith.maximumf %371, %372 : vector<12x64xf32>
    %c1_216 = arith.constant 1 : index
    %c0_217 = arith.constant 0 : index
    %c0_218 = arith.constant 0 : index
    %374 = vector.load %arg14[%c1_216, %c0_217, %c0_218] : memref<2x64x32xf32, #tpu.memory_space<vmem>>, vector<1x64x32xf32>
    %375 = vector.shape_cast %374 : vector<1x64x32xf32> to vector<64x32xf32>
    %cst_219 = arith.constant dense<0.000000e+00> : vector<12x32xf32>
    %376 = tpu.matmul %373, %375, %cst_219 {dimension_numbers = #tpu.dot_dimension_numbers<[1], [0], [0], [1], [0, 0, 1, 1], [], []>} : vector<12x64xf32>, vector<64x32xf32>, vector<12x32xf32> -> vector<12x32xf32>
    %c1_220 = arith.constant 1 : index
    %c0_221 = arith.constant 0 : index
    %c0_222 = arith.constant 0 : index
    %377 = vector.load %arg15[%c1_220, %c0_221, %c0_222] : memref<2x1x32xf32, #tpu.memory_space<vmem>>, vector<1x1x32xf32>
    %378 = vector.shape_cast %377 : vector<1x1x32xf32> to vector<1x32xf32>
    %379 = vector.broadcast %378 : vector<1x32xf32> to vector<12x32xf32>
    %380 = arith.addf %376, %379 : vector<12x32xf32>
    %c5 = arith.constant 5 : index
    %c0_223 = arith.constant 0 : index
    %c0_224 = arith.constant 0 : index
    %381 = vector.load %arg10[%c5, %c0_223, %c0_224] : memref<6x1x32xf32, #tpu.memory_space<vmem>>, vector<1x1x32xf32>
    %382 = vector.shape_cast %381 : vector<1x1x32xf32> to vector<1x32xf32>
    %c5_225 = arith.constant 5 : index
    %c0_226 = arith.constant 0 : index
    %c0_227 = arith.constant 0 : index
    %383 = vector.load %arg11[%c5_225, %c0_226, %c0_227] : memref<6x1x32xf32, #tpu.memory_space<vmem>>, vector<1x1x32xf32>
    %384 = vector.shape_cast %383 : vector<1x1x32xf32> to vector<1x32xf32>
    %cst_228 = arith.constant dense<0.000000e+00> : vector<12xf32>
    %385 = vector.multi_reduction <add>, %380, %cst_228 [1] : vector<12x32xf32> to vector<12xf32>
    %386 = vector.shape_cast %385 : vector<12xf32> to vector<12x1xf32>
    %cst_229 = arith.constant 3.200000e+01 : f32
    %387 = vector.broadcast %cst_229 : f32 to vector<12x1xf32>
    %388 = arith.divf %386, %387 : vector<12x1xf32>
    %389 = vector.broadcast %388 : vector<12x1xf32> to vector<12x32xf32>
    %390 = arith.subf %380, %389 : vector<12x32xf32>
    %391 = arith.mulf %390, %390 : vector<12x32xf32>
    %cst_230 = arith.constant dense<0.000000e+00> : vector<12xf32>
    %392 = vector.multi_reduction <add>, %391, %cst_230 [1] : vector<12x32xf32> to vector<12xf32>
    %393 = vector.shape_cast %392 : vector<12xf32> to vector<12x1xf32>
    %cst_231 = arith.constant 3.200000e+01 : f32
    %394 = vector.broadcast %cst_231 : f32 to vector<12x1xf32>
    %395 = arith.divf %393, %394 : vector<12x1xf32>
    %396 = vector.broadcast %388 : vector<12x1xf32> to vector<12x32xf32>
    %397 = arith.subf %380, %396 : vector<12x32xf32>
    %cst_232 = arith.constant 9.99999997E-7 : f32
    %398 = vector.broadcast %cst_232 : f32 to vector<12x1xf32>
    %399 = arith.addf %395, %398 : vector<12x1xf32>
    %400 = math.rsqrt %399 : vector<12x1xf32>
    %401 = vector.broadcast %400 : vector<12x1xf32> to vector<12x32xf32>
    %402 = arith.mulf %397, %401 : vector<12x32xf32>
    %403 = vector.broadcast %382 : vector<1x32xf32> to vector<12x32xf32>
    %404 = arith.mulf %402, %403 : vector<12x32xf32>
    %405 = vector.broadcast %384 : vector<1x32xf32> to vector<12x32xf32>
    %406 = arith.addf %404, %405 : vector<12x32xf32>
    %cst_233 = arith.constant 0.000000e+00 : f32
    %407 = vector.broadcast %cst_233 : f32 to vector<12x32xf32>
    %408 = arith.cmpf oge, %406, %407 : vector<12x32xf32>
    %cst_234 = arith.constant 0.00999999977 : f32
    %409 = vector.broadcast %cst_234 : f32 to vector<12x32xf32>
    %410 = arith.mulf %409, %406 : vector<12x32xf32>
    %411 = arith.select %408, %406, %410 : vector<12x32xi1>, vector<12x32xf32>
    %412 = arith.addf %364, %411 : vector<12x32xf32>
    %c0_235 = arith.constant 0 : index
    %c0_236 = arith.constant 0 : index
    %413 = vector.load %arg16[%c0_235, %c0_236] : memref<1x32xf32, #tpu.memory_space<vmem>>, vector<1x32xf32>
    %c0_237 = arith.constant 0 : index
    %c0_238 = arith.constant 0 : index
    %414 = vector.load %arg17[%c0_237, %c0_238] : memref<1x32xf32, #tpu.memory_space<vmem>>, vector<1x32xf32>
    %cst_239 = arith.constant dense<0.000000e+00> : vector<12xf32>
    %415 = vector.multi_reduction <add>, %412, %cst_239 [1] : vector<12x32xf32> to vector<12xf32>
    %416 = vector.shape_cast %415 : vector<12xf32> to vector<12x1xf32>
    %cst_240 = arith.constant 3.200000e+01 : f32
    %417 = vector.broadcast %cst_240 : f32 to vector<12x1xf32>
    %418 = arith.divf %416, %417 : vector<12x1xf32>
    %419 = vector.broadcast %418 : vector<12x1xf32> to vector<12x32xf32>
    %420 = arith.subf %412, %419 : vector<12x32xf32>
    %421 = arith.mulf %420, %420 : vector<12x32xf32>
    %cst_241 = arith.constant dense<0.000000e+00> : vector<12xf32>
    %422 = vector.multi_reduction <add>, %421, %cst_241 [1] : vector<12x32xf32> to vector<12xf32>
    %423 = vector.shape_cast %422 : vector<12xf32> to vector<12x1xf32>
    %cst_242 = arith.constant 3.200000e+01 : f32
    %424 = vector.broadcast %cst_242 : f32 to vector<12x1xf32>
    %425 = arith.divf %423, %424 : vector<12x1xf32>
    %426 = vector.broadcast %418 : vector<12x1xf32> to vector<12x32xf32>
    %427 = arith.subf %412, %426 : vector<12x32xf32>
    %cst_243 = arith.constant 9.99999997E-7 : f32
    %428 = vector.broadcast %cst_243 : f32 to vector<12x1xf32>
    %429 = arith.addf %425, %428 : vector<12x1xf32>
    %430 = math.rsqrt %429 : vector<12x1xf32>
    %431 = vector.broadcast %430 : vector<12x1xf32> to vector<12x32xf32>
    %432 = arith.mulf %427, %431 : vector<12x32xf32>
    %433 = vector.broadcast %413 : vector<1x32xf32> to vector<12x32xf32>
    %434 = arith.mulf %432, %433 : vector<12x32xf32>
    %435 = vector.broadcast %414 : vector<1x32xf32> to vector<12x32xf32>
    %436 = arith.addf %434, %435 : vector<12x32xf32>
    %c0_244 = arith.constant 0 : index
    %c0_245 = arith.constant 0 : index
    %437 = vector.load %arg18[%c0_244, %c0_245] : memref<12x2xbf16, #tpu.memory_space<vmem>>, vector<12x2xbf16>
    %438 = arith.truncf %436 : vector<12x32xf32> to vector<12x32xbf16>
    %cst_246 = arith.constant dense<0.000000e+00> : vector<2x32xf32>
    %439 = tpu.matmul %437, %438, %cst_246 {dimension_numbers = #tpu.dot_dimension_numbers<[0], [0], [1], [1], [0, 1, 1, 1], [], []>} : vector<12x2xbf16>, vector<12x32xbf16>, vector<2x32xf32> -> vector<2x32xf32>
    %c0_247 = arith.constant 0 : index
    %c0_248 = arith.constant 0 : index
    %440 = vector.load %arg19[%c0_247, %c0_248] : memref<2x32xf32, #tpu.memory_space<vmem>>, vector<2x32xf32>
    tpu.vector_store %arg19[%c0_247, %c0_248], %439 {strides = array<i32>} : memref<2x32xf32, #tpu.memory_space<vmem>>, vector<2x32xf32>,
    return
  }
}

</mosaic_0001>

<llo_original>
// kernel: encoder_forward.1
$region0: #{encoder_forward.1}
  #allocation0 [shape = 'u32[]', space=smem, size = 0x4, offset = 0x4, fixed_abs, tag = 'smem constant byte address 0x4 - core index']
  #allocation1 [shape = 'u32[72,128]{1,0:T(1,128)}', space=vmem, size = 0x9000, scoped, tag = 'internal scratch']
  %s0 = inlined_call_operand.hbm [shape: f32[12,32], index: 0, kind: input, shape index: {}]
  %s1 = inlined_call_operand.vmem [shape: bf16[36,12], index: 1, kind: input, shape index: {}]
  %s2 = inlined_call_operand.vmem [shape: bf16[36,12], index: 2, kind: input, shape index: {}]
  %s3 = inlined_call_operand.vmem [shape: f32[36,8], index: 3, kind: input, shape index: {}]
  %s4 = inlined_call_operand.vmem [shape: f32[4,32], index: 4, kind: input, shape index: {}]
  %s5 = inlined_call_operand.vmem [shape: f32[4,32,32], index: 5, kind: input, shape index: {}]
  %s6 = inlined_call_operand.vmem [shape: f32[4,32,4], index: 6, kind: input, shape index: {}]
  %s7 = inlined_call_operand.hbm [shape: f32[4,32,4], index: 7, kind: input, shape index: {}]
  %s8 = inlined_call_operand.vmem [shape: f32[4,8,4], index: 8, kind: input, shape index: {}]
  %s9 = inlined_call_operand.vmem [shape: f32[4,1,32], index: 9, kind: input, shape index: {}]
  %s10 = inlined_call_operand.vmem [shape: f32[6,1,32], index: 10, kind: input, shape index: {}]
  %s11 = inlined_call_operand.vmem [shape: f32[6,1,32], index: 11, kind: input, shape index: {}]
  %s12 = inlined_call_operand.hbm [shape: f32[2,32,64], index: 12, kind: input, shape index: {}]
  %s13 = inlined_call_operand.vmem [shape: f32[2,1,64], index: 13, kind: input, shape index: {}]
  %s14 = inlined_call_operand.hbm [shape: f32[2,64,32], index: 14, kind: input, shape index: {}]
  %s15 = inlined_call_operand.vmem [shape: f32[2,1,32], index: 15, kind: input, shape index: {}]
  %s16 = inlined_call_operand.vmem [shape: f32[1,32], index: 16, kind: input, shape index: {}]
  %s17 = inlined_call_operand.vmem [shape: f32[1,32], index: 17, kind: input, shape index: {}]
  %s18 = inlined_call_operand.vmem [shape: bf16[12,2], index: 18, kind: input, shape index: {}]
  %s19 = inlined_call_operand.hbm [shape: f32[2,32], index: 19, kind: output, shape index: {}]
  %s20 = sld [smem:[#allocation0]]
  $region102: #{encoder_forward.1} parent=0
    _
  %s22 = ssub.s32 1, %s20
  %s23 = scalar_select 0, %s22, %s20
  $region1: #{encoder_forward.1} parent=0
    #allocation2 [shape = 'u8[8192]{0}', space=vmem, size = 0x2000, scoped, tag = 'input window, operand 0, single buffered']
    #allocation3 [shape = 's32[1]{0}', space=sflag, size = 0x4, scoped, tag = 'scoped memory for encoder_forward.1']
    #allocation4 [shape = 's32[1]{0}', space=sflag, size = 0x4, scoped, tag = 'scoped memory for encoder_forward.1']
    #allocation5 [shape = 'u8[65536]{0}', space=vmem, size = 0x10000, scoped, tag = 'input window, operand 7, single buffered']
    #allocation6 [shape = 's32[1]{0}', space=sflag, size = 0x4, scoped, tag = 'scoped memory for encoder_forward.1']
    #allocation7 [shape = 'u8[32768]{0}', space=vmem, size = 0x8000, scoped, tag = 'input window, operand 12, single buffered']
    #allocation8 [shape = 'u8[65536]{0}', space=vmem, size = 0x10000, scoped, tag = 'input window, operand 14, single buffered']
    #allocation9 [shape = 's32[1]{0}', space=sflag, size = 0x4, scoped, tag = 'scoped memory for encoder_forward.1']
    #allocation10 [shape = 'u8[1024]{0}', space=vmem, size = 0x400, scoped, tag = 'output window, operand 0, single buffered']
    %24 = vsyncpa [#allocation3], 0
    %25 = vsyncpa [#allocation6], 0
    %26 = vsyncpa [#allocation9], 0
    %27 = vsyncpa [#allocation4], 0
    // Predicated region
    $region2: #{encoder_forward.1} parent=1 // pred_check
      _
    $region3: #{encoder_forward.1} parent=1 // pred_check_branch
      %29 = sbr.rel (0) target = $region5
    $region4: #{encoder_forward.1} parent=1 // pred_region
      %31 = vsyncadd [#allocation3], 0
      %s32 = sshll.u32 %s0, 4
      %s33 = int_to_ptr.hbm [resolvable:$true] %s32
      %s34 = sshll.u32 [#allocation2], 4
      %s35 = int_to_ptr.vmem [resolvable:$true] %s34
      %40 = dma.hbm_to_vmem [thread:$0]  %s33, 256, %s35, [#allocation3], 128, 128, 8
    $region5: #{encoder_forward.1} parent=1 // pred_fallthru
      _
    // Predicated region
    $region6: #{encoder_forward.1} parent=1 // pred_check
      _
    $region7: #{encoder_forward.1} parent=1 // pred_check_branch
      %42 = sbr.rel (0) target = $region9
    $region8: #{encoder_forward.1} parent=1 // pred_region
      _
    $region9: #{encoder_forward.1} parent=1 // pred_fallthru
      _
    // Predicated region
    $region10: #{encoder_forward.1} parent=1 // pred_check
      _
    $region11: #{encoder_forward.1} parent=1 // pred_check_branch
      %44 = sbr.rel (0) target = $region13
    $region12: #{encoder_forward.1} parent=1 // pred_region
      _
    $region13: #{encoder_forward.1} parent=1 // pred_fallthru
      _
    // Predicated region
    $region14: #{encoder_forward.1} parent=1 // pred_check
      _
    $region15: #{encoder_forward.1} parent=1 // pred_check_branch
      %46 = sbr.rel (0) target = $region17
    $region16: #{encoder_forward.1} parent=1 // pred_region
      _
    $region17: #{encoder_forward.1} parent=1 // pred_fallthru
      _
    // Predicated region
    $region18: #{encoder_forward.1} parent=1 // pred_check
      _
    $region19: #{encoder_forward.1} parent=1 // pred_check_branch
      %48 = sbr.rel (0) target = $region21
    $region20: #{encoder_forward.1} parent=1 // pred_region
      _
    $region21: #{encoder_forward.1} parent=1 // pred_fallthru
      _
    // Predicated region
    $region22: #{encoder_forward.1} parent=1 // pred_check
      _
    $region23: #{encoder_forward.1} parent=1 // pred_check_branch
      %50 = sbr.rel (0) target = $region25
    $region24: #{encoder_forward.1} parent=1 // pred_region
      _
    $region25: #{encoder_forward.1} parent=1 // pred_fallthru
      _
    // Predicated region
    $region26: #{encoder_forward.1} parent=1 // pred_check
      _
    $region27: #{encoder_forward.1} parent=1 // pred_check_branch
      %52 = sbr.rel (0) target = $region29
    $region28: #{encoder_forward.1} parent=1 // pred_region
      _
    $region29: #{encoder_forward.1} parent=1 // pred_fallthru
      _
    // Predicated region
    $region30: #{encoder_forward.1} parent=1 // pred_check
      _
    $region31: #{encoder_forward.1} parent=1 // pred_check_branch
      %54 = sbr.rel (0) target = $region33
    $region32: #{encoder_forward.1} parent=1 // pred_region
      %56 = vsyncadd [#allocation6], 0
      %s57 = sshll.u32 %s7, 4
      %s58 = int_to_ptr.hbm [resolvable:$true] %s57
      %s59 = sshll.u32 [#allocation5], 4
      %s60 = int_to_ptr.vmem [resolvable:$true] %s59
      %65 = dma.hbm_to_vmem [thread:$0]  %s58, 2048, %s60, [#allocation6], 128, 128, 8
    $region33: #{encoder_forward.1} parent=1 // pred_fallthru
      _
    // Predicated region
    $region34: #{encoder_forward.1} parent=1 // pred_check
      _
    $region35: #{encoder_forward.1} parent=1 // pred_check_branch
      %67 = sbr.rel (0) target = $region37
    $region36: #{encoder_forward.1} parent=1 // pred_region
      _
    $region37: #{encoder_forward.1} parent=1 // pred_fallthru
      _
    // Predicated region
    $region38: #{encoder_forward.1} parent=1 // pred_check
      _
    $region39: #{encoder_forward.1} parent=1 // pred_check_branch
      %69 = sbr.rel (0) target = $region41
    $region40: #{encoder_forward.1} parent=1 // pred_region
      _
    $region41: #{encoder_forward.1} parent=1 // pred_fallthru
      _
    // Predicated region
    $region42: #{encoder_forward.1} parent=1 // pred_check
      _
    $region43: #{encoder_forward.1} parent=1 // pred_check_branch
      %71 = sbr.rel (0) target = $region45
    $region44: #{encoder_forward.1} parent=1 // pred_region
      _
    $region45: #{encoder_forward.1} parent=1 // pred_fallthru
      _
    // Predicated region
    $region46: #{encoder_forward.1} parent=1 // pred_check
      _
    $region47: #{encoder_forward.1} parent=1 // pred_check_branch
      %73 = sbr.rel (0) target = $region49
    $region48: #{encoder_forward.1} parent=1 // pred_region
      _
    $region49: #{encoder_forward.1} parent=1 // pred_fallthru
      _
    // Predicated region
    $region50: #{encoder_forward.1} parent=1 // pred_check
      _
    $region51: #{encoder_forward.1} parent=1 // pred_check_branch
      %75 = sbr.rel (0) target = $region53
    $region52: #{encoder_forward.1} parent=1 // pred_region
      %77 = vsyncadd [#allocation6], 0
      %s78 = sshll.u32 %s12, 4
      %s79 = int_to_ptr.hbm [resolvable:$true] %s78
      %s80 = sshll.u32 [#allocation7], 4
      %s81 = int_to_ptr.vmem [resolvable:$true] %s80
      %86 = dma.hbm_to_vmem [thread:$0]  %s79, 1024, %s81, [#allocation6], 128, 128, 8
    $region53: #{encoder_forward.1} parent=1 // pred_fallthru
      _
    // Predicated region
    $region54: #{encoder_forward.1} parent=1 // pred_check
      _
    $region55: #{encoder_forward.1} parent=1 // pred_check_branch
      %88 = sbr.rel (0) target = $region57
    $region56: #{encoder_forward.1} parent=1 // pred_region
      _
    $region57: #{encoder_forward.1} parent=1 // pred_fallthru
      _
    // Predicated region
    $region58: #{encoder_forward.1} parent=1 // pred_check
      _
    $region59: #{encoder_forward.1} parent=1 // pred_check_branch
      %90 = sbr.rel (0) target = $region61
    $region60: #{encoder_forward.1} parent=1 // pred_region
      %92 = vsyncadd [#allocation9], 0
      %s93 = sshll.u32 %s14, 4
      %s94 = int_to_ptr.hbm [resolvable:$true] %s93
      %s95 = sshll.u32 [#allocation8], 4
      %s96 = int_to_ptr.vmem [resolvable:$true] %s95
      %101 = dma.hbm_to_vmem [thread:$0]  %s94, 2048, %s96, [#allocation9], 128, 128, 8
    $region61: #{encoder_forward.1} parent=1 // pred_fallthru
      _
    // Predicated region
    $region62: #{encoder_forward.1} parent=1 // pred_check
      _
    $region63: #{encoder_forward.1} parent=1 // pred_check_branch
      %103 = sbr.rel (0) target = $region65
    $region64: #{encoder_forward.1} parent=1 // pred_region
      _
    $region65: #{encoder_forward.1} parent=1 // pred_fallthru
      _
    // Predicated region
    $region66: #{encoder_forward.1} parent=1 // pred_check
      _
    $region67: #{encoder_forward.1} parent=1 // pred_check_branch
      %105 = sbr.rel (0) target = $region69
    $region68: #{encoder_forward.1} parent=1 // pred_region
      _
    $region69: #{encoder_forward.1} parent=1 // pred_fallthru
      _
    // Predicated region
    $region70: #{encoder_forward.1} parent=1 // pred_check
      _
    $region71: #{encoder_forward.1} parent=1 // pred_check_branch
      %107 = sbr.rel (0) target = $region73
    $region72: #{encoder_forward.1} parent=1 // pred_region
      _
    $region73: #{encoder_forward.1} parent=1 // pred_fallthru
      _
    // Predicated region
    $region74: #{encoder_forward.1} parent=1 // pred_check
      _
    $region75: #{encoder_forward.1} parent=1 // pred_check_branch
      %109 = sbr.rel (0) target = $region77
    $region76: #{encoder_forward.1} parent=1 // pred_region
      _
    $region77: #{encoder_forward.1} parent=1 // pred_fallthru
      _
    // Predicated region
    $region78: #{encoder_forward.1} parent=1 // pred_check
      _
    $region79: #{encoder_forward.1} parent=1 // pred_check_branch
      %111 = sbr.rel (0) target = $region81
    $region80: #{encoder_forward.1} parent=1 // pred_region
      %113 = dma.done [#allocation3], 256
    $region81: #{encoder_forward.1} parent=1 // pred_fallthru
      _
    // Predicated region
    $region82: #{encoder_forward.1} parent=1 // pred_check
      _
    $region83: #{encoder_forward.1} parent=1 // pred_check_branch
      %115 = sbr.rel (0) target = $region85
    $region84: #{encoder_forward.1} parent=1 // pred_region
      %117 = dma.done [#allocation6], 2048
    $region85: #{encoder_forward.1} parent=1 // pred_fallthru
      _
    // Predicated region
    $region86: #{encoder_forward.1} parent=1 // pred_check
      _
    $region87: #{encoder_forward.1} parent=1 // pred_check_branch
      %119 = sbr.rel (0) target = $region89
    $region88: #{encoder_forward.1} parent=1 // pred_region
      %121 = dma.done [#allocation6], 1024
    $region89: #{encoder_forward.1} parent=1 // pred_fallthru
      _
    // Predicated region
    $region90: #{encoder_forward.1} parent=1 // pred_check
      _
    $region91: #{encoder_forward.1} parent=1 // pred_check_branch
      %123 = sbr.rel (0) target = $region93
    $region92: #{encoder_forward.1} parent=1 // pred_region
      %125 = dma.done [#allocation9], 2048
    $region93: #{encoder_forward.1} parent=1 // pred_fallthru
      _
    %v127 = vld [vmem:[%s1] sm:$0xf]
    %v128 = vld [vmem:[%s1 + $0x4] sm:$0xf]
    %v129 = vld [vmem:[%s1 + $0x8] sm:$0xf]
    %v130 = vld [vmem:[%s1 + $0xc] sm:$0xf]
    %v131 = vld [vmem:[%s1 + $0x10] sm:$0x3]
    %v132 = vld [vmem:[%s2] sm:$0xf]
    %v133 = vld [vmem:[%s2 + $0x4] sm:$0xf]
    %v134 = vld [vmem:[%s2 + $0x8] sm:$0xf]
    %v135 = vld [vmem:[%s2 + $0xc] sm:$0xf]
    %v136 = vld [vmem:[%s2 + $0x10] sm:$0x3]
    %v137 = vld [vmem:[%s3] sm:$0xff]
    %v138 = vld [vmem:[%s3 + $0x8] sm:$0xff]
    %v139 = vld [vmem:[%s3 + $0x10] sm:$0xff]
    %v140 = vld [vmem:[%s3 + $0x18] sm:$0xff]
    %v141 = vld [vmem:[%s3 + $0x20] sm:$0xf]
    %v142 = vld [vmem:[%s4] sm:$0xf]
    %v143 = vld [vmem:[#allocation2] sm:$0xff]
    %v144 = vld [vmem:[#allocation2 + $0x8] sm:$0xf]
    %v145 = vld [vmem:[%s5] sm:$0xff]
    %v146 = vld [vmem:[%s5 + $0x8] sm:$0xff]
    %v147 = vld [vmem:[%s5 + $0x10] sm:$0xff]
    %v148 = vld [vmem:[%s5 + $0x18] sm:$0xff]
    %vm149 = vcmask 261120
    %v151 = vsel %vm149, %v143, 0
    %v154 = vsel %vm149, %v144, 0
    %156 = vmatpush.msra.mxu0 0.0
    %157 = vmatpush.msra.mxu0 0.0
    %158 = vmatpush.msra.mxu0 0.0
    %159 = vmatpush.msra.mxu0 0.0
    %160 = vmatpush.msra.mxu0 0.0
    %161 = vmatpush.msra.mxu0 0.0
    %162 = vmatpush.msra.mxu0 0.0
    %163 = vmatpush.msra.mxu0 0.0
    %164 = vmatpush.msra.mxu0 0.0
    %165 = vmatpush.msra.mxu0 0.0
    %166 = vmatpush.msra.mxu0 0.0
    %167 = vmatpush.msra.mxu0 0.0
    %168 = vmatpush.msra.mxu0 %v148
    %169 = vmatpush.msra.mxu0 %v147
    %170 = vmatpush.msra.mxu0 %v146
    %171 = vmatpush.msra.mxu0 %v145
    %172 = vmatmul.f32.gmra.mxu0 %v151
    %v173 = vpop.f32.mrf.mxu0
    %v174 = vadd.f32 0.0, %v173
    %175 = vmatmul.f32.gmra.mxu0 %v154
    %v176 = vpop.f32.mrf.mxu0
    %v177 = vadd.f32 0.0, %v176
    %178 = vdwg.mxu0
    %v179 = vld [vmem:[%s6] sm:$0xff]
    %v180 = vld [vmem:[%s6 + $0x8] sm:$0xff]
    %v181 = vld [vmem:[%s6 + $0x10] sm:$0xff]
    %v182 = vld [vmem:[%s6 + $0x18] sm:$0xff]
    %183 = vmatpush.msra.mxu0 0.0
    %184 = vmatpush.msra.mxu0 0.0
    %185 = vmatpush.msra.mxu0 0.0
    %186 = vmatpush.msra.mxu0 0.0
    %187 = vmatpush.msra.mxu0 0.0
    %188 = vmatpush.msra.mxu0 0.0
    %189 = vmatpush.msra.mxu0 0.0
    %190 = vmatpush.msra.mxu0 0.0
    %191 = vmatpush.msra.mxu0 0.0
    %192 = vmatpush.msra.mxu0 0.0
    %193 = vmatpush.msra.mxu0 0.0
    %194 = vmatpush.msra.mxu0 0.0
    %195 = vmatpush.msra.mxu0 %v182
    %196 = vmatpush.msra.mxu0 %v181
    %197 = vmatpush.msra.mxu0 %v180
    %198 = vmatpush.msra.mxu0 %v179
    %199 = vmatmul.f32.gmra.mxu0 %v151
    %v200 = vpop.f32.mrf.mxu0
    %v201 = vadd.f32 0.0, %v200
    %202 = vmatmul.f32.gmra.mxu0 %v154
    %v203 = vpop.f32.mrf.mxu0
    %v204 = vadd.f32 0.0, %v203
    %205 = vdwg.mxu0
    %v206 = vld [vmem:[#allocation5] sm:$0xff]
    %v207 = vld [vmem:[#allocation5 + $0x8] sm:$0xff]
    %v208 = vld [vmem:[#allocation5 + $0x10] sm:$0xff]
    %v209 = vld [vmem:[#allocation5 + $0x18] sm:$0xff]
    %210 = vmatpush.msra.mxu0 0.0
    %211 = vmatpush.msra.mxu0 0.0
    %212 = vmatpush.msra.mxu0 0.0
    %213 = vmatpush.msra.mxu0 0.0
    %214 = vmatpush.msra.mxu0 0.0
    %215 = vmatpush.msra.mxu0 0.0
    %216 = vmatpush.msra.mxu0 0.0
    %217 = vmatpush.msra.mxu0 0.0
    %218 = vmatpush.msra.mxu0 0.0
    %219 = vmatpush.msra.mxu0 0.0
    %220 = vmatpush.msra.mxu0 0.0
    %221 = vmatpush.msra.mxu0 0.0
    %222 = vmatpush.msra.mxu0 %v209
    %223 = vmatpush.msra.mxu0 %v208
    %224 = vmatpush.msra.mxu0 %v207
    %225 = vmatpush.msra.mxu0 %v206
    %226 = vmatmul.f32.gmra.mxu0 %v151
    %v227 = vpop.f32.mrf.mxu0
    %v228 = vadd.f32 0.0, %v227
    %229 = vmatmul.f32.gmra.mxu0 %v154
    %v230 = vpop.f32.mrf.mxu0
    %v231 = vadd.f32 0.0, %v230
    %232 = vdwg.mxu0
    %v233 = vld [vmem:[%s8] sm:$0xff]
    %vm234 = vcmask 64512
    %v236 = vsel %vm234, %v137, 0
    %v239 = vsel %vm234, %v138, 0
    %v242 = vsel %vm234, %v139, 0
    %v245 = vsel %vm234, %v140, 0
    %v248 = vsel %vm234, %v141, 0
    %250 = vmatpush.msra.mxu0 0.0
    %251 = vmatpush.msra.mxu0 0.0
    %252 = vmatpush.msra.mxu0 0.0
    %253 = vmatpush.msra.mxu0 0.0
    %254 = vmatpush.msra.mxu0 0.0
    %255 = vmatpush.msra.mxu0 0.0
    %256 = vmatpush.msra.mxu0 0.0
    %257 = vmatpush.msra.mxu0 0.0
    %258 = vmatpush.msra.mxu0 0.0
    %259 = vmatpush.msra.mxu0 0.0
    %260 = vmatpush.msra.mxu0 0.0
    %261 = vmatpush.msra.mxu0 0.0
    %262 = vmatpush.msra.mxu0 0.0
    %263 = vmatpush.msra.mxu0 0.0
    %264 = vmatpush.msra.mxu0 0.0
    %265 = vmatpush.msra.mxu0 %v233
    %266 = vmatmul.f32.gmra.mxu0 %v236
    %v267 = vpop.f32.mrf.mxu0
    %v268 = vadd.f32 0.0, %v267
    %269 = vmatmul.f32.gmra.mxu0 %v239
    %v270 = vpop.f32.mrf.mxu0
    %v271 = vadd.f32 0.0, %v270
    %272 = vmatmul.f32.gmra.mxu0 %v242
    %v273 = vpop.f32.mrf.mxu0
    %v274 = vadd.f32 0.0, %v273
    %275 = vmatmul.f32.gmra.mxu0 %v245
    %v276 = vpop.f32.mrf.mxu0
    %v277 = vadd.f32 0.0, %v276
    %278 = vmatmul.f32.gmra.mxu0 %v248
    %v279 = vpop.f32.mrf.mxu0
    %v280 = vadd.f32 0.0, %v279
    %281 = vdwg.mxu0
    %v282 = vpack.c.bf16 %v204, %v201
    %v283 = vpack.c.bf16 %v231, %v228
    %v289 = vunpack.c.l.b16 %v132
    %v290 = vunpack.c.l.b16 %v133
    %v291 = vunpack.c.l.b16 %v134
    %v292 = vunpack.c.l.b16 %v135
    %v293 = vunpack.c.l.b16 %v136
    %v294 = vpack.c.b16 %v290, %v289
    %v295 = vpack.c.b16 %v292, %v291
    %v296 = vpack.c.b16 %v293, %v293
    %vm297 = vcmask 97280
    %v299 = vsel %vm297, %v294, 0
    %v302 = vsel %vm297, %v295, 0
    %v305 = vsel %vm297, %v296, 0
    %vm307 = vcmask 1045504
    %v309 = vsel %vm307, %v283, 0
    %311 = vmatpush.bf16.msra.mxu0 0
    %312 = vmatpush.bf16.msra.mxu0 0
    %313 = vmatpush.bf16.msra.mxu0 0
    %314 = vmatpush.bf16.msra.mxu0 0
    %315 = vmatpush.bf16.msra.mxu0 0
    %316 = vmatpush.bf16.msra.mxu0 0
    %317 = vmatpush.bf16.msra.mxu0 0
    %318 = vmatpush.bf16.msra.mxu0 %v309
    %319 = vmatmul.bf16.gmra.mxu0 %v299
    %v320 = vpop.f32.mrf.mxu0
    %v321 = vadd.f32 0.0, %v320
    %v322 = vpop.f32.mrf.mxu0
    %v323 = vadd.f32 0.0, %v322
    %324 = vmatmul.bf16.gmra.mxu0 %v302
    %v325 = vpop.f32.mrf.mxu0
    %v326 = vadd.f32 0.0, %v325
    %v327 = vpop.f32.mrf.mxu0
    %v328 = vadd.f32 0.0, %v327
    %329 = vmatmul.bf16.gmra.mxu0 %v305
    %v330 = vpop.f32.mrf.mxu0
    %v331 = vadd.f32 0.0, %v330
    %v332 = vpop.f32.mrf.mxu0
    %333 = vdwg.mxu0
    %v334 = vpack.c.bf16 %v177, %v174
    %v340 = vunpack.c.l.b16 %v127
    %v341 = vunpack.c.l.b16 %v128
    %v342 = vunpack.c.l.b16 %v129
    %v343 = vunpack.c.l.b16 %v130
    %v344 = vunpack.c.l.b16 %v131
    %v345 = vpack.c.b16 %v341, %v340
    %v346 = vpack.c.b16 %v343, %v342
    %v347 = vpack.c.b16 %v344, %v344
    %v349 = vsel %vm297, %v345, 0
    %v352 = vsel %vm297, %v346, 0
    %v355 = vsel %vm297, %v347, 0
    %v358 = vsel %vm307, %v334, 0
    %360 = vmatpush.bf16.msra.mxu0 0
    %361 = vmatpush.bf16.msra.mxu0 0
    %362 = vmatpush.bf16.msra.mxu0 0
    %363 = vmatpush.bf16.msra.mxu0 0
    %364 = vmatpush.bf16.msra.mxu0 0
    %365 = vmatpush.bf16.msra.mxu0 0
    %366 = vmatpush.bf16.msra.mxu0 0
    %367 = vmatpush.bf16.msra.mxu0 %v358
    %368 = vmatmul.bf16.gmra.mxu0 %v349
    %v369 = vpop.f32.mrf.mxu0
    %v370 = vadd.f32 0.0, %v369
    %v371 = vpop.f32.mrf.mxu0
    %v372 = vadd.f32 0.0, %v371
    %373 = vmatmul.bf16.gmra.mxu0 %v352
    %v374 = vpop.f32.mrf.mxu0
    %v375 = vadd.f32 0.0, %v374
    %v376 = vpop.f32.mrf.mxu0
    %v377 = vadd.f32 0.0, %v376
    %378 = vmatmul.bf16.gmra.mxu0 %v355
    %v379 = vpop.f32.mrf.mxu0
    %v380 = vadd.f32 0.0, %v379
    %v381 = vpop.f32.mrf.mxu0
    %382 = vdwg.mxu0
    %v384 = vsel %vm307, %v282, 0
    %386 = vmatpush.bf16.msra.mxu0 0
    %387 = vmatpush.bf16.msra.mxu0 0
    %388 = vmatpush.bf16.msra.mxu0 0
    %389 = vmatpush.bf16.msra.mxu0 0
    %390 = vmatpush.bf16.msra.mxu0 0
    %391 = vmatpush.bf16.msra.mxu0 0
    %392 = vmatpush.bf16.msra.mxu0 0
    %393 = vmatpush.bf16.msra.mxu0 %v384
    %394 = vmatmul.bf16.gmra.mxu0 %v349
    %v395 = vpop.f32.mrf.mxu0
    %v396 = vadd.f32 %v321, %v395
    %v397 = vpop.f32.mrf.mxu0
    %v398 = vadd.f32 %v323, %v397
    %399 = vmatmul.bf16.gmra.mxu0 %v352
    %v400 = vpop.f32.mrf.mxu0
    %v401 = vadd.f32 %v326, %v400
    %v402 = vpop.f32.mrf.mxu0
    %v403 = vadd.f32 %v328, %v402
    %404 = vmatmul.bf16.gmra.mxu0 %v355
    %v405 = vpop.f32.mrf.mxu0
    %v406 = vadd.f32 %v331, %v405
    %v407 = vpop.f32.mrf.mxu0
    %408 = vdwg.mxu0
    %v409 = vadd.f32 %v396, %v268
    %v410 = vadd.f32 %v398, %v271
    %v411 = vadd.f32 %v401, %v274
    %v412 = vadd.f32 %v403, %v277
    %v413 = vadd.f32 %v406, %v280
    %vm414 = vcmp.ge.f32.partialorder %v409, 0.0
    %vm415 = vcmp.ge.f32.partialorder %v410, 0.0
    %vm416 = vcmp.ge.f32.partialorder %v411, 0.0
    %vm417 = vcmp.ge.f32.partialorder %v412, 0.0
    %vm418 = vcmp.ge.f32.partialorder %v413, 0.0
    %v419 = vmul.f32 %v409, 0.2
    %v420 = vmul.f32 %v410, 0.2
    %v421 = vmul.f32 %v411, 0.2
    %v422 = vmul.f32 %v412, 0.2
    %v423 = vmul.f32 %v413, 0.2
    %v424 = vsel %vm414, %v409, %v419
    %v425 = vsel %vm415, %v410, %v420
    %v426 = vsel %vm416, %v411, %v421
    %v427 = vsel %vm417, %v412, %v422
    %v428 = vsel %vm418, %v413, %v423
    %vm429 = vcmask 31744
    %v430 = vsel %vm429, %v424, -inf
    %v431 = vsel %vm429, %v425, -inf
    %v432 = vsel %vm429, %v426, -inf
    %v433 = vsel %vm429, %v427, -inf
    %vm434 = vcmask 27648
    %v435 = vsel %vm434, %v428, -inf
    %v436 = vmax.f32 %v430, %v435
    %v437 = vmax.f32 %v436, %v431
    %v438 = vmax.f32 %v432, %v433
    %v439 = vmax.f32 %v437, %v438
    %v440 = vrot.slane %v439, 4
    %v441 = vmax.f32 %v439, %v440
    %v442 = vrot.slane %v441, 2
    %v443 = vmax.f32 %v441, %v442
    %v444 = vrot.slane %v443, 1
    %v445 = vmax.f32 %v443, %v444
    %v446 = vsub.f32 %v424, %v445
    %v447 = vsub.f32 %v425, %v445
    %v448 = vsub.f32 %v426, %v445
    %v449 = vsub.f32 %v427, %v445
    %v450 = vsub.f32 %v428, %v445
    %v451 = vmul.f32 %v446, 1.442695
    %v452 = vpow.pop %v451
    %v453 = vmul.f32 %v447, 1.442695
    %v454 = vpow.pop %v453
    %v455 = vmul.f32 %v448, 1.442695
    %v456 = vpow.pop %v455
    %v457 = vmul.f32 %v449, 1.442695
    %v458 = vpow.pop %v457
    %v459 = vmul.f32 %v450, 1.442695
    %v460 = vpow.pop %v459
    %v462 = vsel %vm429, %v452, 0
    %v465 = vsel %vm429, %v454, 0
    %v468 = vsel %vm429, %v456, 0
    %v471 = vsel %vm429, %v458, 0
    %v474 = vsel %vm429, %v460, 0
    %vm476 = vcmask 1043456
    %v478 = vsel %vm476, %v142, 0
    %480 = vmatpush.msra.mxu0 0.0
    %481 = vmatpush.msra.mxu0 0.0
    %482 = vmatpush.msra.mxu0 0.0
    %483 = vmatpush.msra.mxu0 0.0
    %484 = vmatpush.msra.mxu0 0.0
    %485 = vmatpush.msra.mxu0 0.0
    %486 = vmatpush.msra.mxu0 0.0
    %487 = vmatpush.msra.mxu0 0.0
    %488 = vmatpush.msra.mxu0 0.0
    %489 = vmatpush.msra.mxu0 0.0
    %490 = vmatpush.msra.mxu0 0.0
    %491 = vmatpush.msra.mxu0 0.0
    %492 = vmatpush.msra.mxu0 0.0
    %493 = vmatpush.msra.mxu0 0.0
    %494 = vmatpush.msra.mxu0 0.0
    %495 = vmatpush.msra.mxu0 %v478
    %496 = vmatmul.f32.gmra.mxu0 %v462
    %v497 = vpop.f32.mrf.mxu0
    %v498 = vadd.f32 0.0, %v497
    %499 = vmatmul.f32.gmra.mxu0 %v465
    %v500 = vpop.f32.mrf.mxu0
    %v501 = vadd.f32 0.0, %v500
    %502 = vmatmul.f32.gmra.mxu0 %v468
    %v503 = vpop.f32.mrf.mxu0
    %v504 = vadd.f32 0.0, %v503
    %505 = vmatmul.f32.gmra.mxu0 %v471
    %v506 = vpop.f32.mrf.mxu0
    %v507 = vadd.f32 0.0, %v506
    %508 = vmatmul.f32.gmra.mxu0 %v474
    %v509 = vpop.f32.mrf.mxu0
    %v510 = vadd.f32 0.0, %v509
    %511 = vdwg.mxu0
    %v512 = vmul.f32 %v370, %v498
    %v513 = vmul.f32 %v372, %v501
    %v514 = vmul.f32 %v375, %v504
    %v515 = vmul.f32 %v377, %v507
    %v516 = vmul.f32 %v380, %v510
    %v517 = vpack.c.bf16 %v513, %v512
    %v518 = vpack.c.bf16 %v515, %v514
    %v519 = vpack.c.bf16 %v516, %v516
    %523 = vxpose.xlu0.c.b16.start [1/8] %v294, 128
    %524 = vxpose.xlu0.c.b16.cont [2/8] %v295, 128
    %525 = vxpose.xlu0.c.b16.cont [3/8] %v296, 128
    %526 = vxpose.xlu0.c.b16.cont [4/8] 0, 128
    %527 = vxpose.xlu0.c.b16.cont [5/8] 0, 128
    %528 = vxpose.xlu0.c.b16.cont [6/8] 0, 128
    %529 = vxpose.xlu0.c.b16.cont [7/8] 0, 128
    %530 = vxpose.xlu0.c.b16.end [8/8] 0, 128
    %v531 = vpop.trf.xlu0
    %v532 = vpop.trf.xlu0
    %v533 = vpop.trf.xlu0
    %v534 = vpop.trf.xlu0
    %v535 = vpop.trf.xlu0
    %v536 = vpop.trf.xlu0
    %v537 = vpop.trf.xlu0
    %v538 = vpop.trf.xlu0
    %vm539 = vcmask 293888
    %v541 = vsel %vm539, %v531, 0
    %vm543 = vcmask 1041408
    %v545 = vsel %vm543, %v519, 0
    %547 = vmatpush.bf16.msra.mxu0 0
    %548 = vmatpush.bf16.msra.mxu0 0
    %549 = vmatpush.bf16.msra.mxu0 0
    %550 = vmatpush.bf16.msra.mxu0 0
    %551 = vmatpush.bf16.msra.mxu0 0
    %552 = vmatpush.bf16.msra.mxu0 %v545
    %553 = vmatpush.bf16.msra.mxu0 %v518
    %554 = vmatpush.bf16.msra.mxu0 %v517
    %555 = vmatmul.bf16.gmra.mxu0 %v541
    %v556 = vpop.f32.mrf.mxu0
    %v557 = vadd.f32 0.0, %v556
    %v558 = vpop.f32.mrf.mxu0
    %v559 = vadd.f32 0.0, %v558
    %560 = vdwg.mxu0
    %v561 = vpack.c.bf16 %v454, %v452
    %v562 = vpack.c.bf16 %v458, %v456
    %v563 = vpack.c.bf16 %v460, %v460
    %v565 = vsel %vm543, %v563, 0
    %567 = vmatpush.bf16.msra.mxu0 0
    %568 = vmatpush.bf16.msra.mxu0 0
    %569 = vmatpush.bf16.msra.mxu0 0
    %570 = vmatpush.bf16.msra.mxu0 0
    %571 = vmatpush.bf16.msra.mxu0 0
    %572 = vmatpush.bf16.msra.mxu0 %v565
    %573 = vmatpush.bf16.msra.mxu0 %v562
    %574 = vmatpush.bf16.msra.mxu0 %v561
    %575 = vmatmul.bf16.gmra.mxu0 %v541
    %v576 = vpop.f32.mrf.mxu0
    %v577 = vadd.f32 1e-16, %v576
    %v578 = vpop.f32.mrf.mxu0
    %v579 = vadd.f32 1e-16, %v578
    %580 = vdwg.mxu0
    %v581 = vrcp.pop %v577
    %v582 = vmul.f32 %v577, %v581
    %v583 = vsub.f32 1.0, %v582
    %v584 = vmul.f32 %v581, %v583
    %v585 = vadd.f32 %v581, %v584
    %vm586 = vweird.f32 %v577
    %vm587 = vweird.f32 %v581
    %vm588 = vmor %vm586, %vm587
    %v589 = vsel %vm588, %v581, %v585
    %v590 = vand.u32 2147483647, %v577
    %vm591 = vcmp.eq.f32.partialorder %v590, 8.507059e+37
    %v592 = vand.u32 %v577, 2147483648
    %v593 = vor.u32 1.1754944e-38, %v592
    %v594 = vsel %vm591, %v593, %v589
    %v595 = vmul.f32 1.0, %v594
    %v596 = vrcp.pop %v579
    %v597 = vmul.f32 %v579, %v596
    %v598 = vsub.f32 1.0, %v597
    %v599 = vmul.f32 %v596, %v598
    %v600 = vadd.f32 %v596, %v599
    %vm601 = vweird.f32 %v579
    %vm602 = vweird.f32 %v596
    %vm603 = vmor %vm601, %vm602
    %v604 = vsel %vm603, %v596, %v600
    %v605 = vand.u32 2147483647, %v579
    %vm606 = vcmp.eq.f32.partialorder %v605, 8.507059e+37
    %v607 = vand.u32 %v579, 2147483648
    %v608 = vor.u32 1.1754944e-38, %v607
    %v609 = vsel %vm606, %v608, %v604
    %v610 = vmul.f32 1.0, %v609
    %v612 = vsel %vm429, %v595, 0
    %v615 = vsel %vm429, %v610, 0
    %617 = vmatpush.msra.mxu0 0.0
    %618 = vmatpush.msra.mxu0 0.0
    %619 = vmatpush.msra.mxu0 0.0
    %620 = vmatpush.msra.mxu0 0.0
    %621 = vmatpush.msra.mxu0 0.0
    %622 = vmatpush.msra.mxu0 0.0
    %623 = vmatpush.msra.mxu0 0.0
    %624 = vmatpush.msra.mxu0 0.0
    %625 = vmatpush.msra.mxu0 0.0
    %626 = vmatpush.msra.mxu0 0.0
    %627 = vmatpush.msra.mxu0 0.0
    %628 = vmatpush.msra.mxu0 0.0
    %629 = vmatpush.msra.mxu0 0.0
    %630 = vmatpush.msra.mxu0 0.0
    %631 = vmatpush.msra.mxu0 0.0
    %632 = vmatpush.msra.mxu0 %v478
    %633 = vmatmul.f32.gmra.mxu0 %v612
    %v634 = vpop.f32.mrf.mxu0
    %v635 = vadd.f32 0.0, %v634
    %636 = vmatmul.f32.gmra.mxu0 %v615
    %v637 = vpop.f32.mrf.mxu0
    %v638 = vadd.f32 0.0, %v637
    %639 = vdwg.mxu0
    %v640 = vmul.f32 %v557, %v635
    %v641 = vmul.f32 %v559, %v638
    %v642 = vld [vmem:[%s9] sm:$0x1]
    %v644 = vperm.slane %v642, 0
    %v646 = vadd.f32 %v640, %v644
    %v647 = vadd.f32 %v641, %v644
    %v648 = vld [vmem:[%s10] sm:$0x1]
    %v649 = vld [vmem:[%s11] sm:$0x1]
    %v650 = vsel %vm149, %v646, 0.0
    %651 = vadd.xlane.f32.xlu0 %v650
    %v652 = vpop.xlane.xlu0 %651
    %vm653 = vcmask 257024
    %v654 = vsel %vm653, %v647, 0.0
    %655 = vadd.xlane.f32.xlu0 %v654
    %v656 = vpop.xlane.xlu0 %655
    %v657 = vrcp.pop 32.0
    %v658 = vmul.f32 32.0, %v657
    %v659 = vsub.f32 1.0, %v658
    %v660 = vmul.f32 %v657, %v659
    %v661 = vadd.f32 %v657, %v660
    %vm662 = vweird.f32 %v657
    %v663 = vsel %vm662, %v657, %v661
    %v664 = vmul.f32 %v652, %v663
    %v665 = vmul.f32 %v656, %v663
    %v666 = vsub.f32 %v646, %v664
    %v667 = vsub.f32 %v647, %v665
    %v668 = vmul.f32 %v666, %v666
    %v669 = vmul.f32 %v667, %v667
    %v670 = vsel %vm149, %v668, 0.0
    %671 = vadd.xlane.f32.xlu0 %v670
    %v672 = vpop.xlane.xlu0 %671
    %v673 = vsel %vm653, %v669, 0.0
    %674 = vadd.xlane.f32.xlu0 %v673
    %v675 = vpop.xlane.xlu0 %674
    %v676 = vmul.f32 %v672, %v663
    %v677 = vmul.f32 %v675, %v663
    %v678 = vadd.f32 %v676, 1e-06
    %v679 = vadd.f32 %v677, 1e-06
    %v680 = vrsqrt.pop %v678
    %v681 = vmul.f32 %v680, %v678
    %v682 = vmul.f32 %v681, %v680
    %v683 = vmul.f32 0.5, %v682
    %v684 = vsub.f32 1.5, %v683
    %v685 = vmul.f32 %v680, %v684
    %vm686 = vweird.f32 %v678
    %vm687 = vweird.f32 %v680
    %vm688 = vmor %vm686, %vm687
    %v689 = vsel %vm688, %v680, %v685
    %v690 = vrsqrt.pop %v679
    %v691 = vmul.f32 %v690, %v679
    %v692 = vmul.f32 %v691, %v690
    %v693 = vmul.f32 0.5, %v692
    %v694 = vsub.f32 1.5, %v693
    %v695 = vmul.f32 %v690, %v694
    %vm696 = vweird.f32 %v679
    %vm697 = vweird.f32 %v690
    %vm698 = vmor %vm696, %vm697
    %v699 = vsel %vm698, %v690, %v695
    %v700 = vmul.f32 %v666, %v689
    %v701 = vmul.f32 %v667, %v699
    %v703 = vperm.slane %v648, 0
    %v705 = vmul.f32 %v700, %v703
    %v706 = vmul.f32 %v701, %v703
    %v708 = vperm.slane %v649, 0
    %v710 = vadd.f32 %v705, %v708
    %v711 = vadd.f32 %v706, %v708
    %vm712 = vcmp.ge.f32.partialorder %v710, 0.0
    %vm713 = vcmp.ge.f32.partialorder %v711, 0.0
    %v714 = vmul.f32 %v710, 0.01
    %v715 = vmul.f32 %v711, 0.01
    %v716 = vsel %vm712, %v710, %v714
    %v717 = vsel %vm713, %v711, %v715
    %v718 = vadd.f32 %v143, %v716
    %v719 = vadd.f32 %v144, %v717
    %s720 = scalar_lea.vmem %s5, 32
    %v721 = vld [vmem:[%s720] sm:$0xff]
    %v722 = vld [vmem:[%s720 + $0x8] sm:$0xff]
    %v723 = vld [vmem:[%s720 + $0x10] sm:$0xff]
    %v724 = vld [vmem:[%s720 + $0x18] sm:$0xff]
    %v726 = vsel %vm149, %v718, 0
    %v729 = vsel %vm149, %v719, 0
    %731 = vmatpush.msra.mxu0 0.0
    %732 = vmatpush.msra.mxu0 0.0
    %733 = vmatpush.msra.mxu0 0.0
    %734 = vmatpush.msra.mxu0 0.0
    %735 = vmatpush.msra.mxu0 0.0
    %736 = vmatpush.msra.mxu0 0.0
    %737 = vmatpush.msra.mxu0 0.0
    %738 = vmatpush.msra.mxu0 0.0
    %739 = vmatpush.msra.mxu0 0.0
    %740 = vmatpush.msra.mxu0 0.0
    %741 = vmatpush.msra.mxu0 0.0
    %742 = vmatpush.msra.mxu0 0.0
    %743 = vmatpush.msra.mxu0 %v724
    %744 = vmatpush.msra.mxu0 %v723
    %745 = vmatpush.msra.mxu0 %v722
    %746 = vmatpush.msra.mxu0 %v721
    %747 = vmatmul.f32.gmra.mxu0 %v726
    %v748 = vpop.f32.mrf.mxu0
    %v749 = vadd.f32 0.0, %v748
    %750 = vmatmul.f32.gmra.mxu0 %v729
    %v751 = vpop.f32.mrf.mxu0
    %v752 = vadd.f32 0.0, %v751
    %753 = vdwg.mxu0
    %s754 = scalar_lea.vmem %s6, 32
    %v755 = vld [vmem:[%s754] sm:$0xff]
    %v756 = vld [vmem:[%s754 + $0x8] sm:$0xff]
    %v757 = vld [vmem:[%s754 + $0x10] sm:$0xff]
    %v758 = vld [vmem:[%s754 + $0x18] sm:$0xff]
    %759 = vmatpush.msra.mxu0 0.0
    %760 = vmatpush.msra.mxu0 0.0
    %761 = vmatpush.msra.mxu0 0.0
    %762 = vmatpush.msra.mxu0 0.0
    %763 = vmatpush.msra.mxu0 0.0
    %764 = vmatpush.msra.mxu0 0.0
    %765 = vmatpush.msra.mxu0 0.0
    %766 = vmatpush.msra.mxu0 0.0
    %767 = vmatpush.msra.mxu0 0.0
    %768 = vmatpush.msra.mxu0 0.0
    %769 = vmatpush.msra.mxu0 0.0
    %770 = vmatpush.msra.mxu0 0.0
    %771 = vmatpush.msra.mxu0 %v758
    %772 = vmatpush.msra.mxu0 %v757
    %773 = vmatpush.msra.mxu0 %v756
    %774 = vmatpush.msra.mxu0 %v755
    %775 = vmatmul.f32.gmra.mxu0 %v726
    %v776 = vpop.f32.mrf.mxu0
    %v777 = vadd.f32 0.0, %v776
    %778 = vmatmul.f32.gmra.mxu0 %v729
    %v779 = vpop.f32.mrf.mxu0
    %v780 = vadd.f32 0.0, %v779
    %781 = vdwg.mxu0
    %s782 = scalar_lea.vmem [#allocation5], 32
    %v783 = vld [vmem:[%s782] sm:$0xff]
    %v784 = vld [vmem:[%s782 + $0x8] sm:$0xff]
    %v785 = vld [vmem:[%s782 + $0x10] sm:$0xff]
    %v786 = vld [vmem:[%s782 + $0x18] sm:$0xff]
    %787 = vmatpush.msra.mxu0 0.0
    %788 = vmatpush.msra.mxu0 0.0
    %789 = vmatpush.msra.mxu0 0.0
    %790 = vmatpush.msra.mxu0 0.0
    %791 = vmatpush.msra.mxu0 0.0
    %792 = vmatpush.msra.mxu0 0.0
    %793 = vmatpush.msra.mxu0 0.0
    %794 = vmatpush.msra.mxu0 0.0
    %795 = vmatpush.msra.mxu0 0.0
    %796 = vmatpush.msra.mxu0 0.0
    %797 = vmatpush.msra.mxu0 0.0
    %798 = vmatpush.msra.mxu0 0.0
    %799 = vmatpush.msra.mxu0 %v786
    %800 = vmatpush.msra.mxu0 %v785
    %801 = vmatpush.msra.mxu0 %v784
    %802 = vmatpush.msra.mxu0 %v783
    %803 = vmatmul.f32.gmra.mxu0 %v726
    %v804 = vpop.f32.mrf.mxu0
    %v805 = vadd.f32 0.0, %v804
    %806 = vmatmul.f32.gmra.mxu0 %v729
    %v807 = vpop.f32.mrf.mxu0
    %v808 = vadd.f32 0.0, %v807
    %809 = vdwg.mxu0
    %s810 = scalar_lea.vmem %s8, 8
    %v811 = vld [vmem:[%s810] sm:$0xff]
    %812 = vmatpush.msra.mxu0 0.0
    %813 = vmatpush.msra.mxu0 0.0
    %814 = vmatpush.msra.mxu0 0.0
    %815 = vmatpush.msra.mxu0 0.0
    %816 = vmatpush.msra.mxu0 0.0
    %817 = vmatpush.msra.mxu0 0.0
    %818 = vmatpush.msra.mxu0 0.0
    %819 = vmatpush.msra.mxu0 0.0
    %820 = vmatpush.msra.mxu0 0.0
    %821 = vmatpush.msra.mxu0 0.0
    %822 = vmatpush.msra.mxu0 0.0
    %823 = vmatpush.msra.mxu0 0.0
    %824 = vmatpush.msra.mxu0 0.0
    %825 = vmatpush.msra.mxu0 0.0
    %826 = vmatpush.msra.mxu0 0.0
    %827 = vmatpush.msra.mxu0 %v811
    %828 = vmatmul.f32.gmra.mxu0 %v236
    %v829 = vpop.f32.mrf.mxu0
    %v830 = vadd.f32 0.0, %v829
    %831 = vmatmul.f32.gmra.mxu0 %v239
    %v832 = vpop.f32.mrf.mxu0
    %v833 = vadd.f32 0.0, %v832
    %834 = vmatmul.f32.gmra.mxu0 %v242
    %v835 = vpop.f32.mrf.mxu0
    %v836 = vadd.f32 0.0, %v835
    %837 = vmatmul.f32.gmra.mxu0 %v245
    %v838 = vpop.f32.mrf.mxu0
    %v839 = vadd.f32 0.0, %v838
    %840 = vmatmul.f32.gmra.mxu0 %v248
    %v841 = vpop.f32.mrf.mxu0
    %v842 = vadd.f32 0.0, %v841
    %843 = vdwg.mxu0
    %v844 = vpack.c.bf16 %v780, %v777
    %v845 = vpack.c.bf16 %v808, %v805
    %v847 = vsel %vm307, %v845, 0
    %849 = vmatpush.bf16.msra.mxu0 0
    %850 = vmatpush.bf16.msra.mxu0 0
    %851 = vmatpush.bf16.msra.mxu0 0
    %852 = vmatpush.bf16.msra.mxu0 0
    %853 = vmatpush.bf16.msra.mxu0 0
    %854 = vmatpush.bf16.msra.mxu0 0
    %855 = vmatpush.bf16.msra.mxu0 0
    %856 = vmatpush.bf16.msra.mxu0 %v847
    %857 = vmatmul.bf16.gmra.mxu0 %v299
    %v858 = vpop.f32.mrf.mxu0
    %v859 = vadd.f32 0.0, %v858
    %v860 = vpop.f32.mrf.mxu0
    %v861 = vadd.f32 0.0, %v860
    %862 = vmatmul.bf16.gmra.mxu0 %v302
    %v863 = vpop.f32.mrf.mxu0
    %v864 = vadd.f32 0.0, %v863
    %v865 = vpop.f32.mrf.mxu0
    %v866 = vadd.f32 0.0, %v865
    %867 = vmatmul.bf16.gmra.mxu0 %v305
    %v868 = vpop.f32.mrf.mxu0
    %v869 = vadd.f32 0.0, %v868
    %v870 = vpop.f32.mrf.mxu0
    %871 = vdwg.mxu0
    %v872 = vpack.c.bf16 %v752, %v749
    %v874 = vsel %vm307, %v872, 0
    %876 = vmatpush.bf16.msra.mxu0 0
    %877 = vmatpush.bf16.msra.mxu0 0
    %878 = vmatpush.bf16.msra.mxu0 0
    %879 = vmatpush.bf16.msra.mxu0 0
    %880 = vmatpush.bf16.msra.mxu0 0
    %881 = vmatpush.bf16.msra.mxu0 0
    %882 = vmatpush.bf16.msra.mxu0 0
    %883 = vmatpush.bf16.msra.mxu0 %v874
    %884 = vmatmul.bf16.gmra.mxu0 %v349
    %v885 = vpop.f32.mrf.mxu0
    %v886 = vadd.f32 0.0, %v885
    %v887 = vpop.f32.mrf.mxu0
    %v888 = vadd.f32 0.0, %v887
    %889 = vmatmul.bf16.gmra.mxu0 %v352
    %v890 = vpop.f32.mrf.mxu0
    %v891 = vadd.f32 0.0, %v890
    %v892 = vpop.f32.mrf.mxu0
    %v893 = vadd.f32 0.0, %v892
    %894 = vmatmul.bf16.gmra.mxu0 %v355
    %v895 = vpop.f32.mrf.mxu0
    %v896 = vadd.f32 0.0, %v895
    %v897 = vpop.f32.mrf.mxu0
    %898 = vdwg.mxu0
    %v900 = vsel %vm307, %v844, 0
    %902 = vmatpush.bf16.msra.mxu0 0
    %903 = vmatpush.bf16.msra.mxu0 0
    %904 = vmatpush.bf16.msra.mxu0 0
    %905 = vmatpush.bf16.msra.mxu0 0
    %906 = vmatpush.bf16.msra.mxu0 0
    %907 = vmatpush.bf16.msra.mxu0 0
    %908 = vmatpush.bf16.msra.mxu0 0
    %909 = vmatpush.bf16.msra.mxu0 %v900
    %910 = vmatmul.bf16.gmra.mxu0 %v349
    %v911 = vpop.f32.mrf.mxu0
    %v912 = vadd.f32 %v859, %v911
    %v913 = vpop.f32.mrf.mxu0
    %v914 = vadd.f32 %v861, %v913
    %915 = vmatmul.bf16.gmra.mxu0 %v352
    %v916 = vpop.f32.mrf.mxu0
    %v917 = vadd.f32 %v864, %v916
    %v918 = vpop.f32.mrf.mxu0
    %v919 = vadd.f32 %v866, %v918
    %920 = vmatmul.bf16.gmra.mxu0 %v355
    %v921 = vpop.f32.mrf.mxu0
    %v922 = vadd.f32 %v869, %v921
    %v923 = vpop.f32.mrf.mxu0
    %924 = vdwg.mxu0
    %v925 = vadd.f32 %v912, %v830
    %v926 = vadd.f32 %v914, %v833
    %v927 = vadd.f32 %v917, %v836
    %v928 = vadd.f32 %v919, %v839
    %v929 = vadd.f32 %v922, %v842
    %vm930 = vcmp.ge.f32.partialorder %v925, 0.0
    %vm931 = vcmp.ge.f32.partialorder %v926, 0.0
    %vm932 = vcmp.ge.f32.partialorder %v927, 0.0
    %vm933 = vcmp.ge.f32.partialorder %v928, 0.0
    %vm934 = vcmp.ge.f32.partialorder %v929, 0.0
    %v935 = vmul.f32 %v925, 0.2
    %v936 = vmul.f32 %v926, 0.2
    %v937 = vmul.f32 %v927, 0.2
    %v938 = vmul.f32 %v928, 0.2
    %v939 = vmul.f32 %v929, 0.2
    %v940 = vsel %vm930, %v925, %v935
    %v941 = vsel %vm931, %v926, %v936
    %v942 = vsel %vm932, %v927, %v937
    %v943 = vsel %vm933, %v928, %v938
    %v944 = vsel %vm934, %v929, %v939
    %v945 = vsel %vm429, %v940, -inf
    %v946 = vsel %vm429, %v941, -inf
    %v947 = vsel %vm429, %v942, -inf
    %v948 = vsel %vm429, %v943, -inf
    %v949 = vsel %vm434, %v944, -inf
    %v950 = vmax.f32 %v945, %v949
    %v951 = vmax.f32 %v950, %v946
    %v952 = vmax.f32 %v947, %v948
    %v953 = vmax.f32 %v951, %v952
    %v954 = vrot.slane %v953, 4
    %v955 = vmax.f32 %v953, %v954
    %v956 = vrot.slane %v955, 2
    %v957 = vmax.f32 %v955, %v956
    %v958 = vrot.slane %v957, 1
    %v959 = vmax.f32 %v957, %v958
    %v960 = vsub.f32 %v940, %v959
    %v961 = vsub.f32 %v941, %v959
    %v962 = vsub.f32 %v942, %v959
    %v963 = vsub.f32 %v943, %v959
    %v964 = vsub.f32 %v944, %v959
    %v965 = vmul.f32 %v960, 1.442695
    %v966 = vpow.pop %v965
    %v967 = vmul.f32 %v961, 1.442695
    %v968 = vpow.pop %v967
    %v969 = vmul.f32 %v962, 1.442695
    %v970 = vpow.pop %v969
    %v971 = vmul.f32 %v963, 1.442695
    %v972 = vpow.pop %v971
    %v973 = vmul.f32 %v964, 1.442695
    %v974 = vpow.pop %v973
    %v976 = vsel %vm429, %v966, 0
    %v979 = vsel %vm429, %v968, 0
    %v982 = vsel %vm429, %v970, 0
    %v985 = vsel %vm429, %v972, 0
    %v988 = vsel %vm429, %v974, 0
    %990 = vmatpush.msra.mxu0 0.0
    %991 = vmatpush.msra.mxu0 0.0
    %992 = vmatpush.msra.mxu0 0.0
    %993 = vmatpush.msra.mxu0 0.0
    %994 = vmatpush.msra.mxu0 0.0
    %995 = vmatpush.msra.mxu0 0.0
    %996 = vmatpush.msra.mxu0 0.0
    %997 = vmatpush.msra.mxu0 0.0
    %998 = vmatpush.msra.mxu0 0.0
    %999 = vmatpush.msra.mxu0 0.0
    %1000 = vmatpush.msra.mxu0 0.0
    %1001 = vmatpush.msra.mxu0 0.0
    %1002 = vmatpush.msra.mxu0 0.0
    %1003 = vmatpush.msra.mxu0 0.0
    %1004 = vmatpush.msra.mxu0 0.0
    %1005 = vmatpush.msra.mxu0 %v478
    %1006 = vmatmul.f32.gmra.mxu0 %v976
    %v1007 = vpop.f32.mrf.mxu0
    %v1008 = vadd.f32 0.0, %v1007
    %1009 = vmatmul.f32.gmra.mxu0 %v979
    %v1010 = vpop.f32.mrf.mxu0
    %v1011 = vadd.f32 0.0, %v1010
    %1012 = vmatmul.f32.gmra.mxu0 %v982
    %v1013 = vpop.f32.mrf.mxu0
    %v1014 = vadd.f32 0.0, %v1013
    %1015 = vmatmul.f32.gmra.mxu0 %v985
    %v1016 = vpop.f32.mrf.mxu0
    %v1017 = vadd.f32 0.0, %v1016
    %1018 = vmatmul.f32.gmra.mxu0 %v988
    %v1019 = vpop.f32.mrf.mxu0
    %v1020 = vadd.f32 0.0, %v1019
    %1021 = vdwg.mxu0
    %v1022 = vmul.f32 %v886, %v1008
    %v1023 = vmul.f32 %v888, %v1011
    %v1024 = vmul.f32 %v891, %v1014
    %v1025 = vmul.f32 %v893, %v1017
    %v1026 = vmul.f32 %v896, %v1020
    %v1027 = vpack.c.bf16 %v1023, %v1022
    %v1028 = vpack.c.bf16 %v1025, %v1024
    %v1029 = vpack.c.bf16 %v1026, %v1026
    %v1031 = vsel %vm543, %v1029, 0
    %1033 = vmatpush.bf16.msra.mxu0 0
    %1034 = vmatpush.bf16.msra.mxu0 0
    %1035 = vmatpush.bf16.msra.mxu0 0
    %1036 = vmatpush.bf16.msra.mxu0 0
    %1037 = vmatpush.bf16.msra.mxu0 0
    %1038 = vmatpush.bf16.msra.mxu0 %v1031
    %1039 = vmatpush.bf16.msra.mxu0 %v1028
    %1040 = vmatpush.bf16.msra.mxu0 %v1027
    %1041 = vmatmul.bf16.gmra.mxu0 %v541
    %v1042 = vpop.f32.mrf.mxu0
    %v1043 = vadd.f32 0.0, %v1042
    %v1044 = vpop.f32.mrf.mxu0
    %v1045 = vadd.f32 0.0, %v1044
    %1046 = vdwg.mxu0
    %v1047 = vpack.c.bf16 %v968, %v966
    %v1048 = vpack.c.bf16 %v972, %v970
    %v1049 = vpack.c.bf16 %v974, %v974
    %v1051 = vsel %vm543, %v1049, 0
    %1053 = vmatpush.bf16.msra.mxu0 0
    %1054 = vmatpush.bf16.msra.mxu0 0
    %1055 = vmatpush.bf16.msra.mxu0 0
    %1056 = vmatpush.bf16.msra.mxu0 0
    %1057 = vmatpush.bf16.msra.mxu0 0
    %1058 = vmatpush.bf16.msra.mxu0 %v1051
    %1059 = vmatpush.bf16.msra.mxu0 %v1048
    %1060 = vmatpush.bf16.msra.mxu0 %v1047
    %1061 = vmatmul.bf16.gmra.mxu0 %v541
    %v1062 = vpop.f32.mrf.mxu0
    %v1063 = vadd.f32 1e-16, %v1062
    %v1064 = vpop.f32.mrf.mxu0
    %v1065 = vadd.f32 1e-16, %v1064
    %1066 = vdwg.mxu0
    %v1067 = vrcp.pop %v1063
    %v1068 = vmul.f32 %v1063, %v1067
    %v1069 = vsub.f32 1.0, %v1068
    %v1070 = vmul.f32 %v1067, %v1069
    %v1071 = vadd.f32 %v1067, %v1070
    %vm1072 = vweird.f32 %v1063
    %vm1073 = vweird.f32 %v1067
    %vm1074 = vmor %vm1072, %vm1073
    %v1075 = vsel %vm1074, %v1067, %v1071
    %v1076 = vand.u32 2147483647, %v1063
    %vm1077 = vcmp.eq.f32.partialorder %v1076, 8.507059e+37
    %v1078 = vand.u32 %v1063, 2147483648
    %v1079 = vor.u32 1.1754944e-38, %v1078
    %v1080 = vsel %vm1077, %v1079, %v1075
    %v1081 = vmul.f32 1.0, %v1080
    %v1082 = vrcp.pop %v1065
    %v1083 = vmul.f32 %v1065, %v1082
    %v1084 = vsub.f32 1.0, %v1083
    %v1085 = vmul.f32 %v1082, %v1084
    %v1086 = vadd.f32 %v1082, %v1085
    %vm1087 = vweird.f32 %v1065
    %vm1088 = vweird.f32 %v1082
    %vm1089 = vmor %vm1087, %vm1088
    %v1090 = vsel %vm1089, %v1082, %v1086
    %v1091 = vand.u32 2147483647, %v1065
    %vm1092 = vcmp.eq.f32.partialorder %v1091, 8.507059e+37
    %v1093 = vand.u32 %v1065, 2147483648
    %v1094 = vor.u32 1.1754944e-38, %v1093
    %v1095 = vsel %vm1092, %v1094, %v1090
    %v1096 = vmul.f32 1.0, %v1095
    %v1098 = vsel %vm429, %v1081, 0
    %v1101 = vsel %vm429, %v1096, 0
    %1103 = vmatpush.msra.mxu0 0.0
    %1104 = vmatpush.msra.mxu0 0.0
    %1105 = vmatpush.msra.mxu0 0.0
    %1106 = vmatpush.msra.mxu0 0.0
    %1107 = vmatpush.msra.mxu0 0.0
    %1108 = vmatpush.msra.mxu0 0.0
    %1109 = vmatpush.msra.mxu0 0.0
    %1110 = vmatpush.msra.mxu0 0.0
    %1111 = vmatpush.msra.mxu0 0.0
    %1112 = vmatpush.msra.mxu0 0.0
    %1113 = vmatpush.msra.mxu0 0.0
    %1114 = vmatpush.msra.mxu0 0.0
    %1115 = vmatpush.msra.mxu0 0.0
    %1116 = vmatpush.msra.mxu0 0.0
    %1117 = vmatpush.msra.mxu0 0.0
    %1118 = vmatpush.msra.mxu0 %v478
    %1119 = vmatmul.f32.gmra.mxu0 %v1098
    %v1120 = vpop.f32.mrf.mxu0
    %v1121 = vadd.f32 0.0, %v1120
    %1122 = vmatmul.f32.gmra.mxu0 %v1101
    %v1123 = vpop.f32.mrf.mxu0
    %v1124 = vadd.f32 0.0, %v1123
    %1125 = vdwg.mxu0
    %v1126 = vmul.f32 %v1043, %v1121
    %v1127 = vmul.f32 %v1045, %v1124
    %s1128 = scalar_lea.vmem %s9, 1
    %v1129 = vld [vmem:[%s1128] sm:$0x1]
    %v1131 = vperm.slane %v1129, 0
    %v1133 = vadd.f32 %v1126, %v1131
    %v1134 = vadd.f32 %v1127, %v1131
    %s1135 = scalar_lea.vmem %s10, 1
    %v1136 = vld [vmem:[%s1135] sm:$0x1]
    %s1137 = scalar_lea.vmem %s11, 1
    %v1138 = vld [vmem:[%s1137] sm:$0x1]
    %v1139 = vsel %vm149, %v1133, 0.0
    %1140 = vadd.xlane.f32.xlu0 %v1139
    %v1141 = vpop.xlane.xlu0 %1140
    %v1142 = vsel %vm653, %v1134, 0.0
    %1143 = vadd.xlane.f32.xlu0 %v1142
    %v1144 = vpop.xlane.xlu0 %1143
    %v1145 = vmul.f32 %v1141, %v663
    %v1146 = vmul.f32 %v1144, %v663
    %v1147 = vsub.f32 %v1133, %v1145
    %v1148 = vsub.f32 %v1134, %v1146
    %v1149 = vmul.f32 %v1147, %v1147
    %v1150 = vmul.f32 %v1148, %v1148
    %v1151 = vsel %vm149, %v1149, 0.0
    %1152 = vadd.xlane.f32.xlu0 %v1151
    %v1153 = vpop.xlane.xlu0 %1152
    %v1154 = vsel %vm653, %v1150, 0.0
    %1155 = vadd.xlane.f32.xlu0 %v1154
    %v1156 = vpop.xlane.xlu0 %1155
    %v1157 = vmul.f32 %v1153, %v663
    %v1158 = vmul.f32 %v1156, %v663
    %v1159 = vadd.f32 %v1157, 1e-06
    %v1160 = vadd.f32 %v1158, 1e-06
    %v1161 = vrsqrt.pop %v1159
    %v1162 = vmul.f32 %v1161, %v1159
    %v1163 = vmul.f32 %v1162, %v1161
    %v1164 = vmul.f32 0.5, %v1163
    %v1165 = vsub.f32 1.5, %v1164
    %v1166 = vmul.f32 %v1161, %v1165
    %vm1167 = vweird.f32 %v1159
    %vm1168 = vweird.f32 %v1161
    %vm1169 = vmor %vm1167, %vm1168
    %v1170 = vsel %vm1169, %v1161, %v1166
    %v1171 = vrsqrt.pop %v1160
    %v1172 = vmul.f32 %v1171, %v1160
    %v1173 = vmul.f32 %v1172, %v1171
    %v1174 = vmul.f32 0.5, %v1173
    %v1175 = vsub.f32 1.5, %v1174
    %v1176 = vmul.f32 %v1171, %v1175
    %vm1177 = vweird.f32 %v1160
    %vm1178 = vweird.f32 %v1171
    %vm1179 = vmor %vm1177, %vm1178
    %v1180 = vsel %vm1179, %v1171, %v1176
    %v1181 = vmul.f32 %v1147, %v1170
    %v1182 = vmul.f32 %v1148, %v1180
    %v1184 = vperm.slane %v1136, 0
    %v1186 = vmul.f32 %v1181, %v1184
    %v1187 = vmul.f32 %v1182, %v1184
    %v1189 = vperm.slane %v1138, 0
    %v1191 = vadd.f32 %v1186, %v1189
    %v1192 = vadd.f32 %v1187, %v1189
    %vm1193 = vcmp.ge.f32.partialorder %v1191, 0.0
    %vm1194 = vcmp.ge.f32.partialorder %v1192, 0.0
    %v1195 = vmul.f32 %v1191, 0.01
    %v1196 = vmul.f32 %v1192, 0.01
    %v1197 = vsel %vm1193, %v1191, %v1195
    %v1198 = vsel %vm1194, %v1192, %v1196
    %v1199 = vadd.f32 %v718, %v1197
    %v1200 = vadd.f32 %v719, %v1198
    %v1201 = vld [vmem:[#allocation7] sm:$0xff]
    %v1202 = vld [vmem:[#allocation7 + $0x8] sm:$0xff]
    %v1203 = vld [vmem:[#allocation7 + $0x10] sm:$0xff]
    %v1204 = vld [vmem:[#allocation7 + $0x18] sm:$0xff]
    %v1205 = vld [vmem:[%s13] sm:$0x1]
    %v1207 = vperm.slane %v1205, 0
    %v1210 = vsel %vm149, %v1199, 0
    %v1213 = vsel %vm149, %v1200, 0
    %1215 = vmatpush.msra.mxu0 0.0
    %1216 = vmatpush.msra.mxu0 0.0
    %1217 = vmatpush.msra.mxu0 0.0
    %1218 = vmatpush.msra.mxu0 0.0
    %1219 = vmatpush.msra.mxu0 0.0
    %1220 = vmatpush.msra.mxu0 0.0
    %1221 = vmatpush.msra.mxu0 0.0
    %1222 = vmatpush.msra.mxu0 0.0
    %1223 = vmatpush.msra.mxu0 0.0
    %1224 = vmatpush.msra.mxu0 0.0
    %1225 = vmatpush.msra.mxu0 0.0
    %1226 = vmatpush.msra.mxu0 0.0
    %1227 = vmatpush.msra.mxu0 %v1204
    %1228 = vmatpush.msra.mxu0 %v1203
    %1229 = vmatpush.msra.mxu0 %v1202
    %1230 = vmatpush.msra.mxu0 %v1201
    %1231 = vmatmul.f32.gmra.mxu0 %v1210
    %v1232 = vpop.f32.mrf.mxu0
    %v1233 = vadd.f32 %v1207, %v1232
    %1234 = vmatmul.f32.gmra.mxu0 %v1213
    %v1235 = vpop.f32.mrf.mxu0
    %v1236 = vadd.f32 %v1207, %v1235
    %1237 = vdwg.mxu0
    %v1238 = vmax.f32 %v1233, 0.0
    %v1239 = vmax.f32 %v1236, 0.0
    %v1240 = vld [vmem:[#allocation8] sm:$0xff]
    %v1241 = vld [vmem:[#allocation8 + $0x8] sm:$0xff]
    %v1242 = vld [vmem:[#allocation8 + $0x10] sm:$0xff]
    %v1243 = vld [vmem:[#allocation8 + $0x18] sm:$0xff]
    %v1244 = vld [vmem:[#allocation8 + $0x20] sm:$0xff]
    %v1245 = vld [vmem:[#allocation8 + $0x28] sm:$0xff]
    %v1246 = vld [vmem:[#allocation8 + $0x30] sm:$0xff]
    %v1247 = vld [vmem:[#allocation8 + $0x38] sm:$0xff]
    %v1248 = vld [vmem:[%s15] sm:$0x1]
    %v1250 = vperm.slane %v1248, 0
    %vm1252 = vcmask 523264
    %v1254 = vsel %vm1252, %v1238, 0
    %v1257 = vsel %vm1252, %v1239, 0
    %1259 = vmatpush.msra.mxu0 0.0
    %1260 = vmatpush.msra.mxu0 0.0
    %1261 = vmatpush.msra.mxu0 0.0
    %1262 = vmatpush.msra.mxu0 0.0
    %1263 = vmatpush.msra.mxu0 0.0
    %1264 = vmatpush.msra.mxu0 0.0
    %1265 = vmatpush.msra.mxu0 0.0
    %1266 = vmatpush.msra.mxu0 0.0
    %1267 = vmatpush.msra.mxu0 %v1247
    %1268 = vmatpush.msra.mxu0 %v1246
    %1269 = vmatpush.msra.mxu0 %v1245
    %1270 = vmatpush.msra.mxu0 %v1244
    %1271 = vmatpush.msra.mxu0 %v1243
    %1272 = vmatpush.msra.mxu0 %v1242
    %1273 = vmatpush.msra.mxu0 %v1241
    %1274 = vmatpush.msra.mxu0 %v1240
    %1275 = vmatmul.f32.gmra.mxu0 %v1254
    %v1276 = vpop.f32.mrf.mxu0
    %v1277 = vadd.f32 %v1250, %v1276
    %1278 = vmatmul.f32.gmra.mxu0 %v1257
    %v1279 = vpop.f32.mrf.mxu0
    %v1280 = vadd.f32 %v1250, %v1279
    %1281 = vdwg.mxu0
    %s1282 = scalar_lea.vmem %s10, 2
    %v1283 = vld [vmem:[%s1282] sm:$0x1]
    %s1284 = scalar_lea.vmem %s11, 2
    %v1285 = vld [vmem:[%s1284] sm:$0x1]
    %v1286 = vsel %vm149, %v1277, 0.0
    %1287 = vadd.xlane.f32.xlu0 %v1286
    %v1288 = vpop.xlane.xlu0 %1287
    %v1289 = vsel %vm653, %v1280, 0.0
    %1290 = vadd.xlane.f32.xlu0 %v1289
    %v1291 = vpop.xlane.xlu0 %1290
    %v1292 = vmul.f32 %v1288, %v663
    %v1293 = vmul.f32 %v1291, %v663
    %v1294 = vsub.f32 %v1277, %v1292
    %v1295 = vsub.f32 %v1280, %v1293
    %v1296 = vmul.f32 %v1294, %v1294
    %v1297 = vmul.f32 %v1295, %v1295
    %v1298 = vsel %vm149, %v1296, 0.0
    %1299 = vadd.xlane.f32.xlu0 %v1298
    %v1300 = vpop.xlane.xlu0 %1299
    %v1301 = vsel %vm653, %v1297, 0.0
    %1302 = vadd.xlane.f32.xlu0 %v1301
    %v1303 = vpop.xlane.xlu0 %1302
    %v1304 = vmul.f32 %v1300, %v663
    %v1305 = vmul.f32 %v1303, %v663
    %v1306 = vadd.f32 %v1304, 1e-06
    %v1307 = vadd.f32 %v1305, 1e-06
    %v1308 = vrsqrt.pop %v1306
    %v1309 = vmul.f32 %v1308, %v1306
    %v1310 = vmul.f32 %v1309, %v1308
    %v1311 = vmul.f32 0.5, %v1310
    %v1312 = vsub.f32 1.5, %v1311
    %v1313 = vmul.f32 %v1308, %v1312
    %vm1314 = vweird.f32 %v1306
    %vm1315 = vweird.f32 %v1308
    %vm1316 = vmor %vm1314, %vm1315
    %v1317 = vsel %vm1316, %v1308, %v1313
    %v1318 = vrsqrt.pop %v1307
    %v1319 = vmul.f32 %v1318, %v1307
    %v1320 = vmul.f32 %v1319, %v1318
    %v1321 = vmul.f32 0.5, %v1320
    %v1322 = vsub.f32 1.5, %v1321
    %v1323 = vmul.f32 %v1318, %v1322
    %vm1324 = vweird.f32 %v1307
    %vm1325 = vweird.f32 %v1318
    %vm1326 = vmor %vm1324, %vm1325
    %v1327 = vsel %vm1326, %v1318, %v1323
    %v1328 = vmul.f32 %v1294, %v1317
    %v1329 = vmul.f32 %v1295, %v1327
    %v1331 = vperm.slane %v1283, 0
    %v1333 = vmul.f32 %v1328, %v1331
    %v1334 = vmul.f32 %v1329, %v1331
    %v1336 = vperm.slane %v1285, 0
    %v1338 = vadd.f32 %v1333, %v1336
    %v1339 = vadd.f32 %v1334, %v1336
    %vm1340 = vcmp.ge.f32.partialorder %v1338, 0.0
    %vm1341 = vcmp.ge.f32.partialorder %v1339, 0.0
    %v1342 = vmul.f32 %v1338, 0.01
    %v1343 = vmul.f32 %v1339, 0.01
    %v1344 = vsel %vm1340, %v1338, %v1342
    %v1345 = vsel %vm1341, %v1339, %v1343
    %v1346 = vadd.f32 %v1199, %v1344
    %v1347 = vadd.f32 %v1200, %v1345
    %s1348 = scalar_lea.vmem %s5, 64
    %v1349 = vld [vmem:[%s1348] sm:$0xff]
    %v1350 = vld [vmem:[%s1348 + $0x8] sm:$0xff]
    %v1351 = vld [vmem:[%s1348 + $0x10] sm:$0xff]
    %v1352 = vld [vmem:[%s1348 + $0x18] sm:$0xff]
    %v1354 = vsel %vm149, %v1346, 0
    %v1357 = vsel %vm149, %v1347, 0
    %1359 = vmatpush.msra.mxu0 0.0
    %1360 = vmatpush.msra.mxu0 0.0
    %1361 = vmatpush.msra.mxu0 0.0
    %1362 = vmatpush.msra.mxu0 0.0
    %1363 = vmatpush.msra.mxu0 0.0
    %1364 = vmatpush.msra.mxu0 0.0
    %1365 = vmatpush.msra.mxu0 0.0
    %1366 = vmatpush.msra.mxu0 0.0
    %1367 = vmatpush.msra.mxu0 0.0
    %1368 = vmatpush.msra.mxu0 0.0
    %1369 = vmatpush.msra.mxu0 0.0
    %1370 = vmatpush.msra.mxu0 0.0
    %1371 = vmatpush.msra.mxu0 %v1352
    %1372 = vmatpush.msra.mxu0 %v1351
    %1373 = vmatpush.msra.mxu0 %v1350
    %1374 = vmatpush.msra.mxu0 %v1349
    %1375 = vmatmul.f32.gmra.mxu0 %v1354
    %v1376 = vpop.f32.mrf.mxu0
    %v1377 = vadd.f32 0.0, %v1376
    %1378 = vmatmul.f32.gmra.mxu0 %v1357
    %v1379 = vpop.f32.mrf.mxu0
    %v1380 = vadd.f32 0.0, %v1379
    %1381 = vdwg.mxu0
    %s1382 = scalar_lea.vmem %s6, 64
    %v1383 = vld [vmem:[%s1382] sm:$0xff]
    %v1384 = vld [vmem:[%s1382 + $0x8] sm:$0xff]
    %v1385 = vld [vmem:[%s1382 + $0x10] sm:$0xff]
    %v1386 = vld [vmem:[%s1382 + $0x18] sm:$0xff]
    %1387 = vmatpush.msra.mxu0 0.0
    %1388 = vmatpush.msra.mxu0 0.0
    %1389 = vmatpush.msra.mxu0 0.0
    %1390 = vmatpush.msra.mxu0 0.0
    %1391 = vmatpush.msra.mxu0 0.0
    %1392 = vmatpush.msra.mxu0 0.0
    %1393 = vmatpush.msra.mxu0 0.0
    %1394 = vmatpush.msra.mxu0 0.0
    %1395 = vmatpush.msra.mxu0 0.0
    %1396 = vmatpush.msra.mxu0 0.0
    %1397 = vmatpush.msra.mxu0 0.0
    %1398 = vmatpush.msra.mxu0 0.0
    %1399 = vmatpush.msra.mxu0 %v1386
    %1400 = vmatpush.msra.mxu0 %v1385
    %1401 = vmatpush.msra.mxu0 %v1384
    %1402 = vmatpush.msra.mxu0 %v1383
    %1403 = vmatmul.f32.gmra.mxu0 %v1354
    %v1404 = vpop.f32.mrf.mxu0
    %v1405 = vadd.f32 0.0, %v1404
    %1406 = vmatmul.f32.gmra.mxu0 %v1357
    %v1407 = vpop.f32.mrf.mxu0
    %v1408 = vadd.f32 0.0, %v1407
    %1409 = vdwg.mxu0
    %s1410 = scalar_lea.vmem [#allocation5], 64
    %v1411 = vld [vmem:[%s1410] sm:$0xff]
    %v1412 = vld [vmem:[%s1410 + $0x8] sm:$0xff]
    %v1413 = vld [vmem:[%s1410 + $0x10] sm:$0xff]
    %v1414 = vld [vmem:[%s1410 + $0x18] sm:$0xff]
    %1415 = vmatpush.msra.mxu0 0.0
    %1416 = vmatpush.msra.mxu0 0.0
    %1417 = vmatpush.msra.mxu0 0.0
    %1418 = vmatpush.msra.mxu0 0.0
    %1419 = vmatpush.msra.mxu0 0.0
    %1420 = vmatpush.msra.mxu0 0.0
    %1421 = vmatpush.msra.mxu0 0.0
    %1422 = vmatpush.msra.mxu0 0.0
    %1423 = vmatpush.msra.mxu0 0.0
    %1424 = vmatpush.msra.mxu0 0.0
    %1425 = vmatpush.msra.mxu0 0.0
    %1426 = vmatpush.msra.mxu0 0.0
    %1427 = vmatpush.msra.mxu0 %v1414
    %1428 = vmatpush.msra.mxu0 %v1413
    %1429 = vmatpush.msra.mxu0 %v1412
    %1430 = vmatpush.msra.mxu0 %v1411
    %1431 = vmatmul.f32.gmra.mxu0 %v1354
    %v1432 = vpop.f32.mrf.mxu0
    %v1433 = vadd.f32 0.0, %v1432
    %1434 = vmatmul.f32.gmra.mxu0 %v1357
    %v1435 = vpop.f32.mrf.mxu0
    %v1436 = vadd.f32 0.0, %v1435
    %1437 = vdwg.mxu0
    %s1438 = scalar_lea.vmem %s8, 16
    %v1439 = vld [vmem:[%s1438] sm:$0xff]
    %1440 = vmatpush.msra.mxu0 0.0
    %1441 = vmatpush.msra.mxu0 0.0
    %1442 = vmatpush.msra.mxu0 0.0
    %1443 = vmatpush.msra.mxu0 0.0
    %1444 = vmatpush.msra.mxu0 0.0
    %1445 = vmatpush.msra.mxu0 0.0
    %1446 = vmatpush.msra.mxu0 0.0
    %1447 = vmatpush.msra.mxu0 0.0
    %1448 = vmatpush.msra.mxu0 0.0
    %1449 = vmatpush.msra.mxu0 0.0
    %1450 = vmatpush.msra.mxu0 0.0
    %1451 = vmatpush.msra.mxu0 0.0
    %1452 = vmatpush.msra.mxu0 0.0
    %1453 = vmatpush.msra.mxu0 0.0
    %1454 = vmatpush.msra.mxu0 0.0
    %1455 = vmatpush.msra.mxu0 %v1439
    %1456 = vmatmul.f32.gmra.mxu0 %v236
    %v1457 = vpop.f32.mrf.mxu0
    %v1458 = vadd.f32 0.0, %v1457
    %1459 = vmatmul.f32.gmra.mxu0 %v239
    %v1460 = vpop.f32.mrf.mxu0
    %v1461 = vadd.f32 0.0, %v1460
    %1462 = vmatmul.f32.gmra.mxu0 %v242
    %v1463 = vpop.f32.mrf.mxu0
    %v1464 = vadd.f32 0.0, %v1463
    %1465 = vmatmul.f32.gmra.mxu0 %v245
    %v1466 = vpop.f32.mrf.mxu0
    %v1467 = vadd.f32 0.0, %v1466
    %1468 = vmatmul.f32.gmra.mxu0 %v248
    %v1469 = vpop.f32.mrf.mxu0
    %v1470 = vadd.f32 0.0, %v1469
    %1471 = vdwg.mxu0
    %v1472 = vpack.c.bf16 %v1408, %v1405
    %v1473 = vpack.c.bf16 %v1436, %v1433
    %v1475 = vsel %vm307, %v1473, 0
    %1477 = vmatpush.bf16.msra.mxu0 0
    %1478 = vmatpush.bf16.msra.mxu0 0
    %1479 = vmatpush.bf16.msra.mxu0 0
    %1480 = vmatpush.bf16.msra.mxu0 0
    %1481 = vmatpush.bf16.msra.mxu0 0
    %1482 = vmatpush.bf16.msra.mxu0 0
    %1483 = vmatpush.bf16.msra.mxu0 0
    %1484 = vmatpush.bf16.msra.mxu0 %v1475
    %1485 = vmatmul.bf16.gmra.mxu0 %v299
    %v1486 = vpop.f32.mrf.mxu0
    %v1487 = vadd.f32 0.0, %v1486
    %v1488 = vpop.f32.mrf.mxu0
    %v1489 = vadd.f32 0.0, %v1488
    %1490 = vmatmul.bf16.gmra.mxu0 %v302
    %v1491 = vpop.f32.mrf.mxu0
    %v1492 = vadd.f32 0.0, %v1491
    %v1493 = vpop.f32.mrf.mxu0
    %v1494 = vadd.f32 0.0, %v1493
    %1495 = vmatmul.bf16.gmra.mxu0 %v305
    %v1496 = vpop.f32.mrf.mxu0
    %v1497 = vadd.f32 0.0, %v1496
    %v1498 = vpop.f32.mrf.mxu0
    %1499 = vdwg.mxu0
    %v1500 = vpack.c.bf16 %v1380, %v1377
    %v1502 = vsel %vm307, %v1500, 0
    %1504 = vmatpush.bf16.msra.mxu0 0
    %1505 = vmatpush.bf16.msra.mxu0 0
    %1506 = vmatpush.bf16.msra.mxu0 0
    %1507 = vmatpush.bf16.msra.mxu0 0
    %1508 = vmatpush.bf16.msra.mxu0 0
    %1509 = vmatpush.bf16.msra.mxu0 0
    %1510 = vmatpush.bf16.msra.mxu0 0
    %1511 = vmatpush.bf16.msra.mxu0 %v1502
    %1512 = vmatmul.bf16.gmra.mxu0 %v349
    %v1513 = vpop.f32.mrf.mxu0
    %v1514 = vadd.f32 0.0, %v1513
    %v1515 = vpop.f32.mrf.mxu0
    %v1516 = vadd.f32 0.0, %v1515
    %1517 = vmatmul.bf16.gmra.mxu0 %v352
    %v1518 = vpop.f32.mrf.mxu0
    %v1519 = vadd.f32 0.0, %v1518
    %v1520 = vpop.f32.mrf.mxu0
    %v1521 = vadd.f32 0.0, %v1520
    %1522 = vmatmul.bf16.gmra.mxu0 %v355
    %v1523 = vpop.f32.mrf.mxu0
    %v1524 = vadd.f32 0.0, %v1523
    %v1525 = vpop.f32.mrf.mxu0
    %1526 = vdwg.mxu0
    %v1528 = vsel %vm307, %v1472, 0
    %1530 = vmatpush.bf16.msra.mxu0 0
    %1531 = vmatpush.bf16.msra.mxu0 0
    %1532 = vmatpush.bf16.msra.mxu0 0
    %1533 = vmatpush.bf16.msra.mxu0 0
    %1534 = vmatpush.bf16.msra.mxu0 0
    %1535 = vmatpush.bf16.msra.mxu0 0
    %1536 = vmatpush.bf16.msra.mxu0 0
    %1537 = vmatpush.bf16.msra.mxu0 %v1528
    %1538 = vmatmul.bf16.gmra.mxu0 %v349
    %v1539 = vpop.f32.mrf.mxu0
    %v1540 = vadd.f32 %v1487, %v1539
    %v1541 = vpop.f32.mrf.mxu0
    %v1542 = vadd.f32 %v1489, %v1541
    %1543 = vmatmul.bf16.gmra.mxu0 %v352
    %v1544 = vpop.f32.mrf.mxu0
    %v1545 = vadd.f32 %v1492, %v1544
    %v1546 = vpop.f32.mrf.mxu0
    %v1547 = vadd.f32 %v1494, %v1546
    %1548 = vmatmul.bf16.gmra.mxu0 %v355
    %v1549 = vpop.f32.mrf.mxu0
    %v1550 = vadd.f32 %v1497, %v1549
    %v1551 = vpop.f32.mrf.mxu0
    %1552 = vdwg.mxu0
    %v1553 = vadd.f32 %v1540, %v1458
    %v1554 = vadd.f32 %v1542, %v1461
    %v1555 = vadd.f32 %v1545, %v1464
    %v1556 = vadd.f32 %v1547, %v1467
    %v1557 = vadd.f32 %v1550, %v1470
    %vm1558 = vcmp.ge.f32.partialorder %v1553, 0.0
    %vm1559 = vcmp.ge.f32.partialorder %v1554, 0.0
    %vm1560 = vcmp.ge.f32.partialorder %v1555, 0.0
    %vm1561 = vcmp.ge.f32.partialorder %v1556, 0.0
    %vm1562 = vcmp.ge.f32.partialorder %v1557, 0.0
    %v1563 = vmul.f32 %v1553, 0.2
    %v1564 = vmul.f32 %v1554, 0.2
    %v1565 = vmul.f32 %v1555, 0.2
    %v1566 = vmul.f32 %v1556, 0.2
    %v1567 = vmul.f32 %v1557, 0.2
    %v1568 = vsel %vm1558, %v1553, %v1563
    %v1569 = vsel %vm1559, %v1554, %v1564
    %v1570 = vsel %vm1560, %v1555, %v1565
    %v1571 = vsel %vm1561, %v1556, %v1566
    %v1572 = vsel %vm1562, %v1557, %v1567
    %v1573 = vsel %vm429, %v1568, -inf
    %v1574 = vsel %vm429, %v1569, -inf
    %v1575 = vsel %vm429, %v1570, -inf
    %v1576 = vsel %vm429, %v1571, -inf
    %v1577 = vsel %vm434, %v1572, -inf
    %v1578 = vmax.f32 %v1573, %v1577
    %v1579 = vmax.f32 %v1578, %v1574
    %v1580 = vmax.f32 %v1575, %v1576
    %v1581 = vmax.f32 %v1579, %v1580
    %v1582 = vrot.slane %v1581, 4
    %v1583 = vmax.f32 %v1581, %v1582
    %v1584 = vrot.slane %v1583, 2
    %v1585 = vmax.f32 %v1583, %v1584
    %v1586 = vrot.slane %v1585, 1
    %v1587 = vmax.f32 %v1585, %v1586
    %v1588 = vsub.f32 %v1568, %v1587
    %v1589 = vsub.f32 %v1569, %v1587
    %v1590 = vsub.f32 %v1570, %v1587
    %v1591 = vsub.f32 %v1571, %v1587
    %v1592 = vsub.f32 %v1572, %v1587
    %v1593 = vmul.f32 %v1588, 1.442695
    %v1594 = vpow.pop %v1593
    %v1595 = vmul.f32 %v1589, 1.442695
    %v1596 = vpow.pop %v1595
    %v1597 = vmul.f32 %v1590, 1.442695
    %v1598 = vpow.pop %v1597
    %v1599 = vmul.f32 %v1591, 1.442695
    %v1600 = vpow.pop %v1599
    %v1601 = vmul.f32 %v1592, 1.442695
    %v1602 = vpow.pop %v1601
    %v1604 = vsel %vm429, %v1594, 0
    %v1607 = vsel %vm429, %v1596, 0
    %v1610 = vsel %vm429, %v1598, 0
    %v1613 = vsel %vm429, %v1600, 0
    %v1616 = vsel %vm429, %v1602, 0
    %1618 = vmatpush.msra.mxu0 0.0
    %1619 = vmatpush.msra.mxu0 0.0
    %1620 = vmatpush.msra.mxu0 0.0
    %1621 = vmatpush.msra.mxu0 0.0
    %1622 = vmatpush.msra.mxu0 0.0
    %1623 = vmatpush.msra.mxu0 0.0
    %1624 = vmatpush.msra.mxu0 0.0
    %1625 = vmatpush.msra.mxu0 0.0
    %1626 = vmatpush.msra.mxu0 0.0
    %1627 = vmatpush.msra.mxu0 0.0
    %1628 = vmatpush.msra.mxu0 0.0
    %1629 = vmatpush.msra.mxu0 0.0
    %1630 = vmatpush.msra.mxu0 0.0
    %1631 = vmatpush.msra.mxu0 0.0
    %1632 = vmatpush.msra.mxu0 0.0
    %1633 = vmatpush.msra.mxu0 %v478
    %1634 = vmatmul.f32.gmra.mxu0 %v1604
    %v1635 = vpop.f32.mrf.mxu0
    %v1636 = vadd.f32 0.0, %v1635
    %1637 = vmatmul.f32.gmra.mxu0 %v1607
    %v1638 = vpop.f32.mrf.mxu0
    %v1639 = vadd.f32 0.0, %v1638
    %1640 = vmatmul.f32.gmra.mxu0 %v1610
    %v1641 = vpop.f32.mrf.mxu0
    %v1642 = vadd.f32 0.0, %v1641
    %1643 = vmatmul.f32.gmra.mxu0 %v1613
    %v1644 = vpop.f32.mrf.mxu0
    %v1645 = vadd.f32 0.0, %v1644
    %1646 = vmatmul.f32.gmra.mxu0 %v1616
    %v1647 = vpop.f32.mrf.mxu0
    %v1648 = vadd.f32 0.0, %v1647
    %1649 = vdwg.mxu0
    %v1650 = vmul.f32 %v1514, %v1636
    %v1651 = vmul.f32 %v1516, %v1639
    %v1652 = vmul.f32 %v1519, %v1642
    %v1653 = vmul.f32 %v1521, %v1645
    %v1654 = vmul.f32 %v1524, %v1648
    %v1655 = vpack.c.bf16 %v1651, %v1650
    %v1656 = vpack.c.bf16 %v1653, %v1652
    %v1657 = vpack.c.bf16 %v1654, %v1654
    %v1659 = vsel %vm543, %v1657, 0
    %1661 = vmatpush.bf16.msra.mxu0 0
    %1662 = vmatpush.bf16.msra.mxu0 0
    %1663 = vmatpush.bf16.msra.mxu0 0
    %1664 = vmatpush.bf16.msra.mxu0 0
    %1665 = vmatpush.bf16.msra.mxu0 0
    %1666 = vmatpush.bf16.msra.mxu0 %v1659
    %1667 = vmatpush.bf16.msra.mxu0 %v1656
    %1668 = vmatpush.bf16.msra.mxu0 %v1655
    %1669 = vmatmul.bf16.gmra.mxu0 %v541
    %v1670 = vpop.f32.mrf.mxu0
    %v1671 = vadd.f32 0.0, %v1670
    %v1672 = vpop.f32.mrf.mxu0
    %v1673 = vadd.f32 0.0, %v1672
    %1674 = vdwg.mxu0
    %v1675 = vpack.c.bf16 %v1596, %v1594
    %v1676 = vpack.c.bf16 %v1600, %v1598
    %v1677 = vpack.c.bf16 %v1602, %v1602
    %v1679 = vsel %vm543, %v1677, 0
    %1681 = vmatpush.bf16.msra.mxu0 0
    %1682 = vmatpush.bf16.msra.mxu0 0
    %1683 = vmatpush.bf16.msra.mxu0 0
    %1684 = vmatpush.bf16.msra.mxu0 0
    %1685 = vmatpush.bf16.msra.mxu0 0
    %1686 = vmatpush.bf16.msra.mxu0 %v1679
    %1687 = vmatpush.bf16.msra.mxu0 %v1676
    %1688 = vmatpush.bf16.msra.mxu0 %v1675
    %1689 = vmatmul.bf16.gmra.mxu0 %v541
    %v1690 = vpop.f32.mrf.mxu0
    %v1691 = vadd.f32 1e-16, %v1690
    %v1692 = vpop.f32.mrf.mxu0
    %v1693 = vadd.f32 1e-16, %v1692
    %1694 = vdwg.mxu0
    %v1695 = vrcp.pop %v1691
    %v1696 = vmul.f32 %v1691, %v1695
    %v1697 = vsub.f32 1.0, %v1696
    %v1698 = vmul.f32 %v1695, %v1697
    %v1699 = vadd.f32 %v1695, %v1698
    %vm1700 = vweird.f32 %v1691
    %vm1701 = vweird.f32 %v1695
    %vm1702 = vmor %vm1700, %vm1701
    %v1703 = vsel %vm1702, %v1695, %v1699
    %v1704 = vand.u32 2147483647, %v1691
    %vm1705 = vcmp.eq.f32.partialorder %v1704, 8.507059e+37
    %v1706 = vand.u32 %v1691, 2147483648
    %v1707 = vor.u32 1.1754944e-38, %v1706
    %v1708 = vsel %vm1705, %v1707, %v1703
    %v1709 = vmul.f32 1.0, %v1708
    %v1710 = vrcp.pop %v1693
    %v1711 = vmul.f32 %v1693, %v1710
    %v1712 = vsub.f32 1.0, %v1711
    %v1713 = vmul.f32 %v1710, %v1712
    %v1714 = vadd.f32 %v1710, %v1713
    %vm1715 = vweird.f32 %v1693
    %vm1716 = vweird.f32 %v1710
    %vm1717 = vmor %vm1715, %vm1716
    %v1718 = vsel %vm1717, %v1710, %v1714
    %v1719 = vand.u32 2147483647, %v1693
    %vm1720 = vcmp.eq.f32.partialorder %v1719, 8.507059e+37
    %v1721 = vand.u32 %v1693, 2147483648
    %v1722 = vor.u32 1.1754944e-38, %v1721
    %v1723 = vsel %vm1720, %v1722, %v1718
    %v1724 = vmul.f32 1.0, %v1723
    %v1726 = vsel %vm429, %v1709, 0
    %v1729 = vsel %vm429, %v1724, 0
    %1731 = vmatpush.msra.mxu0 0.0
    %1732 = vmatpush.msra.mxu0 0.0
    %1733 = vmatpush.msra.mxu0 0.0
    %1734 = vmatpush.msra.mxu0 0.0
    %1735 = vmatpush.msra.mxu0 0.0
    %1736 = vmatpush.msra.mxu0 0.0
    %1737 = vmatpush.msra.mxu0 0.0
    %1738 = vmatpush.msra.mxu0 0.0
    %1739 = vmatpush.msra.mxu0 0.0
    %1740 = vmatpush.msra.mxu0 0.0
    %1741 = vmatpush.msra.mxu0 0.0
    %1742 = vmatpush.msra.mxu0 0.0
    %1743 = vmatpush.msra.mxu0 0.0
    %1744 = vmatpush.msra.mxu0 0.0
    %1745 = vmatpush.msra.mxu0 0.0
    %1746 = vmatpush.msra.mxu0 %v478
    %1747 = vmatmul.f32.gmra.mxu0 %v1726
    %v1748 = vpop.f32.mrf.mxu0
    %v1749 = vadd.f32 0.0, %v1748
    %1750 = vmatmul.f32.gmra.mxu0 %v1729
    %v1751 = vpop.f32.mrf.mxu0
    %v1752 = vadd.f32 0.0, %v1751
    %1753 = vdwg.mxu0
    %v1754 = vmul.f32 %v1671, %v1749
    %v1755 = vmul.f32 %v1673, %v1752
    %s1756 = scalar_lea.vmem %s9, 2
    %v1757 = vld [vmem:[%s1756] sm:$0x1]
    %v1759 = vperm.slane %v1757, 0
    %v1761 = vadd.f32 %v1754, %v1759
    %v1762 = vadd.f32 %v1755, %v1759
    %s1763 = scalar_lea.vmem %s10, 3
    %v1764 = vld [vmem:[%s1763] sm:$0x1]
    %s1765 = scalar_lea.vmem %s11, 3
    %v1766 = vld [vmem:[%s1765] sm:$0x1]
    %v1767 = vsel %vm149, %v1761, 0.0
    %1768 = vadd.xlane.f32.xlu0 %v1767
    %v1769 = vpop.xlane.xlu0 %1768
    %v1770 = vsel %vm653, %v1762, 0.0
    %1771 = vadd.xlane.f32.xlu0 %v1770
    %v1772 = vpop.xlane.xlu0 %1771
    %v1773 = vmul.f32 %v1769, %v663
    %v1774 = vmul.f32 %v1772, %v663
    %v1775 = vsub.f32 %v1761, %v1773
    %v1776 = vsub.f32 %v1762, %v1774
    %v1777 = vmul.f32 %v1775, %v1775
    %v1778 = vmul.f32 %v1776, %v1776
    %v1779 = vsel %vm149, %v1777, 0.0
    %1780 = vadd.xlane.f32.xlu0 %v1779
    %v1781 = vpop.xlane.xlu0 %1780
    %v1782 = vsel %vm653, %v1778, 0.0
    %1783 = vadd.xlane.f32.xlu0 %v1782
    %v1784 = vpop.xlane.xlu0 %1783
    %v1785 = vmul.f32 %v1781, %v663
    %v1786 = vmul.f32 %v1784, %v663
    %v1787 = vadd.f32 %v1785, 1e-06
    %v1788 = vadd.f32 %v1786, 1e-06
    %v1789 = vrsqrt.pop %v1787
    %v1790 = vmul.f32 %v1789, %v1787
    %v1791 = vmul.f32 %v1790, %v1789
    %v1792 = vmul.f32 0.5, %v1791
    %v1793 = vsub.f32 1.5, %v1792
    %v1794 = vmul.f32 %v1789, %v1793
    %vm1795 = vweird.f32 %v1787
    %vm1796 = vweird.f32 %v1789
    %vm1797 = vmor %vm1795, %vm1796
    %v1798 = vsel %vm1797, %v1789, %v1794
    %v1799 = vrsqrt.pop %v1788
    %v1800 = vmul.f32 %v1799, %v1788
    %v1801 = vmul.f32 %v1800, %v1799
    %v1802 = vmul.f32 0.5, %v1801
    %v1803 = vsub.f32 1.5, %v1802
    %v1804 = vmul.f32 %v1799, %v1803
    %vm1805 = vweird.f32 %v1788
    %vm1806 = vweird.f32 %v1799
    %vm1807 = vmor %vm1805, %vm1806
    %v1808 = vsel %vm1807, %v1799, %v1804
    %v1809 = vmul.f32 %v1775, %v1798
    %v1810 = vmul.f32 %v1776, %v1808
    %v1812 = vperm.slane %v1764, 0
    %v1814 = vmul.f32 %v1809, %v1812
    %v1815 = vmul.f32 %v1810, %v1812
    %v1817 = vperm.slane %v1766, 0
    %v1819 = vadd.f32 %v1814, %v1817
    %v1820 = vadd.f32 %v1815, %v1817
    %vm1821 = vcmp.ge.f32.partialorder %v1819, 0.0
    %vm1822 = vcmp.ge.f32.partialorder %v1820, 0.0
    %v1823 = vmul.f32 %v1819, 0.01
    %v1824 = vmul.f32 %v1820, 0.01
    %v1825 = vsel %vm1821, %v1819, %v1823
    %v1826 = vsel %vm1822, %v1820, %v1824
    %v1827 = vadd.f32 %v1346, %v1825
    %v1828 = vadd.f32 %v1347, %v1826
    %s1829 = scalar_lea.vmem %s5, 96
    %v1830 = vld [vmem:[%s1829] sm:$0xff]
    %v1831 = vld [vmem:[%s1829 + $0x8] sm:$0xff]
    %v1832 = vld [vmem:[%s1829 + $0x10] sm:$0xff]
    %v1833 = vld [vmem:[%s1829 + $0x18] sm:$0xff]
    %v1835 = vsel %vm149, %v1827, 0
    %v1838 = vsel %vm149, %v1828, 0
    %1840 = vmatpush.msra.mxu0 0.0
    %1841 = vmatpush.msra.mxu0 0.0
    %1842 = vmatpush.msra.mxu0 0.0
    %1843 = vmatpush.msra.mxu0 0.0
    %1844 = vmatpush.msra.mxu0 0.0
    %1845 = vmatpush.msra.mxu0 0.0
    %1846 = vmatpush.msra.mxu0 0.0
    %1847 = vmatpush.msra.mxu0 0.0
    %1848 = vmatpush.msra.mxu0 0.0
    %1849 = vmatpush.msra.mxu0 0.0
    %1850 = vmatpush.msra.mxu0 0.0
    %1851 = vmatpush.msra.mxu0 0.0
    %1852 = vmatpush.msra.mxu0 %v1833
    %1853 = vmatpush.msra.mxu0 %v1832
    %1854 = vmatpush.msra.mxu0 %v1831
    %1855 = vmatpush.msra.mxu0 %v1830
    %1856 = vmatmul.f32.gmra.mxu0 %v1835
    %v1857 = vpop.f32.mrf.mxu0
    %v1858 = vadd.f32 0.0, %v1857
    %1859 = vmatmul.f32.gmra.mxu0 %v1838
    %v1860 = vpop.f32.mrf.mxu0
    %v1861 = vadd.f32 0.0, %v1860
    %1862 = vdwg.mxu0
    %s1863 = scalar_lea.vmem %s6, 96
    %v1864 = vld [vmem:[%s1863] sm:$0xff]
    %v1865 = vld [vmem:[%s1863 + $0x8] sm:$0xff]
    %v1866 = vld [vmem:[%s1863 + $0x10] sm:$0xff]
    %v1867 = vld [vmem:[%s1863 + $0x18] sm:$0xff]
    %1868 = vmatpush.msra.mxu0 0.0
    %1869 = vmatpush.msra.mxu0 0.0
    %1870 = vmatpush.msra.mxu0 0.0
    %1871 = vmatpush.msra.mxu0 0.0
    %1872 = vmatpush.msra.mxu0 0.0
    %1873 = vmatpush.msra.mxu0 0.0
    %1874 = vmatpush.msra.mxu0 0.0
    %1875 = vmatpush.msra.mxu0 0.0
    %1876 = vmatpush.msra.mxu0 0.0
    %1877 = vmatpush.msra.mxu0 0.0
    %1878 = vmatpush.msra.mxu0 0.0
    %1879 = vmatpush.msra.mxu0 0.0
    %1880 = vmatpush.msra.mxu0 %v1867
    %1881 = vmatpush.msra.mxu0 %v1866
    %1882 = vmatpush.msra.mxu0 %v1865
    %1883 = vmatpush.msra.mxu0 %v1864
    %1884 = vmatmul.f32.gmra.mxu0 %v1835
    %v1885 = vpop.f32.mrf.mxu0
    %v1886 = vadd.f32 0.0, %v1885
    %1887 = vmatmul.f32.gmra.mxu0 %v1838
    %v1888 = vpop.f32.mrf.mxu0
    %v1889 = vadd.f32 0.0, %v1888
    %1890 = vdwg.mxu0
    %s1891 = scalar_lea.vmem [#allocation5], 96
    %v1892 = vld [vmem:[%s1891] sm:$0xff]
    %v1893 = vld [vmem:[%s1891 + $0x8] sm:$0xff]
    %v1894 = vld [vmem:[%s1891 + $0x10] sm:$0xff]
    %v1895 = vld [vmem:[%s1891 + $0x18] sm:$0xff]
    %1896 = vmatpush.msra.mxu0 0.0
    %1897 = vmatpush.msra.mxu0 0.0
    %1898 = vmatpush.msra.mxu0 0.0
    %1899 = vmatpush.msra.mxu0 0.0
    %1900 = vmatpush.msra.mxu0 0.0
    %1901 = vmatpush.msra.mxu0 0.0
    %1902 = vmatpush.msra.mxu0 0.0
    %1903 = vmatpush.msra.mxu0 0.0
    %1904 = vmatpush.msra.mxu0 0.0
    %1905 = vmatpush.msra.mxu0 0.0
    %1906 = vmatpush.msra.mxu0 0.0
    %1907 = vmatpush.msra.mxu0 0.0
    %1908 = vmatpush.msra.mxu0 %v1895
    %1909 = vmatpush.msra.mxu0 %v1894
    %1910 = vmatpush.msra.mxu0 %v1893
    %1911 = vmatpush.msra.mxu0 %v1892
    %1912 = vmatmul.f32.gmra.mxu0 %v1835
    %v1913 = vpop.f32.mrf.mxu0
    %v1914 = vadd.f32 0.0, %v1913
    %1915 = vmatmul.f32.gmra.mxu0 %v1838
    %v1916 = vpop.f32.mrf.mxu0
    %v1917 = vadd.f32 0.0, %v1916
    %1918 = vdwg.mxu0
    %s1919 = scalar_lea.vmem %s8, 24
    %v1920 = vld [vmem:[%s1919] sm:$0xff]
    %1921 = vmatpush.msra.mxu0 0.0
    %1922 = vmatpush.msra.mxu0 0.0
    %1923 = vmatpush.msra.mxu0 0.0
    %1924 = vmatpush.msra.mxu0 0.0
    %1925 = vmatpush.msra.mxu0 0.0
    %1926 = vmatpush.msra.mxu0 0.0
    %1927 = vmatpush.msra.mxu0 0.0
    %1928 = vmatpush.msra.mxu0 0.0
    %1929 = vmatpush.msra.mxu0 0.0
    %1930 = vmatpush.msra.mxu0 0.0
    %1931 = vmatpush.msra.mxu0 0.0
    %1932 = vmatpush.msra.mxu0 0.0
    %1933 = vmatpush.msra.mxu0 0.0
    %1934 = vmatpush.msra.mxu0 0.0
    %1935 = vmatpush.msra.mxu0 0.0
    %1936 = vmatpush.msra.mxu0 %v1920
    %1937 = vmatmul.f32.gmra.mxu0 %v236
    %v1938 = vpop.f32.mrf.mxu0
    %v1939 = vadd.f32 0.0, %v1938
    %1940 = vmatmul.f32.gmra.mxu0 %v239
    %v1941 = vpop.f32.mrf.mxu0
    %v1942 = vadd.f32 0.0, %v1941
    %1943 = vmatmul.f32.gmra.mxu0 %v242
    %v1944 = vpop.f32.mrf.mxu0
    %v1945 = vadd.f32 0.0, %v1944
    %1946 = vmatmul.f32.gmra.mxu0 %v245
    %v1947 = vpop.f32.mrf.mxu0
    %v1948 = vadd.f32 0.0, %v1947
    %1949 = vmatmul.f32.gmra.mxu0 %v248
    %v1950 = vpop.f32.mrf.mxu0
    %v1951 = vadd.f32 0.0, %v1950
    %1952 = vdwg.mxu0
    %v1953 = vpack.c.bf16 %v1889, %v1886
    %v1954 = vpack.c.bf16 %v1917, %v1914
    %v1956 = vsel %vm307, %v1954, 0
    %1958 = vmatpush.bf16.msra.mxu0 0
    %1959 = vmatpush.bf16.msra.mxu0 0
    %1960 = vmatpush.bf16.msra.mxu0 0
    %1961 = vmatpush.bf16.msra.mxu0 0
    %1962 = vmatpush.bf16.msra.mxu0 0
    %1963 = vmatpush.bf16.msra.mxu0 0
    %1964 = vmatpush.bf16.msra.mxu0 0
    %1965 = vmatpush.bf16.msra.mxu0 %v1956
    %1966 = vmatmul.bf16.gmra.mxu0 %v299
    %v1967 = vpop.f32.mrf.mxu0
    %v1968 = vadd.f32 0.0, %v1967
    %v1969 = vpop.f32.mrf.mxu0
    %v1970 = vadd.f32 0.0, %v1969
    %1971 = vmatmul.bf16.gmra.mxu0 %v302
    %v1972 = vpop.f32.mrf.mxu0
    %v1973 = vadd.f32 0.0, %v1972
    %v1974 = vpop.f32.mrf.mxu0
    %v1975 = vadd.f32 0.0, %v1974
    %1976 = vmatmul.bf16.gmra.mxu0 %v305
    %v1977 = vpop.f32.mrf.mxu0
    %v1978 = vadd.f32 0.0, %v1977
    %v1979 = vpop.f32.mrf.mxu0
    %1980 = vdwg.mxu0
    %v1981 = vpack.c.bf16 %v1861, %v1858
    %v1983 = vsel %vm307, %v1981, 0
    %1985 = vmatpush.bf16.msra.mxu0 0
    %1986 = vmatpush.bf16.msra.mxu0 0
    %1987 = vmatpush.bf16.msra.mxu0 0
    %1988 = vmatpush.bf16.msra.mxu0 0
    %1989 = vmatpush.bf16.msra.mxu0 0
    %1990 = vmatpush.bf16.msra.mxu0 0
    %1991 = vmatpush.bf16.msra.mxu0 0
    %1992 = vmatpush.bf16.msra.mxu0 %v1983
    %1993 = vmatmul.bf16.gmra.mxu0 %v349
    %v1994 = vpop.f32.mrf.mxu0
    %v1995 = vadd.f32 0.0, %v1994
    %v1996 = vpop.f32.mrf.mxu0
    %v1997 = vadd.f32 0.0, %v1996
    %1998 = vmatmul.bf16.gmra.mxu0 %v352
    %v1999 = vpop.f32.mrf.mxu0
    %v2000 = vadd.f32 0.0, %v1999
    %v2001 = vpop.f32.mrf.mxu0
    %v2002 = vadd.f32 0.0, %v2001
    %2003 = vmatmul.bf16.gmra.mxu0 %v355
    %v2004 = vpop.f32.mrf.mxu0
    %v2005 = vadd.f32 0.0, %v2004
    %v2006 = vpop.f32.mrf.mxu0
    %2007 = vdwg.mxu0
    %v2009 = vsel %vm307, %v1953, 0
    %2011 = vmatpush.bf16.msra.mxu0 0
    %2012 = vmatpush.bf16.msra.mxu0 0
    %2013 = vmatpush.bf16.msra.mxu0 0
    %2014 = vmatpush.bf16.msra.mxu0 0
    %2015 = vmatpush.bf16.msra.mxu0 0
    %2016 = vmatpush.bf16.msra.mxu0 0
    %2017 = vmatpush.bf16.msra.mxu0 0
    %2018 = vmatpush.bf16.msra.mxu0 %v2009
    %2019 = vmatmul.bf16.gmra.mxu0 %v349
    %v2020 = vpop.f32.mrf.mxu0
    %v2021 = vadd.f32 %v1968, %v2020
    %v2022 = vpop.f32.mrf.mxu0
    %v2023 = vadd.f32 %v1970, %v2022
    %2024 = vmatmul.bf16.gmra.mxu0 %v352
    %v2025 = vpop.f32.mrf.mxu0
    %v2026 = vadd.f32 %v1973, %v2025
    %v2027 = vpop.f32.mrf.mxu0
    %v2028 = vadd.f32 %v1975, %v2027
    %2029 = vmatmul.bf16.gmra.mxu0 %v355
    %v2030 = vpop.f32.mrf.mxu0
    %v2031 = vadd.f32 %v1978, %v2030
    %v2032 = vpop.f32.mrf.mxu0
    %2033 = vdwg.mxu0
    %v2034 = vadd.f32 %v2021, %v1939
    %v2035 = vadd.f32 %v2023, %v1942
    %v2036 = vadd.f32 %v2026, %v1945
    %v2037 = vadd.f32 %v2028, %v1948
    %v2038 = vadd.f32 %v2031, %v1951
    %vm2039 = vcmp.ge.f32.partialorder %v2034, 0.0
    %vm2040 = vcmp.ge.f32.partialorder %v2035, 0.0
    %vm2041 = vcmp.ge.f32.partialorder %v2036, 0.0
    %vm2042 = vcmp.ge.f32.partialorder %v2037, 0.0
    %vm2043 = vcmp.ge.f32.partialorder %v2038, 0.0
    %v2044 = vmul.f32 %v2034, 0.2
    %v2045 = vmul.f32 %v2035, 0.2
    %v2046 = vmul.f32 %v2036, 0.2
    %v2047 = vmul.f32 %v2037, 0.2
    %v2048 = vmul.f32 %v2038, 0.2
    %v2049 = vsel %vm2039, %v2034, %v2044
    %v2050 = vsel %vm2040, %v2035, %v2045
    %v2051 = vsel %vm2041, %v2036, %v2046
    %v2052 = vsel %vm2042, %v2037, %v2047
    %v2053 = vsel %vm2043, %v2038, %v2048
    %v2054 = vsel %vm429, %v2049, -inf
    %v2055 = vsel %vm429, %v2050, -inf
    %v2056 = vsel %vm429, %v2051, -inf
    %v2057 = vsel %vm429, %v2052, -inf
    %v2058 = vsel %vm434, %v2053, -inf
    %v2059 = vmax.f32 %v2054, %v2058
    %v2060 = vmax.f32 %v2059, %v2055
    %v2061 = vmax.f32 %v2056, %v2057
    %v2062 = vmax.f32 %v2060, %v2061
    %v2063 = vrot.slane %v2062, 4
    %v2064 = vmax.f32 %v2062, %v2063
    %v2065 = vrot.slane %v2064, 2
    %v2066 = vmax.f32 %v2064, %v2065
    %v2067 = vrot.slane %v2066, 1
    %v2068 = vmax.f32 %v2066, %v2067
    %v2069 = vsub.f32 %v2049, %v2068
    %v2070 = vsub.f32 %v2050, %v2068
    %v2071 = vsub.f32 %v2051, %v2068
    %v2072 = vsub.f32 %v2052, %v2068
    %v2073 = vsub.f32 %v2053, %v2068
    %v2074 = vmul.f32 %v2069, 1.442695
    %v2075 = vpow.pop %v2074
    %v2076 = vmul.f32 %v2070, 1.442695
    %v2077 = vpow.pop %v2076
    %v2078 = vmul.f32 %v2071, 1.442695
    %v2079 = vpow.pop %v2078
    %v2080 = vmul.f32 %v2072, 1.442695
    %v2081 = vpow.pop %v2080
    %v2082 = vmul.f32 %v2073, 1.442695
    %v2083 = vpow.pop %v2082
    %v2085 = vsel %vm429, %v2075, 0
    %v2088 = vsel %vm429, %v2077, 0
    %v2091 = vsel %vm429, %v2079, 0
    %v2094 = vsel %vm429, %v2081, 0
    %v2097 = vsel %vm429, %v2083, 0
    %2099 = vmatpush.msra.mxu0 0.0
    %2100 = vmatpush.msra.mxu0 0.0
    %2101 = vmatpush.msra.mxu0 0.0
    %2102 = vmatpush.msra.mxu0 0.0
    %2103 = vmatpush.msra.mxu0 0.0
    %2104 = vmatpush.msra.mxu0 0.0
    %2105 = vmatpush.msra.mxu0 0.0
    %2106 = vmatpush.msra.mxu0 0.0
    %2107 = vmatpush.msra.mxu0 0.0
    %2108 = vmatpush.msra.mxu0 0.0
    %2109 = vmatpush.msra.mxu0 0.0
    %2110 = vmatpush.msra.mxu0 0.0
    %2111 = vmatpush.msra.mxu0 0.0
    %2112 = vmatpush.msra.mxu0 0.0
    %2113 = vmatpush.msra.mxu0 0.0
    %2114 = vmatpush.msra.mxu0 %v478
    %2115 = vmatmul.f32.gmra.mxu0 %v2085
    %v2116 = vpop.f32.mrf.mxu0
    %v2117 = vadd.f32 0.0, %v2116
    %2118 = vmatmul.f32.gmra.mxu0 %v2088
    %v2119 = vpop.f32.mrf.mxu0
    %v2120 = vadd.f32 0.0, %v2119
    %2121 = vmatmul.f32.gmra.mxu0 %v2091
    %v2122 = vpop.f32.mrf.mxu0
    %v2123 = vadd.f32 0.0, %v2122
    %2124 = vmatmul.f32.gmra.mxu0 %v2094
    %v2125 = vpop.f32.mrf.mxu0
    %v2126 = vadd.f32 0.0, %v2125
    %2127 = vmatmul.f32.gmra.mxu0 %v2097
    %v2128 = vpop.f32.mrf.mxu0
    %v2129 = vadd.f32 0.0, %v2128
    %2130 = vdwg.mxu0
    %v2131 = vmul.f32 %v1995, %v2117
    %v2132 = vmul.f32 %v1997, %v2120
    %v2133 = vmul.f32 %v2000, %v2123
    %v2134 = vmul.f32 %v2002, %v2126
    %v2135 = vmul.f32 %v2005, %v2129
    %v2136 = vpack.c.bf16 %v2132, %v2131
    %v2137 = vpack.c.bf16 %v2134, %v2133
    %v2138 = vpack.c.bf16 %v2135, %v2135
    %v2140 = vsel %vm543, %v2138, 0
    %2142 = vmatpush.bf16.msra.mxu0 0
    %2143 = vmatpush.bf16.msra.mxu0 0
    %2144 = vmatpush.bf16.msra.mxu0 0
    %2145 = vmatpush.bf16.msra.mxu0 0
    %2146 = vmatpush.bf16.msra.mxu0 0
    %2147 = vmatpush.bf16.msra.mxu0 %v2140
    %2148 = vmatpush.bf16.msra.mxu0 %v2137
    %2149 = vmatpush.bf16.msra.mxu0 %v2136
    %2150 = vmatmul.bf16.gmra.mxu0 %v541
    %v2151 = vpop.f32.mrf.mxu0
    %v2152 = vadd.f32 0.0, %v2151
    %v2153 = vpop.f32.mrf.mxu0
    %v2154 = vadd.f32 0.0, %v2153
    %2155 = vdwg.mxu0
    %v2156 = vpack.c.bf16 %v2077, %v2075
    %v2157 = vpack.c.bf16 %v2081, %v2079
    %v2158 = vpack.c.bf16 %v2083, %v2083
    %v2160 = vsel %vm543, %v2158, 0
    %2162 = vmatpush.bf16.msra.mxu0 0
    %2163 = vmatpush.bf16.msra.mxu0 0
    %2164 = vmatpush.bf16.msra.mxu0 0
    %2165 = vmatpush.bf16.msra.mxu0 0
    %2166 = vmatpush.bf16.msra.mxu0 0
    %2167 = vmatpush.bf16.msra.mxu0 %v2160
    %2168 = vmatpush.bf16.msra.mxu0 %v2157
    %2169 = vmatpush.bf16.msra.mxu0 %v2156
    %2170 = vmatmul.bf16.gmra.mxu0 %v541
    %v2171 = vpop.f32.mrf.mxu0
    %v2172 = vadd.f32 1e-16, %v2171
    %v2173 = vpop.f32.mrf.mxu0
    %v2174 = vadd.f32 1e-16, %v2173
    %2175 = vdwg.mxu0
    %v2176 = vrcp.pop %v2172
    %v2177 = vmul.f32 %v2172, %v2176
    %v2178 = vsub.f32 1.0, %v2177
    %v2179 = vmul.f32 %v2176, %v2178
    %v2180 = vadd.f32 %v2176, %v2179
    %vm2181 = vweird.f32 %v2172
    %vm2182 = vweird.f32 %v2176
    %vm2183 = vmor %vm2181, %vm2182
    %v2184 = vsel %vm2183, %v2176, %v2180
    %v2185 = vand.u32 2147483647, %v2172
    %vm2186 = vcmp.eq.f32.partialorder %v2185, 8.507059e+37
    %v2187 = vand.u32 %v2172, 2147483648
    %v2188 = vor.u32 1.1754944e-38, %v2187
    %v2189 = vsel %vm2186, %v2188, %v2184
    %v2190 = vmul.f32 1.0, %v2189
    %v2191 = vrcp.pop %v2174
    %v2192 = vmul.f32 %v2174, %v2191
    %v2193 = vsub.f32 1.0, %v2192
    %v2194 = vmul.f32 %v2191, %v2193
    %v2195 = vadd.f32 %v2191, %v2194
    %vm2196 = vweird.f32 %v2174
    %vm2197 = vweird.f32 %v2191
    %vm2198 = vmor %vm2196, %vm2197
    %v2199 = vsel %vm2198, %v2191, %v2195
    %v2200 = vand.u32 2147483647, %v2174
    %vm2201 = vcmp.eq.f32.partialorder %v2200, 8.507059e+37
    %v2202 = vand.u32 %v2174, 2147483648
    %v2203 = vor.u32 1.1754944e-38, %v2202
    %v2204 = vsel %vm2201, %v2203, %v2199
    %v2205 = vmul.f32 1.0, %v2204
    %v2207 = vsel %vm429, %v2190, 0
    %v2210 = vsel %vm429, %v2205, 0
    %2212 = vmatpush.msra.mxu0 0.0
    %2213 = vmatpush.msra.mxu0 0.0
    %2214 = vmatpush.msra.mxu0 0.0
    %2215 = vmatpush.msra.mxu0 0.0
    %2216 = vmatpush.msra.mxu0 0.0
    %2217 = vmatpush.msra.mxu0 0.0
    %2218 = vmatpush.msra.mxu0 0.0
    %2219 = vmatpush.msra.mxu0 0.0
    %2220 = vmatpush.msra.mxu0 0.0
    %2221 = vmatpush.msra.mxu0 0.0
    %2222 = vmatpush.msra.mxu0 0.0
    %2223 = vmatpush.msra.mxu0 0.0
    %2224 = vmatpush.msra.mxu0 0.0
    %2225 = vmatpush.msra.mxu0 0.0
    %2226 = vmatpush.msra.mxu0 0.0
    %2227 = vmatpush.msra.mxu0 %v478
    %2228 = vmatmul.f32.gmra.mxu0 %v2207
    %v2229 = vpop.f32.mrf.mxu0
    %v2230 = vadd.f32 0.0, %v2229
    %2231 = vmatmul.f32.gmra.mxu0 %v2210
    %v2232 = vpop.f32.mrf.mxu0
    %v2233 = vadd.f32 0.0, %v2232
    %2234 = vdwg.mxu0
    %v2235 = vmul.f32 %v2152, %v2230
    %v2236 = vmul.f32 %v2154, %v2233
    %s2237 = scalar_lea.vmem %s9, 3
    %v2238 = vld [vmem:[%s2237] sm:$0x1]
    %v2240 = vperm.slane %v2238, 0
    %v2242 = vadd.f32 %v2235, %v2240
    %v2243 = vadd.f32 %v2236, %v2240
    %s2244 = scalar_lea.vmem %s10, 4
    %v2245 = vld [vmem:[%s2244] sm:$0x1]
    %s2246 = scalar_lea.vmem %s11, 4
    %v2247 = vld [vmem:[%s2246] sm:$0x1]
    %v2248 = vsel %vm149, %v2242, 0.0
    %2249 = vadd.xlane.f32.xlu0 %v2248
    %v2250 = vpop.xlane.xlu0 %2249
    %v2251 = vsel %vm653, %v2243, 0.0
    %2252 = vadd.xlane.f32.xlu0 %v2251
    %v2253 = vpop.xlane.xlu0 %2252
    %v2254 = vmul.f32 %v2250, %v663
    %v2255 = vmul.f32 %v2253, %v663
    %v2256 = vsub.f32 %v2242, %v2254
    %v2257 = vsub.f32 %v2243, %v2255
    %v2258 = vmul.f32 %v2256, %v2256
    %v2259 = vmul.f32 %v2257, %v2257
    %v2260 = vsel %vm149, %v2258, 0.0
    %2261 = vadd.xlane.f32.xlu0 %v2260
    %v2262 = vpop.xlane.xlu0 %2261
    %v2263 = vsel %vm653, %v2259, 0.0
    %2264 = vadd.xlane.f32.xlu0 %v2263
    %v2265 = vpop.xlane.xlu0 %2264
    %v2266 = vmul.f32 %v2262, %v663
    %v2267 = vmul.f32 %v2265, %v663
    %v2268 = vadd.f32 %v2266, 1e-06
    %v2269 = vadd.f32 %v2267, 1e-06
    %v2270 = vrsqrt.pop %v2268
    %v2271 = vmul.f32 %v2270, %v2268
    %v2272 = vmul.f32 %v2271, %v2270
    %v2273 = vmul.f32 0.5, %v2272
    %v2274 = vsub.f32 1.5, %v2273
    %v2275 = vmul.f32 %v2270, %v2274
    %vm2276 = vweird.f32 %v2268
    %vm2277 = vweird.f32 %v2270
    %vm2278 = vmor %vm2276, %vm2277
    %v2279 = vsel %vm2278, %v2270, %v2275
    %v2280 = vrsqrt.pop %v2269
    %v2281 = vmul.f32 %v2280, %v2269
    %v2282 = vmul.f32 %v2281, %v2280
    %v2283 = vmul.f32 0.5, %v2282
    %v2284 = vsub.f32 1.5, %v2283
    %v2285 = vmul.f32 %v2280, %v2284
    %vm2286 = vweird.f32 %v2269
    %vm2287 = vweird.f32 %v2280
    %vm2288 = vmor %vm2286, %vm2287
    %v2289 = vsel %vm2288, %v2280, %v2285
    %v2290 = vmul.f32 %v2256, %v2279
    %v2291 = vmul.f32 %v2257, %v2289
    %v2293 = vperm.slane %v2245, 0
    %v2295 = vmul.f32 %v2290, %v2293
    %v2296 = vmul.f32 %v2291, %v2293
    %v2298 = vperm.slane %v2247, 0
    %v2300 = vadd.f32 %v2295, %v2298
    %v2301 = vadd.f32 %v2296, %v2298
    %vm2302 = vcmp.ge.f32.partialorder %v2300, 0.0
    %vm2303 = vcmp.ge.f32.partialorder %v2301, 0.0
    %v2304 = vmul.f32 %v2300, 0.01
    %v2305 = vmul.f32 %v2301, 0.01
    %v2306 = vsel %vm2302, %v2300, %v2304
    %v2307 = vsel %vm2303, %v2301, %v2305
    %v2308 = vadd.f32 %v1827, %v2306
    %v2309 = vadd.f32 %v1828, %v2307
    %s2310 = scalar_lea.vmem [#allocation7], 32
    %v2311 = vld [vmem:[%s2310] sm:$0xff]
    %v2312 = vld [vmem:[%s2310 + $0x8] sm:$0xff]
    %v2313 = vld [vmem:[%s2310 + $0x10] sm:$0xff]
    %v2314 = vld [vmem:[%s2310 + $0x18] sm:$0xff]
    %s2315 = scalar_lea.vmem %s13, 1
    %v2316 = vld [vmem:[%s2315] sm:$0x1]
    %v2318 = vperm.slane %v2316, 0
    %v2321 = vsel %vm149, %v2308, 0
    %v2324 = vsel %vm149, %v2309, 0
    %2326 = vmatpush.msra.mxu0 0.0
    %2327 = vmatpush.msra.mxu0 0.0
    %2328 = vmatpush.msra.mxu0 0.0
    %2329 = vmatpush.msra.mxu0 0.0
    %2330 = vmatpush.msra.mxu0 0.0
    %2331 = vmatpush.msra.mxu0 0.0
    %2332 = vmatpush.msra.mxu0 0.0
    %2333 = vmatpush.msra.mxu0 0.0
    %2334 = vmatpush.msra.mxu0 0.0
    %2335 = vmatpush.msra.mxu0 0.0
    %2336 = vmatpush.msra.mxu0 0.0
    %2337 = vmatpush.msra.mxu0 0.0
    %2338 = vmatpush.msra.mxu0 %v2314
    %2339 = vmatpush.msra.mxu0 %v2313
    %2340 = vmatpush.msra.mxu0 %v2312
    %2341 = vmatpush.msra.mxu0 %v2311
    %2342 = vmatmul.f32.gmra.mxu0 %v2321
    %v2343 = vpop.f32.mrf.mxu0
    %v2344 = vadd.f32 %v2318, %v2343
    %2345 = vmatmul.f32.gmra.mxu0 %v2324
    %v2346 = vpop.f32.mrf.mxu0
    %v2347 = vadd.f32 %v2318, %v2346
    %2348 = vdwg.mxu0
    %v2349 = vmax.f32 %v2344, 0.0
    %v2350 = vmax.f32 %v2347, 0.0
    %s2351 = scalar_lea.vmem [#allocation8], 64
    %v2352 = vld [vmem:[%s2351] sm:$0xff]
    %v2353 = vld [vmem:[%s2351 + $0x8] sm:$0xff]
    %v2354 = vld [vmem:[%s2351 + $0x10] sm:$0xff]
    %v2355 = vld [vmem:[%s2351 + $0x18] sm:$0xff]
    %v2356 = vld [vmem:[%s2351 + $0x20] sm:$0xff]
    %v2357 = vld [vmem:[%s2351 + $0x28] sm:$0xff]
    %v2358 = vld [vmem:[%s2351 + $0x30] sm:$0xff]
    %v2359 = vld [vmem:[%s2351 + $0x38] sm:$0xff]
    %s2360 = scalar_lea.vmem %s15, 1
    %v2361 = vld [vmem:[%s2360] sm:$0x1]
    %v2363 = vperm.slane %v2361, 0
    %v2366 = vsel %vm1252, %v2349, 0
    %v2369 = vsel %vm1252, %v2350, 0
    %2371 = vmatpush.msra.mxu0 0.0
    %2372 = vmatpush.msra.mxu0 0.0
    %2373 = vmatpush.msra.mxu0 0.0
    %2374 = vmatpush.msra.mxu0 0.0
    %2375 = vmatpush.msra.mxu0 0.0
    %2376 = vmatpush.msra.mxu0 0.0
    %2377 = vmatpush.msra.mxu0 0.0
    %2378 = vmatpush.msra.mxu0 0.0
    %2379 = vmatpush.msra.mxu0 %v2359
    %2380 = vmatpush.msra.mxu0 %v2358
    %2381 = vmatpush.msra.mxu0 %v2357
    %2382 = vmatpush.msra.mxu0 %v2356
    %2383 = vmatpush.msra.mxu0 %v2355
    %2384 = vmatpush.msra.mxu0 %v2354
    %2385 = vmatpush.msra.mxu0 %v2353
    %2386 = vmatpush.msra.mxu0 %v2352
    %2387 = vmatmul.f32.gmra.mxu0 %v2366
    %v2388 = vpop.f32.mrf.mxu0
    %v2389 = vadd.f32 %v2363, %v2388
    %2390 = vmatmul.f32.gmra.mxu0 %v2369
    %v2391 = vpop.f32.mrf.mxu0
    %v2392 = vadd.f32 %v2363, %v2391
    %2393 = vdwg.mxu0
    %s2394 = scalar_lea.vmem %s10, 5
    %v2395 = vld [vmem:[%s2394] sm:$0x1]
    %s2396 = scalar_lea.vmem %s11, 5
    %v2397 = vld [vmem:[%s2396] sm:$0x1]
    %v2398 = vsel %vm149, %v2389, 0.0
    %2399 = vadd.xlane.f32.xlu0 %v2398
    %v2400 = vpop.xlane.xlu0 %2399
    %v2401 = vsel %vm653, %v2392, 0.0
    %2402 = vadd.xlane.f32.xlu0 %v2401
    %v2403 = vpop.xlane.xlu0 %2402
    %v2404 = vmul.f32 %v2400, %v663
    %v2405 = vmul.f32 %v2403, %v663
    %v2406 = vsub.f32 %v2389, %v2404
    %v2407 = vsub.f32 %v2392, %v2405
    %v2408 = vmul.f32 %v2406, %v2406
    %v2409 = vmul.f32 %v2407, %v2407
    %v2410 = vsel %vm149, %v2408, 0.0
    %2411 = vadd.xlane.f32.xlu0 %v2410
    %v2412 = vpop.xlane.xlu0 %2411
    %v2413 = vsel %vm653, %v2409, 0.0
    %2414 = vadd.xlane.f32.xlu0 %v2413
    %v2415 = vpop.xlane.xlu0 %2414
    %v2416 = vmul.f32 %v2412, %v663
    %v2417 = vmul.f32 %v2415, %v663
    %v2418 = vadd.f32 %v2416, 1e-06
    %v2419 = vadd.f32 %v2417, 1e-06
    %v2420 = vrsqrt.pop %v2418
    %v2421 = vmul.f32 %v2420, %v2418
    %v2422 = vmul.f32 %v2421, %v2420
    %v2423 = vmul.f32 0.5, %v2422
    %v2424 = vsub.f32 1.5, %v2423
    %v2425 = vmul.f32 %v2420, %v2424
    %vm2426 = vweird.f32 %v2418
    %vm2427 = vweird.f32 %v2420
    %vm2428 = vmor %vm2426, %vm2427
    %v2429 = vsel %vm2428, %v2420, %v2425
    %v2430 = vrsqrt.pop %v2419
    %v2431 = vmul.f32 %v2430, %v2419
    %v2432 = vmul.f32 %v2431, %v2430
    %v2433 = vmul.f32 0.5, %v2432
    %v2434 = vsub.f32 1.5, %v2433
    %v2435 = vmul.f32 %v2430, %v2434
    %vm2436 = vweird.f32 %v2419
    %vm2437 = vweird.f32 %v2430
    %vm2438 = vmor %vm2436, %vm2437
    %v2439 = vsel %vm2438, %v2430, %v2435
    %v2440 = vmul.f32 %v2406, %v2429
    %v2441 = vmul.f32 %v2407, %v2439
    %v2443 = vperm.slane %v2395, 0
    %v2445 = vmul.f32 %v2440, %v2443
    %v2446 = vmul.f32 %v2441, %v2443
    %v2448 = vperm.slane %v2397, 0
    %v2450 = vadd.f32 %v2445, %v2448
    %v2451 = vadd.f32 %v2446, %v2448
    %vm2452 = vcmp.ge.f32.partialorder %v2450, 0.0
    %vm2453 = vcmp.ge.f32.partialorder %v2451, 0.0
    %v2454 = vmul.f32 %v2450, 0.01
    %v2455 = vmul.f32 %v2451, 0.01
    %v2456 = vsel %vm2452, %v2450, %v2454
    %v2457 = vsel %vm2453, %v2451, %v2455
    %v2458 = vadd.f32 %v2308, %v2456
    %v2459 = vadd.f32 %v2309, %v2457
    %v2460 = vld [vmem:[%s16] sm:$0x1]
    %v2461 = vld [vmem:[%s17] sm:$0x1]
    %v2462 = vsel %vm149, %v2458, 0.0
    %2463 = vadd.xlane.f32.xlu0 %v2462
    %v2464 = vpop.xlane.xlu0 %2463
    %v2465 = vsel %vm653, %v2459, 0.0
    %2466 = vadd.xlane.f32.xlu0 %v2465
    %v2467 = vpop.xlane.xlu0 %2466
    %v2468 = vmul.f32 %v2464, %v663
    %v2469 = vmul.f32 %v2467, %v663
    %v2470 = vsub.f32 %v2458, %v2468
    %v2471 = vsub.f32 %v2459, %v2469
    %v2472 = vmul.f32 %v2470, %v2470
    %v2473 = vmul.f32 %v2471, %v2471
    %v2474 = vsel %vm149, %v2472, 0.0
    %2475 = vadd.xlane.f32.xlu0 %v2474
    %v2476 = vpop.xlane.xlu0 %2475
    %v2477 = vsel %vm653, %v2473, 0.0
    %2478 = vadd.xlane.f32.xlu0 %v2477
    %v2479 = vpop.xlane.xlu0 %2478
    %v2480 = vmul.f32 %v2476, %v663
    %v2481 = vmul.f32 %v2479, %v663
    %v2482 = vadd.f32 %v2480, 1e-06
    %v2483 = vadd.f32 %v2481, 1e-06
    %v2484 = vrsqrt.pop %v2482
    %v2485 = vmul.f32 %v2484, %v2482
    %v2486 = vmul.f32 %v2485, %v2484
    %v2487 = vmul.f32 0.5, %v2486
    %v2488 = vsub.f32 1.5, %v2487
    %v2489 = vmul.f32 %v2484, %v2488
    %vm2490 = vweird.f32 %v2482
    %vm2491 = vweird.f32 %v2484
    %vm2492 = vmor %vm2490, %vm2491
    %v2493 = vsel %vm2492, %v2484, %v2489
    %v2494 = vrsqrt.pop %v2483
    %v2495 = vmul.f32 %v2494, %v2483
    %v2496 = vmul.f32 %v2495, %v2494
    %v2497 = vmul.f32 0.5, %v2496
    %v2498 = vsub.f32 1.5, %v2497
    %v2499 = vmul.f32 %v2494, %v2498
    %vm2500 = vweird.f32 %v2483
    %vm2501 = vweird.f32 %v2494
    %vm2502 = vmor %vm2500, %vm2501
    %v2503 = vsel %vm2502, %v2494, %v2499
    %v2504 = vmul.f32 %v2470, %v2493
    %v2505 = vmul.f32 %v2471, %v2503
    %v2507 = vperm.slane %v2460, 0
    %v2509 = vmul.f32 %v2504, %v2507
    %v2510 = vmul.f32 %v2505, %v2507
    %v2512 = vperm.slane %v2461, 0
    %v2514 = vadd.f32 %v2509, %v2512
    %v2515 = vadd.f32 %v2510, %v2512
    %v2516 = vld [vmem:[%s18] sm:$0xf]
    %v2517 = vld [vmem:[%s18 + $0x4] sm:$0x3]
    %v2518 = vpack.c.bf16 %v2515, %v2514
    %v2521 = vunpack.c.l.b16 %v2516
    %v2522 = vunpack.c.l.b16 %v2517
    %v2523 = vpack.c.b16 %v2522, %v2521
    %2525 = vxpose.xlu0.c.b16.start [1/8] %v2523, 128
    %2526 = vxpose.xlu0.c.b16.cont [2/8] 0, 128
    %2527 = vxpose.xlu0.c.b16.cont [3/8] 0, 128
    %2528 = vxpose.xlu0.c.b16.cont [4/8] 0, 128
    %2529 = vxpose.xlu0.c.b16.cont [5/8] 0, 128
    %2530 = vxpose.xlu0.c.b16.cont [6/8] 0, 128
    %2531 = vxpose.xlu0.c.b16.cont [7/8] 0, 128
    %2532 = vxpose.xlu0.c.b16.end [8/8] 0, 128
    %v2533 = vpop.trf.xlu0
    %v2534 = vpop.trf.xlu0
    %v2535 = vpop.trf.xlu0
    %v2536 = vpop.trf.xlu0
    %v2537 = vpop.trf.xlu0
    %v2538 = vpop.trf.xlu0
    %v2539 = vpop.trf.xlu0
    %v2540 = vpop.trf.xlu0
    %v2542 = vsel %vm297, %v2533, 0
    %v2545 = vsel %vm307, %v2518, 0
    %2547 = vmatpush.bf16.msra.mxu0 0
    %2548 = vmatpush.bf16.msra.mxu0 0
    %2549 = vmatpush.bf16.msra.mxu0 0
    %2550 = vmatpush.bf16.msra.mxu0 0
    %2551 = vmatpush.bf16.msra.mxu0 0
    %2552 = vmatpush.bf16.msra.mxu0 0
    %2553 = vmatpush.bf16.msra.mxu0 0
    %2554 = vmatpush.bf16.msra.mxu0 %v2545
    %2555 = vmatmul.bf16.gmra.mxu0 %v2542
    %v2556 = vpop.f32.mrf.mxu0
    %v2557 = vadd.f32 0.0, %v2556
    %v2558 = vpop.f32.mrf.mxu0
    %2559 = vdwg.mxu0
    %vm2560 = vcmask 254976
    %2561 = vst.msk [vmem:[#allocation10] sm:$0x3] %vm2560, %v2557
    // Predicated region
    $region94: #{encoder_forward.1} parent=1 // pred_check
      _
    $region95: #{encoder_forward.1} parent=1 // pred_check_branch
      %2563 = sbr.rel (0) target = $region97
    $region96: #{encoder_forward.1} parent=1 // pred_region
      %2565 = vsyncadd [#allocation4], 0
      %s2567 = sshll.u32 [#allocation10], 4
      %s2568 = int_to_ptr.vmem [resolvable:$true] %s2567
      %s2569 = sshll.u32 %s19, 4
      %s2570 = int_to_ptr.hbm [resolvable:$true] %s2569
      %2572 = dma.vmem_to_hbm [thread:$0]  %s2568, 32, %s2570, [#allocation4]
    $region97: #{encoder_forward.1} parent=1 // pred_fallthru
      _
    // Predicated region
    $region98: #{encoder_forward.1} parent=1 // pred_check
      _
    $region99: #{encoder_forward.1} parent=1 // pred_check_branch
      %2574 = sbr.rel (0) target = $region101
    $region100: #{encoder_forward.1} parent=1 // pred_region
      %2576 = dma.done [#allocation4], 32
    $region101: #{encoder_forward.1} parent=1 // pred_fallthru
      _
    %2577 = vsyncpa [#allocation3], 1
    %2578 = vsyncpa [#allocation6], 1
    %2579 = vsyncpa [#allocation9], 1
    %2580 = vsyncpa [#allocation4], 1

</llo_original>
